<compile_context>
chip_gen: v5e
topology: v5e:2x2
jax: 0.10.0
libtpu: 0.0.40
codegen_flags: <defaults>
</compile_context>

<pallas_src>
from functools import partial

import jax
import jax.numpy as jnp
from jax.experimental import pallas as pl
from jax.experimental.pallas import tpu as pltpu


# ----------------------------- Fused Pallas kernel ------------------------------

def _make_fused_forward_kernel(T, B, H, V, K, num_layers):
    """Whole forward (counts build -> stacked BiLSTM -> linear) in one gridless kernel."""
    n_fixed = 5
    n_in = n_fixed + 3 * num_layers
    TB = T * B
    H2, H4, H6, H8 = 2 * H, 4 * H, 6 * H, 8 * H

    def kernel(*refs):
        x_ref, h0_ref, c0_ref, lin_w_ref, lin_b_ref = refs[:n_fixed]
        layer_refs = refs[n_fixed:n_in]
        out_ref = refs[n_in]
        xp_ref = refs[n_in + 1]                     # (T*B, 8H) VMEM scratch (input proj.)

        f32 = jnp.float32

        # ---- Embedding-bag counts built in-kernel (no wrapper one-hot / sum). ----
        # Row t*B + b holds the vocab counts (with multiplicity) of bag (b, t).
        x_ids = x_ref[...]                                           # (T*B, K) int32
        vocab_iota = jax.lax.broadcasted_iota(jnp.int32, (TB, V), 1)
        counts = (x_ids[:, 0:1] == vocab_iota).astype(f32)
        for k in range(1, K):
            counts = counts + (x_ids[:, k:k + 1] == vocab_iota).astype(f32)

        # Lane mask for the gate-major / direction-minor packing: fwd lanes are the lower
        # H lanes of every 2H-wide gate window.  Built once, reused by every layer.
        lane = jax.lax.broadcasted_iota(jnp.int32, (B, H8), 1)
        fwd_mask = (lane % H2) < H

        # Layer-0 input is the counts matrix itself: its W_ih already has the embedding
        # table folded in (prepare_params computes emb @ W_ih0 -> (V, 8H)).
        x_in = counts                                                # (T*B, Din)

        for l in range(num_layers):
            wih_ref, whh_ref, b_ref = layer_refs[3 * l:3 * l + 3]

            # Hoisted input projection (+ folded bias): ONE wide matmul for both
            # directions and all gates, spilled to VMEM scratch (row t*B+b = time t).
            xp_ref[...] = (jnp.dot(x_in, wih_ref[...], preferred_element_type=f32)
                           + b_ref[...])

            whh = whh_ref[...]                                       # (2H, 8H) block-sparse
            # h/c carry both directions in one value: lanes [0:H)=fwd, [H:2H)=bwd.
            h = jnp.concatenate([h0_ref[2 * l], h0_ref[2 * l + 1]], axis=1)   # (B, 2H)
            c = jnp.concatenate([c0_ref[2 * l], c0_ref[2 * l + 1]], axis=1)

            h_steps = []
            for s in range(T):
                # fwd direction consumes time t=s, bwd consumes t=T-1-s; the two row-slab
                # loads + select are off the serial h->h chain (scheduler hoists them).
                slab_f = xp_ref[s * B:(s + 1) * B, :]                # (B, 8H)
                slab_b = xp_ref[(T - 1 - s) * B:(T - s) * B, :]
                xg = jnp.where(fwd_mask, slab_f, slab_b)

                # ONE fused MXU push per step for all gates of both directions.
                pre = xg + jnp.dot(h, whh, preferred_element_type=f32)   # (B, 8H)

                sig = jax.nn.sigmoid(pre)                            # full-width EUP op
                i_t = sig[:, 0:H2]                                   # (B, 2H) [fwd|bwd]
                f_t = sig[:, H2:H4]
                g_t = jnp.tanh(pre[:, H4:H6])
                o_t = sig[:, H6:H8]

                c = f_t * c + i_t * g_t
                h = o_t * jnp.tanh(c)
                h_steps.append(h)                                    # kept as values

            # Layer output, time-major rows: [h_fwd(t) | h_bwd(t)].  bwd output of time t
            # was produced at step s = T-1-t.  No scratch round-trip, no masked stores.
            rows = [jnp.concatenate([h_steps[t][:, :H], h_steps[T - 1 - t][:, H:]], axis=1)
                    for t in range(T)]
            x_in = jnp.concatenate(rows, axis=0)                     # (T*B, 2H)

        # ---- Final linear, written as one lane-dense 128-wide padded tile. ----
        out_ref[...] = (jnp.dot(x_in, lin_w_ref[...], preferred_element_type=f32)
                        + lin_b_ref[...])

    return kernel


# ------------------------- One-time parameter preparation -----------------------

def prepare_params(params, num_layers):
    """Hoisted weight prep (done once, outside the per-call path):
       * per-layer packed W_ih (Din, 8H), block-sparse W_hh (2H, 8H), bias (1, 8H) in the
         gate-major / direction-minor layout used by the kernel (PyTorch gate order i,f,g,o),
       * embedding table folded into layer-0's W_ih (counts @ (emb @ W_ih0)),
       * b_ih + b_hh folding, lane-padding of the final linear to 128 lanes."""
    H = params["lstm"]["l0_fwd"][1].shape[1]                  # W_hh: (4H, H)
    E = params["embedding"].shape[1]
    layers = []
    for l in range(num_layers):
        d_in = E if l == 0 else 2 * H
        wih_p = jnp.zeros((d_in, 8 * H), jnp.float32)
        whh_p = jnp.zeros((2 * H, 8 * H), jnp.float32)
        b_p = jnp.zeros((1, 8 * H), jnp.float32)
        for d, direction in enumerate(("fwd", "bwd")):
            w_ih, w_hh, b_ih, b_hh = params["lstm"][f"l{l}_{direction}"]
            bias = (b_ih + b_hh).astype(jnp.float32)
            for g in range(4):                                # PyTorch gate order i, f, g, o
                col = 2 * g * H + d * H
                wih_p = wih_p.at[:, col:col + H].set(
                    w_ih[g * H:(g + 1) * H, :].T.astype(jnp.float32))
                whh_p = whh_p.at[d * H:(d + 1) * H, col:col + H].set(
                    w_hh[g * H:(g + 1) * H, :].T.astype(jnp.float32))
                b_p = b_p.at[0, col:col + H].set(bias[g * H:(g + 1) * H])
        if l == 0:
            # Fold the embedding table into layer-0's input projection:
            # (counts @ emb) @ W_ih0  ==  counts @ (emb @ W_ih0)   -> (V, 8H)
            wih_p = jnp.dot(params["embedding"].astype(jnp.float32), wih_p)
        layers.append((wih_p, whh_p, b_p))

    out_dim, two_h = params["linear_w"].shape
    n_pad = ((out_dim + 127) // 128) * 128                    # lane-dense output width
    lin_w = jnp.zeros((two_h, n_pad), jnp.float32).at[:, :out_dim].set(
        params["linear_w"].T.astype(jnp.float32))
    lin_b = jnp.zeros((1, n_pad), jnp.float32).at[:, :out_dim].set(
        params["linear_b"].astype(jnp.float32))
    return {"layers": tuple(layers), "lin_w": lin_w, "lin_b": lin_b}


# --------------------------------- Forward (jit) --------------------------------

@partial(jax.jit, static_argnames=("out_dim",))
def my_classifier_2a_forward(prep, x, h0, c0, *, out_dim):
    B, T, K = x.shape
    H = h0.shape[2]
    num_layers = len(prep["layers"])
    V = prep["layers"][0][0].shape[0]                         # layer-0 W_ih is (V, 8H)
    n_pad = prep["lin_w"].shape[1]

    # Tiny int32 reorder to time-major bags (row t*B + b); the one-hot/counts build itself
    # happens inside the kernel.
    x_tm = jnp.transpose(x.astype(jnp.int32), (1, 0, 2)).reshape(T * B, K)

    inputs = [x_tm, h0.astype(jnp.float32), c0.astype(jnp.float32),
              prep["lin_w"], prep["lin_b"]]
    for wih, whh, b in prep["layers"]:
        inputs += [wih, whh, b]

    vmem_spec = pl.BlockSpec(memory_space=pltpu.MemorySpace.VMEM)
    out_flat = pl.pallas_call(
        _make_fused_forward_kernel(T, B, H, V, K, num_layers),
        out_shape=jax.ShapeDtypeStruct((T * B, n_pad), jnp.float32),
        in_specs=[vmem_spec] * len(inputs),
        out_specs=vmem_spec,
        scratch_shapes=[pltpu.VMEM((T * B, 8 * H), jnp.float32)],
    )(*inputs)

    # TODO(synk): nn.Dropout(0.2) is identity in eval/inference mode.
    # time-major (T*B, n_pad) -> batch-first (B, T, out_dim)
    out = out_flat.reshape(T, B, n_pad)[:, :, :out_dim]
    return jnp.transpose(out, (1, 0, 2))


# ------------------------------ Deterministic init ------------------------------

def init_params(key, input_size, embedding_dim, hidden_dim, output_dim, num_layers):
    keys = iter(jax.random.split(key, 8 + 8 * num_layers))
    params = {}
    # nn.Embedding: N(0, 1)
    params["embedding"] = jax.random.normal(next(keys), (input_size, embedding_dim),
                                            dtype=jnp.float32)
    # nn.LSTM: U(-1/sqrt(H), 1/sqrt(H)), PyTorch gate order i, f, g, o
    bound = 1.0 / jnp.sqrt(hidden_dim)
    lstm = {}
    for l in range(num_layers):
        d_in = embedding_dim if l == 0 else 2 * hidden_dim
        for direction in ("fwd", "bwd"):
            w_ih = jax.random.uniform(next(keys), (4 * hidden_dim, d_in),
                                      minval=-bound, maxval=bound, dtype=jnp.float32)
            w_hh = jax.random.uniform(next(keys), (4 * hidden_dim, hidden_dim),
                                      minval=-bound, maxval=bound, dtype=jnp.float32)
            b_ih = jax.random.uniform(next(keys), (4 * hidden_dim,),
                                      minval=-bound, maxval=bound, dtype=jnp.float32)
            b_hh = jax.random.uniform(next(keys), (4 * hidden_dim,),
                                      minval=-bound, maxval=bound, dtype=jnp.float32)
            lstm[f"l{l}_{direction}"] = (w_ih, w_hh, b_ih, b_hh)
    params["lstm"] = lstm
    # nn.Linear(2H, output_dim): U(-1/sqrt(fan_in), 1/sqrt(fan_in))
    fan_in = 2 * hidden_dim
    lb = 1.0 / jnp.sqrt(fan_in)
    params["linear_w"] = jax.random.uniform(next(keys), (output_dim, fan_in),
                                            minval=-lb, maxval=lb, dtype=jnp.float32)
    params["linear_b"] = jax.random.uniform(next(keys), (output_dim,),
                                            minval=-lb, maxval=lb, dtype=jnp.float32)
    return params


# ------------------------------------- Main --------------------------------------

if __name__ == "__main__":
    input_size = 50      # vocab size
    embedding_dim = 32
    hidden_dim = 32
    output_dim = 5
    num_layers = 2
    B, T, K = 2, 8, 4    # x is (batch, seq, bag) of token indices -> sum over dim=2

    root = jax.random.PRNGKey(0)
    k_params, k_x, k_h0, k_c0 = jax.random.split(root, 4)

    params = init_params(k_params, input_size, embedding_dim, hidden_dim,
                         output_dim, num_layers)
    prep = prepare_params(params, num_layers)   # hoisted: packing / folding / padding

    x = jax.random.randint(k_x, (B, T, K), 0, input_size, dtype=jnp.int32)
    # forward() draws h0/c0 with torch.randn each call -> deterministic normals here.
    h0 = jax.random.normal(k_h0, (num_layers * 2, B, hidden_dim), dtype=jnp.float32)
    c0 = jax.random.normal(k_c0, (num_layers * 2, B, hidden_dim), dtype=jnp.float32)

    out = my_classifier_2a_forward(prep, x, h0, c0, out_dim=output_dim)
    out = jax.block_until_ready(out)
    assert out.shape == (B, T, output_dim), out.shape
    assert out.dtype == jnp.float32
    assert bool(jnp.all(jnp.isfinite(out)))
    print("KERNEL_OK")
</pallas_src>

<mosaic_0001>
module attributes {stable_mosaic.version = 11 : i64} {
  func.func @kernel(%arg0: memref<16x4xi32, #tpu.memory_space<vmem>>, %arg1: memref<4x2x32xf32, #tpu.memory_space<vmem>>, %arg2: memref<4x2x32xf32, #tpu.memory_space<vmem>>, %arg3: memref<64x128xf32, #tpu.memory_space<vmem>>, %arg4: memref<1x128xf32, #tpu.memory_space<vmem>>, %arg5: memref<50x256xf32, #tpu.memory_space<vmem>>, %arg6: memref<64x256xf32, #tpu.memory_space<vmem>>, %arg7: memref<1x256xf32, #tpu.memory_space<vmem>>, %arg8: memref<64x256xf32, #tpu.memory_space<vmem>>, %arg9: memref<64x256xf32, #tpu.memory_space<vmem>>, %arg10: memref<1x256xf32, #tpu.memory_space<vmem>>, %arg11: memref<16x128xf32, #tpu.memory_space<vmem>>, %arg12: memref<16x256xf32, #tpu.memory_space<vmem>>) attributes {dimension_semantics = [], scalar_prefetch = 0 : i64, scratch_operands = 1 : i64, tpu.core_type = #tpu.core_type<tc>} {
    %c0 = arith.constant 0 : index
    %c0_0 = arith.constant 0 : index
    %0 = vector.load %arg0[%c0, %c0_0] : memref<16x4xi32, #tpu.memory_space<vmem>>, vector<16x4xi32>
    %1 = tpu.iota {dimensions = array<i32: 1>} : vector<16x50xi32>
    %2 = vector.extract_strided_slice %0 {offsets = [0, 0], sizes = [16, 1], strides = [1, 1]} : vector<16x4xi32> to vector<16x1xi32>
    %3 = vector.broadcast %2 : vector<16x1xi32> to vector<16x50xi32>
    %4 = arith.cmpi eq, %3, %1 : vector<16x50xi32>
    %5 = arith.extui %4 : vector<16x50xi1> to vector<16x50xi32>
    %6 = arith.sitofp %5 : vector<16x50xi32> to vector<16x50xf32>
    %7 = vector.extract_strided_slice %0 {offsets = [0, 1], sizes = [16, 1], strides = [1, 1]} : vector<16x4xi32> to vector<16x1xi32>
    %8 = vector.broadcast %7 : vector<16x1xi32> to vector<16x50xi32>
    %9 = arith.cmpi eq, %8, %1 : vector<16x50xi32>
    %10 = arith.extui %9 : vector<16x50xi1> to vector<16x50xi32>
    %11 = arith.sitofp %10 : vector<16x50xi32> to vector<16x50xf32>
    %12 = arith.addf %6, %11 : vector<16x50xf32>
    %13 = vector.extract_strided_slice %0 {offsets = [0, 2], sizes = [16, 1], strides = [1, 1]} : vector<16x4xi32> to vector<16x1xi32>
    %14 = vector.broadcast %13 : vector<16x1xi32> to vector<16x50xi32>
    %15 = arith.cmpi eq, %14, %1 : vector<16x50xi32>
    %16 = arith.extui %15 : vector<16x50xi1> to vector<16x50xi32>
    %17 = arith.sitofp %16 : vector<16x50xi32> to vector<16x50xf32>
    %18 = arith.addf %12, %17 : vector<16x50xf32>
    %19 = vector.extract_strided_slice %0 {offsets = [0, 3], sizes = [16, 1], strides = [1, 1]} : vector<16x4xi32> to vector<16x1xi32>
    %20 = vector.broadcast %19 : vector<16x1xi32> to vector<16x50xi32>
    %21 = arith.cmpi eq, %20, %1 : vector<16x50xi32>
    %22 = arith.extui %21 : vector<16x50xi1> to vector<16x50xi32>
    %23 = arith.sitofp %22 : vector<16x50xi32> to vector<16x50xf32>
    %24 = arith.addf %18, %23 : vector<16x50xf32>
    %25 = tpu.iota {dimensions = array<i32: 1>} : vector<2x256xi32>
    %c64_i32 = arith.constant 64 : i32
    %c0_i32 = arith.constant 0 : i32
    %26 = arith.cmpi eq, %c64_i32, %c0_i32 : i32
    %c1_i32 = arith.constant 1 : i32
    %27 = arith.select %26, %c1_i32, %c64_i32 : i32
    %28 = vector.broadcast %27 : i32 to vector<2x256xi32>
    %29 = arith.remsi %25, %28 : vector<2x256xi32>
    %c0_i32_1 = arith.constant 0 : i32
    %30 = vector.broadcast %c0_i32_1 : i32 to vector<2x256xi32>
    %31 = arith.cmpi ne, %29, %30 : vector<2x256xi32>
    %c0_i32_2 = arith.constant 0 : i32
    %32 = vector.broadcast %c0_i32_2 : i32 to vector<2x256xi32>
    %33 = arith.cmpi slt, %29, %32 : vector<2x256xi32>
    %c0_i32_3 = arith.constant 0 : i32
    %34 = arith.cmpi slt, %27, %c0_i32_3 : i32
    %35 = vector.broadcast %34 : i1 to vector<2x256xi1>
    %36 = vector.broadcast %35 : vector<2x256xi1> to vector<2x256xi1>
    %37 = arith.xori %33, %36 : vector<2x256xi1>
    %38 = arith.andi %37, %31 : vector<2x256xi1>
    %39 = vector.broadcast %27 : i32 to vector<2x256xi32>
    %40 = arith.addi %29, %39 : vector<2x256xi32>
    %41 = arith.select %38, %40, %29 : vector<2x256xi1>, vector<2x256xi32>
    %c32_i32 = arith.constant 32 : i32
    %42 = vector.broadcast %c32_i32 : i32 to vector<2x256xi32>
    %43 = arith.cmpi slt, %41, %42 : vector<2x256xi32>
    %c0_4 = arith.constant 0 : index
    %c0_5 = arith.constant 0 : index
    %44 = vector.load %arg5[%c0_4, %c0_5] : memref<50x256xf32, #tpu.memory_space<vmem>>, vector<50x256xf32>
    %cst = arith.constant dense<0.000000e+00> : vector<16x256xf32>
    %45 = tpu.matmul %24, %44, %cst {dimension_numbers = #tpu.dot_dimension_numbers<[1], [0], [0], [1], [0, 0, 1, 1], [], []>} : vector<16x50xf32>, vector<50x256xf32>, vector<16x256xf32> -> vector<16x256xf32>
    %c0_6 = arith.constant 0 : index
    %c0_7 = arith.constant 0 : index
    %46 = vector.load %arg7[%c0_6, %c0_7] : memref<1x256xf32, #tpu.memory_space<vmem>>, vector<1x256xf32>
    %47 = vector.broadcast %46 : vector<1x256xf32> to vector<16x256xf32>
    %48 = arith.addf %45, %47 : vector<16x256xf32>
    %c0_8 = arith.constant 0 : index
    %c0_9 = arith.constant 0 : index
    %49 = vector.load %arg12[%c0_8, %c0_9] : memref<16x256xf32, #tpu.memory_space<vmem>>, vector<16x256xf32>
    tpu.vector_store %arg12[%c0_8, %c0_9], %48 {strides = array<i32>} : memref<16x256xf32, #tpu.memory_space<vmem>>, vector<16x256xf32>,
    %c0_10 = arith.constant 0 : index
    %c0_11 = arith.constant 0 : index
    %50 = vector.load %arg6[%c0_10, %c0_11] : memref<64x256xf32, #tpu.memory_space<vmem>>, vector<64x256xf32>
    %c0_12 = arith.constant 0 : index
    %c0_13 = arith.constant 0 : index
    %c0_14 = arith.constant 0 : index
    %51 = vector.load %arg1[%c0_12, %c0_13, %c0_14] : memref<4x2x32xf32, #tpu.memory_space<vmem>>, vector<1x2x32xf32>
    %52 = vector.shape_cast %51 : vector<1x2x32xf32> to vector<2x32xf32>
    %c1 = arith.constant 1 : index
    %c0_15 = arith.constant 0 : index
    %c0_16 = arith.constant 0 : index
    %53 = vector.load %arg1[%c1, %c0_15, %c0_16] : memref<4x2x32xf32, #tpu.memory_space<vmem>>, vector<1x2x32xf32>
    %54 = vector.shape_cast %53 : vector<1x2x32xf32> to vector<2x32xf32>
    %55 = tpu.concatenate %52, %54 in 1 : vector<2x32xf32>, vector<2x32xf32> -> vector<2x64xf32>
    %c0_17 = arith.constant 0 : index
    %c0_18 = arith.constant 0 : index
    %c0_19 = arith.constant 0 : index
    %56 = vector.load %arg2[%c0_17, %c0_18, %c0_19] : memref<4x2x32xf32, #tpu.memory_space<vmem>>, vector<1x2x32xf32>
    %57 = vector.shape_cast %56 : vector<1x2x32xf32> to vector<2x32xf32>
    %c1_20 = arith.constant 1 : index
    %c0_21 = arith.constant 0 : index
    %c0_22 = arith.constant 0 : index
    %58 = vector.load %arg2[%c1_20, %c0_21, %c0_22] : memref<4x2x32xf32, #tpu.memory_space<vmem>>, vector<1x2x32xf32>
    %59 = vector.shape_cast %58 : vector<1x2x32xf32> to vector<2x32xf32>
    %60 = tpu.concatenate %57, %59 in 1 : vector<2x32xf32>, vector<2x32xf32> -> vector<2x64xf32>
    %c0_23 = arith.constant 0 : index
    %c0_24 = arith.constant 0 : index
    %61 = vector.load %arg12[%c0_23, %c0_24] : memref<16x256xf32, #tpu.memory_space<vmem>>, vector<2x256xf32>
    %c14 = arith.constant 14 : index
    %c0_25 = arith.constant 0 : index
    %62 = vector.load %arg12[%c14, %c0_25] : memref<16x256xf32, #tpu.memory_space<vmem>>, vector<2x256xf32>
    %63 = arith.select %43, %61, %62 : vector<2x256xi1>, vector<2x256xf32>
    %cst_26 = arith.constant dense<0.000000e+00> : vector<2x256xf32>
    %64 = tpu.matmul %55, %50, %cst_26 {dimension_numbers = #tpu.dot_dimension_numbers<[1], [0], [0], [1], [0, 0, 1, 1], [], []>} : vector<2x64xf32>, vector<64x256xf32>, vector<2x256xf32> -> vector<2x256xf32>
    %65 = arith.addf %63, %64 : vector<2x256xf32>
    %66 = arith.negf %65 : vector<2x256xf32>
    %67 = math.exp %66 : vector<2x256xf32>
    %cst_27 = arith.constant 1.000000e+00 : f32
    %68 = vector.broadcast %cst_27 : f32 to vector<2x256xf32>
    %69 = arith.addf %68, %67 : vector<2x256xf32>
    %70 = arith.divf %68, %69 : vector<2x256xf32>
    %71 = vector.extract_strided_slice %70 {offsets = [0, 0], sizes = [2, 64], strides = [1, 1]} : vector<2x256xf32> to vector<2x64xf32>
    %72 = vector.extract_strided_slice %70 {offsets = [0, 64], sizes = [2, 64], strides = [1, 1]} : vector<2x256xf32> to vector<2x64xf32>
    %73 = vector.extract_strided_slice %65 {offsets = [0, 128], sizes = [2, 64], strides = [1, 1]} : vector<2x256xf32> to vector<2x64xf32>
    %74 = math.tanh %73 : vector<2x64xf32>
    %75 = vector.extract_strided_slice %70 {offsets = [0, 192], sizes = [2, 64], strides = [1, 1]} : vector<2x256xf32> to vector<2x64xf32>
    %76 = arith.mulf %72, %60 : vector<2x64xf32>
    %77 = arith.mulf %71, %74 : vector<2x64xf32>
    %78 = arith.addf %76, %77 : vector<2x64xf32>
    %79 = math.tanh %78 : vector<2x64xf32>
    %80 = arith.mulf %75, %79 : vector<2x64xf32>
    %c2 = arith.constant 2 : index
    %c0_28 = arith.constant 0 : index
    %81 = vector.load %arg12[%c2, %c0_28] : memref<16x256xf32, #tpu.memory_space<vmem>>, vector<2x256xf32>
    %c12 = arith.constant 12 : index
    %c0_29 = arith.constant 0 : index
    %82 = vector.load %arg12[%c12, %c0_29] : memref<16x256xf32, #tpu.memory_space<vmem>>, vector<2x256xf32>
    %83 = arith.select %43, %81, %82 : vector<2x256xi1>, vector<2x256xf32>
    %cst_30 = arith.constant dense<0.000000e+00> : vector<2x256xf32>
    %84 = tpu.matmul %80, %50, %cst_30 {dimension_numbers = #tpu.dot_dimension_numbers<[1], [0], [0], [1], [0, 0, 1, 1], [], []>} : vector<2x64xf32>, vector<64x256xf32>, vector<2x256xf32> -> vector<2x256xf32>
    %85 = arith.addf %83, %84 : vector<2x256xf32>
    %86 = arith.negf %85 : vector<2x256xf32>
    %87 = math.exp %86 : vector<2x256xf32>
    %cst_31 = arith.constant 1.000000e+00 : f32
    %88 = vector.broadcast %cst_31 : f32 to vector<2x256xf32>
    %89 = arith.addf %88, %87 : vector<2x256xf32>
    %90 = arith.divf %88, %89 : vector<2x256xf32>
    %91 = vector.extract_strided_slice %90 {offsets = [0, 0], sizes = [2, 64], strides = [1, 1]} : vector<2x256xf32> to vector<2x64xf32>
    %92 = vector.extract_strided_slice %90 {offsets = [0, 64], sizes = [2, 64], strides = [1, 1]} : vector<2x256xf32> to vector<2x64xf32>
    %93 = vector.extract_strided_slice %85 {offsets = [0, 128], sizes = [2, 64], strides = [1, 1]} : vector<2x256xf32> to vector<2x64xf32>
    %94 = math.tanh %93 : vector<2x64xf32>
    %95 = vector.extract_strided_slice %90 {offsets = [0, 192], sizes = [2, 64], strides = [1, 1]} : vector<2x256xf32> to vector<2x64xf32>
    %96 = arith.mulf %92, %78 : vector<2x64xf32>
    %97 = arith.mulf %91, %94 : vector<2x64xf32>
    %98 = arith.addf %96, %97 : vector<2x64xf32>
    %99 = math.tanh %98 : vector<2x64xf32>
    %100 = arith.mulf %95, %99 : vector<2x64xf32>
    %c4 = arith.constant 4 : index
    %c0_32 = arith.constant 0 : index
    %101 = vector.load %arg12[%c4, %c0_32] : memref<16x256xf32, #tpu.memory_space<vmem>>, vector<2x256xf32>
    %c10 = arith.constant 10 : index
    %c0_33 = arith.constant 0 : index
    %102 = vector.load %arg12[%c10, %c0_33] : memref<16x256xf32, #tpu.memory_space<vmem>>, vector<2x256xf32>
    %103 = arith.select %43, %101, %102 : vector<2x256xi1>, vector<2x256xf32>
    %cst_34 = arith.constant dense<0.000000e+00> : vector<2x256xf32>
    %104 = tpu.matmul %100, %50, %cst_34 {dimension_numbers = #tpu.dot_dimension_numbers<[1], [0], [0], [1], [0, 0, 1, 1], [], []>} : vector<2x64xf32>, vector<64x256xf32>, vector<2x256xf32> -> vector<2x256xf32>
    %105 = arith.addf %103, %104 : vector<2x256xf32>
    %106 = arith.negf %105 : vector<2x256xf32>
    %107 = math.exp %106 : vector<2x256xf32>
    %cst_35 = arith.constant 1.000000e+00 : f32
    %108 = vector.broadcast %cst_35 : f32 to vector<2x256xf32>
    %109 = arith.addf %108, %107 : vector<2x256xf32>
    %110 = arith.divf %108, %109 : vector<2x256xf32>
    %111 = vector.extract_strided_slice %110 {offsets = [0, 0], sizes = [2, 64], strides = [1, 1]} : vector<2x256xf32> to vector<2x64xf32>
    %112 = vector.extract_strided_slice %110 {offsets = [0, 64], sizes = [2, 64], strides = [1, 1]} : vector<2x256xf32> to vector<2x64xf32>
    %113 = vector.extract_strided_slice %105 {offsets = [0, 128], sizes = [2, 64], strides = [1, 1]} : vector<2x256xf32> to vector<2x64xf32>
    %114 = math.tanh %113 : vector<2x64xf32>
    %115 = vector.extract_strided_slice %110 {offsets = [0, 192], sizes = [2, 64], strides = [1, 1]} : vector<2x256xf32> to vector<2x64xf32>
    %116 = arith.mulf %112, %98 : vector<2x64xf32>
    %117 = arith.mulf %111, %114 : vector<2x64xf32>
    %118 = arith.addf %116, %117 : vector<2x64xf32>
    %119 = math.tanh %118 : vector<2x64xf32>
    %120 = arith.mulf %115, %119 : vector<2x64xf32>
    %c6 = arith.constant 6 : index
    %c0_36 = arith.constant 0 : index
    %121 = vector.load %arg12[%c6, %c0_36] : memref<16x256xf32, #tpu.memory_space<vmem>>, vector<2x256xf32>
    %c8 = arith.constant 8 : index
    %c0_37 = arith.constant 0 : index
    %122 = vector.load %arg12[%c8, %c0_37] : memref<16x256xf32, #tpu.memory_space<vmem>>, vector<2x256xf32>
    %123 = arith.select %43, %121, %122 : vector<2x256xi1>, vector<2x256xf32>
    %cst_38 = arith.constant dense<0.000000e+00> : vector<2x256xf32>
    %124 = tpu.matmul %120, %50, %cst_38 {dimension_numbers = #tpu.dot_dimension_numbers<[1], [0], [0], [1], [0, 0, 1, 1], [], []>} : vector<2x64xf32>, vector<64x256xf32>, vector<2x256xf32> -> vector<2x256xf32>
    %125 = arith.addf %123, %124 : vector<2x256xf32>
    %126 = arith.negf %125 : vector<2x256xf32>
    %127 = math.exp %126 : vector<2x256xf32>
    %cst_39 = arith.constant 1.000000e+00 : f32
    %128 = vector.broadcast %cst_39 : f32 to vector<2x256xf32>
    %129 = arith.addf %128, %127 : vector<2x256xf32>
    %130 = arith.divf %128, %129 : vector<2x256xf32>
    %131 = vector.extract_strided_slice %130 {offsets = [0, 0], sizes = [2, 64], strides = [1, 1]} : vector<2x256xf32> to vector<2x64xf32>
    %132 = vector.extract_strided_slice %130 {offsets = [0, 64], sizes = [2, 64], strides = [1, 1]} : vector<2x256xf32> to vector<2x64xf32>
    %133 = vector.extract_strided_slice %125 {offsets = [0, 128], sizes = [2, 64], strides = [1, 1]} : vector<2x256xf32> to vector<2x64xf32>
    %134 = math.tanh %133 : vector<2x64xf32>
    %135 = vector.extract_strided_slice %130 {offsets = [0, 192], sizes = [2, 64], strides = [1, 1]} : vector<2x256xf32> to vector<2x64xf32>
    %136 = arith.mulf %132, %118 : vector<2x64xf32>
    %137 = arith.mulf %131, %134 : vector<2x64xf32>
    %138 = arith.addf %136, %137 : vector<2x64xf32>
    %139 = math.tanh %138 : vector<2x64xf32>
    %140 = arith.mulf %135, %139 : vector<2x64xf32>
    %c8_40 = arith.constant 8 : index
    %c0_41 = arith.constant 0 : index
    %141 = vector.load %arg12[%c8_40, %c0_41] : memref<16x256xf32, #tpu.memory_space<vmem>>, vector<2x256xf32>
    %c6_42 = arith.constant 6 : index
    %c0_43 = arith.constant 0 : index
    %142 = vector.load %arg12[%c6_42, %c0_43] : memref<16x256xf32, #tpu.memory_space<vmem>>, vector<2x256xf32>
    %143 = arith.select %43, %141, %142 : vector<2x256xi1>, vector<2x256xf32>
    %cst_44 = arith.constant dense<0.000000e+00> : vector<2x256xf32>
    %144 = tpu.matmul %140, %50, %cst_44 {dimension_numbers = #tpu.dot_dimension_numbers<[1], [0], [0], [1], [0, 0, 1, 1], [], []>} : vector<2x64xf32>, vector<64x256xf32>, vector<2x256xf32> -> vector<2x256xf32>
    %145 = arith.addf %143, %144 : vector<2x256xf32>
    %146 = arith.negf %145 : vector<2x256xf32>
    %147 = math.exp %146 : vector<2x256xf32>
    %cst_45 = arith.constant 1.000000e+00 : f32
    %148 = vector.broadcast %cst_45 : f32 to vector<2x256xf32>
    %149 = arith.addf %148, %147 : vector<2x256xf32>
    %150 = arith.divf %148, %149 : vector<2x256xf32>
    %151 = vector.extract_strided_slice %150 {offsets = [0, 0], sizes = [2, 64], strides = [1, 1]} : vector<2x256xf32> to vector<2x64xf32>
    %152 = vector.extract_strided_slice %150 {offsets = [0, 64], sizes = [2, 64], strides = [1, 1]} : vector<2x256xf32> to vector<2x64xf32>
    %153 = vector.extract_strided_slice %145 {offsets = [0, 128], sizes = [2, 64], strides = [1, 1]} : vector<2x256xf32> to vector<2x64xf32>
    %154 = math.tanh %153 : vector<2x64xf32>
    %155 = vector.extract_strided_slice %150 {offsets = [0, 192], sizes = [2, 64], strides = [1, 1]} : vector<2x256xf32> to vector<2x64xf32>
    %156 = arith.mulf %152, %138 : vector<2x64xf32>
    %157 = arith.mulf %151, %154 : vector<2x64xf32>
    %158 = arith.addf %156, %157 : vector<2x64xf32>
    %159 = math.tanh %158 : vector<2x64xf32>
    %160 = arith.mulf %155, %159 : vector<2x64xf32>
    %c10_46 = arith.constant 10 : index
    %c0_47 = arith.constant 0 : index
    %161 = vector.load %arg12[%c10_46, %c0_47] : memref<16x256xf32, #tpu.memory_space<vmem>>, vector<2x256xf32>
    %c4_48 = arith.constant 4 : index
    %c0_49 = arith.constant 0 : index
    %162 = vector.load %arg12[%c4_48, %c0_49] : memref<16x256xf32, #tpu.memory_space<vmem>>, vector<2x256xf32>
    %163 = arith.select %43, %161, %162 : vector<2x256xi1>, vector<2x256xf32>
    %cst_50 = arith.constant dense<0.000000e+00> : vector<2x256xf32>
    %164 = tpu.matmul %160, %50, %cst_50 {dimension_numbers = #tpu.dot_dimension_numbers<[1], [0], [0], [1], [0, 0, 1, 1], [], []>} : vector<2x64xf32>, vector<64x256xf32>, vector<2x256xf32> -> vector<2x256xf32>
    %165 = arith.addf %163, %164 : vector<2x256xf32>
    %166 = arith.negf %165 : vector<2x256xf32>
    %167 = math.exp %166 : vector<2x256xf32>
    %cst_51 = arith.constant 1.000000e+00 : f32
    %168 = vector.broadcast %cst_51 : f32 to vector<2x256xf32>
    %169 = arith.addf %168, %167 : vector<2x256xf32>
    %170 = arith.divf %168, %169 : vector<2x256xf32>
    %171 = vector.extract_strided_slice %170 {offsets = [0, 0], sizes = [2, 64], strides = [1, 1]} : vector<2x256xf32> to vector<2x64xf32>
    %172 = vector.extract_strided_slice %170 {offsets = [0, 64], sizes = [2, 64], strides = [1, 1]} : vector<2x256xf32> to vector<2x64xf32>
    %173 = vector.extract_strided_slice %165 {offsets = [0, 128], sizes = [2, 64], strides = [1, 1]} : vector<2x256xf32> to vector<2x64xf32>
    %174 = math.tanh %173 : vector<2x64xf32>
    %175 = vector.extract_strided_slice %170 {offsets = [0, 192], sizes = [2, 64], strides = [1, 1]} : vector<2x256xf32> to vector<2x64xf32>
    %176 = arith.mulf %172, %158 : vector<2x64xf32>
    %177 = arith.mulf %171, %174 : vector<2x64xf32>
    %178 = arith.addf %176, %177 : vector<2x64xf32>
    %179 = math.tanh %178 : vector<2x64xf32>
    %180 = arith.mulf %175, %179 : vector<2x64xf32>
    %c12_52 = arith.constant 12 : index
    %c0_53 = arith.constant 0 : index
    %181 = vector.load %arg12[%c12_52, %c0_53] : memref<16x256xf32, #tpu.memory_space<vmem>>, vector<2x256xf32>
    %c2_54 = arith.constant 2 : index
    %c0_55 = arith.constant 0 : index
    %182 = vector.load %arg12[%c2_54, %c0_55] : memref<16x256xf32, #tpu.memory_space<vmem>>, vector<2x256xf32>
    %183 = arith.select %43, %181, %182 : vector<2x256xi1>, vector<2x256xf32>
    %cst_56 = arith.constant dense<0.000000e+00> : vector<2x256xf32>
    %184 = tpu.matmul %180, %50, %cst_56 {dimension_numbers = #tpu.dot_dimension_numbers<[1], [0], [0], [1], [0, 0, 1, 1], [], []>} : vector<2x64xf32>, vector<64x256xf32>, vector<2x256xf32> -> vector<2x256xf32>
    %185 = arith.addf %183, %184 : vector<2x256xf32>
    %186 = arith.negf %185 : vector<2x256xf32>
    %187 = math.exp %186 : vector<2x256xf32>
    %cst_57 = arith.constant 1.000000e+00 : f32
    %188 = vector.broadcast %cst_57 : f32 to vector<2x256xf32>
    %189 = arith.addf %188, %187 : vector<2x256xf32>
    %190 = arith.divf %188, %189 : vector<2x256xf32>
    %191 = vector.extract_strided_slice %190 {offsets = [0, 0], sizes = [2, 64], strides = [1, 1]} : vector<2x256xf32> to vector<2x64xf32>
    %192 = vector.extract_strided_slice %190 {offsets = [0, 64], sizes = [2, 64], strides = [1, 1]} : vector<2x256xf32> to vector<2x64xf32>
    %193 = vector.extract_strided_slice %185 {offsets = [0, 128], sizes = [2, 64], strides = [1, 1]} : vector<2x256xf32> to vector<2x64xf32>
    %194 = math.tanh %193 : vector<2x64xf32>
    %195 = vector.extract_strided_slice %190 {offsets = [0, 192], sizes = [2, 64], strides = [1, 1]} : vector<2x256xf32> to vector<2x64xf32>
    %196 = arith.mulf %192, %178 : vector<2x64xf32>
    %197 = arith.mulf %191, %194 : vector<2x64xf32>
    %198 = arith.addf %196, %197 : vector<2x64xf32>
    %199 = math.tanh %198 : vector<2x64xf32>
    %200 = arith.mulf %195, %199 : vector<2x64xf32>
    %c14_58 = arith.constant 14 : index
    %c0_59 = arith.constant 0 : index
    %201 = vector.load %arg12[%c14_58, %c0_59] : memref<16x256xf32, #tpu.memory_space<vmem>>, vector<2x256xf32>
    %c0_60 = arith.constant 0 : index
    %c0_61 = arith.constant 0 : index
    %202 = vector.load %arg12[%c0_60, %c0_61] : memref<16x256xf32, #tpu.memory_space<vmem>>, vector<2x256xf32>
    %203 = arith.select %43, %201, %202 : vector<2x256xi1>, vector<2x256xf32>
    %cst_62 = arith.constant dense<0.000000e+00> : vector<2x256xf32>
    %204 = tpu.matmul %200, %50, %cst_62 {dimension_numbers = #tpu.dot_dimension_numbers<[1], [0], [0], [1], [0, 0, 1, 1], [], []>} : vector<2x64xf32>, vector<64x256xf32>, vector<2x256xf32> -> vector<2x256xf32>
    %205 = arith.addf %203, %204 : vector<2x256xf32>
    %206 = arith.negf %205 : vector<2x256xf32>
    %207 = math.exp %206 : vector<2x256xf32>
    %cst_63 = arith.constant 1.000000e+00 : f32
    %208 = vector.broadcast %cst_63 : f32 to vector<2x256xf32>
    %209 = arith.addf %208, %207 : vector<2x256xf32>
    %210 = arith.divf %208, %209 : vector<2x256xf32>
    %211 = vector.extract_strided_slice %210 {offsets = [0, 0], sizes = [2, 64], strides = [1, 1]} : vector<2x256xf32> to vector<2x64xf32>
    %212 = vector.extract_strided_slice %210 {offsets = [0, 64], sizes = [2, 64], strides = [1, 1]} : vector<2x256xf32> to vector<2x64xf32>
    %213 = vector.extract_strided_slice %205 {offsets = [0, 128], sizes = [2, 64], strides = [1, 1]} : vector<2x256xf32> to vector<2x64xf32>
    %214 = math.tanh %213 : vector<2x64xf32>
    %215 = vector.extract_strided_slice %210 {offsets = [0, 192], sizes = [2, 64], strides = [1, 1]} : vector<2x256xf32> to vector<2x64xf32>
    %216 = arith.mulf %212, %198 : vector<2x64xf32>
    %217 = arith.mulf %211, %214 : vector<2x64xf32>
    %218 = arith.addf %216, %217 : vector<2x64xf32>
    %219 = math.tanh %218 : vector<2x64xf32>
    %220 = arith.mulf %215, %219 : vector<2x64xf32>
    %221 = vector.extract_strided_slice %80 {offsets = [0, 0], sizes = [2, 32], strides = [1, 1]} : vector<2x64xf32> to vector<2x32xf32>
    %222 = vector.extract_strided_slice %220 {offsets = [0, 32], sizes = [2, 32], strides = [1, 1]} : vector<2x64xf32> to vector<2x32xf32>
    %223 = tpu.concatenate %221, %222 in 1 : vector<2x32xf32>, vector<2x32xf32> -> vector<2x64xf32>
    %224 = vector.extract_strided_slice %100 {offsets = [0, 0], sizes = [2, 32], strides = [1, 1]} : vector<2x64xf32> to vector<2x32xf32>
    %225 = vector.extract_strided_slice %200 {offsets = [0, 32], sizes = [2, 32], strides = [1, 1]} : vector<2x64xf32> to vector<2x32xf32>
    %226 = tpu.concatenate %224, %225 in 1 : vector<2x32xf32>, vector<2x32xf32> -> vector<2x64xf32>
    %227 = vector.extract_strided_slice %120 {offsets = [0, 0], sizes = [2, 32], strides = [1, 1]} : vector<2x64xf32> to vector<2x32xf32>
    %228 = vector.extract_strided_slice %180 {offsets = [0, 32], sizes = [2, 32], strides = [1, 1]} : vector<2x64xf32> to vector<2x32xf32>
    %229 = tpu.concatenate %227, %228 in 1 : vector<2x32xf32>, vector<2x32xf32> -> vector<2x64xf32>
    %230 = vector.extract_strided_slice %140 {offsets = [0, 0], sizes = [2, 32], strides = [1, 1]} : vector<2x64xf32> to vector<2x32xf32>
    %231 = vector.extract_strided_slice %160 {offsets = [0, 32], sizes = [2, 32], strides = [1, 1]} : vector<2x64xf32> to vector<2x32xf32>
    %232 = tpu.concatenate %230, %231 in 1 : vector<2x32xf32>, vector<2x32xf32> -> vector<2x64xf32>
    %233 = vector.extract_strided_slice %160 {offsets = [0, 0], sizes = [2, 32], strides = [1, 1]} : vector<2x64xf32> to vector<2x32xf32>
    %234 = vector.extract_strided_slice %140 {offsets = [0, 32], sizes = [2, 32], strides = [1, 1]} : vector<2x64xf32> to vector<2x32xf32>
    %235 = tpu.concatenate %233, %234 in 1 : vector<2x32xf32>, vector<2x32xf32> -> vector<2x64xf32>
    %236 = vector.extract_strided_slice %180 {offsets = [0, 0], sizes = [2, 32], strides = [1, 1]} : vector<2x64xf32> to vector<2x32xf32>
    %237 = vector.extract_strided_slice %120 {offsets = [0, 32], sizes = [2, 32], strides = [1, 1]} : vector<2x64xf32> to vector<2x32xf32>
    %238 = tpu.concatenate %236, %237 in 1 : vector<2x32xf32>, vector<2x32xf32> -> vector<2x64xf32>
    %239 = vector.extract_strided_slice %200 {offsets = [0, 0], sizes = [2, 32], strides = [1, 1]} : vector<2x64xf32> to vector<2x32xf32>
    %240 = vector.extract_strided_slice %100 {offsets = [0, 32], sizes = [2, 32], strides = [1, 1]} : vector<2x64xf32> to vector<2x32xf32>
    %241 = tpu.concatenate %239, %240 in 1 : vector<2x32xf32>, vector<2x32xf32> -> vector<2x64xf32>
    %242 = vector.extract_strided_slice %220 {offsets = [0, 0], sizes = [2, 32], strides = [1, 1]} : vector<2x64xf32> to vector<2x32xf32>
    %243 = vector.extract_strided_slice %80 {offsets = [0, 32], sizes = [2, 32], strides = [1, 1]} : vector<2x64xf32> to vector<2x32xf32>
    %244 = tpu.concatenate %242, %243 in 1 : vector<2x32xf32>, vector<2x32xf32> -> vector<2x64xf32>
    %245 = tpu.concatenate %223, %226, %229, %232, %235, %238, %241, %244 in 0 : vector<2x64xf32>, vector<2x64xf32>, vector<2x64xf32>, vector<2x64xf32>, vector<2x64xf32>, vector<2x64xf32>, vector<2x64xf32>, vector<2x64xf32> -> vector<16x64xf32>
    %c0_64 = arith.constant 0 : index
    %c0_65 = arith.constant 0 : index
    %246 = vector.load %arg8[%c0_64, %c0_65] : memref<64x256xf32, #tpu.memory_space<vmem>>, vector<64x256xf32>
    %cst_66 = arith.constant dense<0.000000e+00> : vector<16x256xf32>
    %247 = tpu.matmul %245, %246, %cst_66 {dimension_numbers = #tpu.dot_dimension_numbers<[1], [0], [0], [1], [0, 0, 1, 1], [], []>} : vector<16x64xf32>, vector<64x256xf32>, vector<16x256xf32> -> vector<16x256xf32>
    %c0_67 = arith.constant 0 : index
    %c0_68 = arith.constant 0 : index
    %248 = vector.load %arg10[%c0_67, %c0_68] : memref<1x256xf32, #tpu.memory_space<vmem>>, vector<1x256xf32>
    %249 = vector.broadcast %248 : vector<1x256xf32> to vector<16x256xf32>
    %250 = arith.addf %247, %249 : vector<16x256xf32>
    %c0_69 = arith.constant 0 : index
    %c0_70 = arith.constant 0 : index
    %251 = vector.load %arg12[%c0_69, %c0_70] : memref<16x256xf32, #tpu.memory_space<vmem>>, vector<16x256xf32>
    tpu.vector_store %arg12[%c0_69, %c0_70], %250 {strides = array<i32>} : memref<16x256xf32, #tpu.memory_space<vmem>>, vector<16x256xf32>,
    %c0_71 = arith.constant 0 : index
    %c0_72 = arith.constant 0 : index
    %252 = vector.load %arg9[%c0_71, %c0_72] : memref<64x256xf32, #tpu.memory_space<vmem>>, vector<64x256xf32>
    %c2_73 = arith.constant 2 : index
    %c0_74 = arith.constant 0 : index
    %c0_75 = arith.constant 0 : index
    %253 = vector.load %arg1[%c2_73, %c0_74, %c0_75] : memref<4x2x32xf32, #tpu.memory_space<vmem>>, vector<1x2x32xf32>
    %254 = vector.shape_cast %253 : vector<1x2x32xf32> to vector<2x32xf32>
    %c3 = arith.constant 3 : index
    %c0_76 = arith.constant 0 : index
    %c0_77 = arith.constant 0 : index
    %255 = vector.load %arg1[%c3, %c0_76, %c0_77] : memref<4x2x32xf32, #tpu.memory_space<vmem>>, vector<1x2x32xf32>
    %256 = vector.shape_cast %255 : vector<1x2x32xf32> to vector<2x32xf32>
    %257 = tpu.concatenate %254, %256 in 1 : vector<2x32xf32>, vector<2x32xf32> -> vector<2x64xf32>
    %c2_78 = arith.constant 2 : index
    %c0_79 = arith.constant 0 : index
    %c0_80 = arith.constant 0 : index
    %258 = vector.load %arg2[%c2_78, %c0_79, %c0_80] : memref<4x2x32xf32, #tpu.memory_space<vmem>>, vector<1x2x32xf32>
    %259 = vector.shape_cast %258 : vector<1x2x32xf32> to vector<2x32xf32>
    %c3_81 = arith.constant 3 : index
    %c0_82 = arith.constant 0 : index
    %c0_83 = arith.constant 0 : index
    %260 = vector.load %arg2[%c3_81, %c0_82, %c0_83] : memref<4x2x32xf32, #tpu.memory_space<vmem>>, vector<1x2x32xf32>
    %261 = vector.shape_cast %260 : vector<1x2x32xf32> to vector<2x32xf32>
    %262 = tpu.concatenate %259, %261 in 1 : vector<2x32xf32>, vector<2x32xf32> -> vector<2x64xf32>
    %c0_84 = arith.constant 0 : index
    %c0_85 = arith.constant 0 : index
    %263 = vector.load %arg12[%c0_84, %c0_85] : memref<16x256xf32, #tpu.memory_space<vmem>>, vector<2x256xf32>
    %c14_86 = arith.constant 14 : index
    %c0_87 = arith.constant 0 : index
    %264 = vector.load %arg12[%c14_86, %c0_87] : memref<16x256xf32, #tpu.memory_space<vmem>>, vector<2x256xf32>
    %265 = arith.select %43, %263, %264 : vector<2x256xi1>, vector<2x256xf32>
    %cst_88 = arith.constant dense<0.000000e+00> : vector<2x256xf32>
    %266 = tpu.matmul %257, %252, %cst_88 {dimension_numbers = #tpu.dot_dimension_numbers<[1], [0], [0], [1], [0, 0, 1, 1], [], []>} : vector<2x64xf32>, vector<64x256xf32>, vector<2x256xf32> -> vector<2x256xf32>
    %267 = arith.addf %265, %266 : vector<2x256xf32>
    %268 = arith.negf %267 : vector<2x256xf32>
    %269 = math.exp %268 : vector<2x256xf32>
    %cst_89 = arith.constant 1.000000e+00 : f32
    %270 = vector.broadcast %cst_89 : f32 to vector<2x256xf32>
    %271 = arith.addf %270, %269 : vector<2x256xf32>
    %272 = arith.divf %270, %271 : vector<2x256xf32>
    %273 = vector.extract_strided_slice %272 {offsets = [0, 0], sizes = [2, 64], strides = [1, 1]} : vector<2x256xf32> to vector<2x64xf32>
    %274 = vector.extract_strided_slice %272 {offsets = [0, 64], sizes = [2, 64], strides = [1, 1]} : vector<2x256xf32> to vector<2x64xf32>
    %275 = vector.extract_strided_slice %267 {offsets = [0, 128], sizes = [2, 64], strides = [1, 1]} : vector<2x256xf32> to vector<2x64xf32>
    %276 = math.tanh %275 : vector<2x64xf32>
    %277 = vector.extract_strided_slice %272 {offsets = [0, 192], sizes = [2, 64], strides = [1, 1]} : vector<2x256xf32> to vector<2x64xf32>
    %278 = arith.mulf %274, %262 : vector<2x64xf32>
    %279 = arith.mulf %273, %276 : vector<2x64xf32>
    %280 = arith.addf %278, %279 : vector<2x64xf32>
    %281 = math.tanh %280 : vector<2x64xf32>
    %282 = arith.mulf %277, %281 : vector<2x64xf32>
    %c2_90 = arith.constant 2 : index
    %c0_91 = arith.constant 0 : index
    %283 = vector.load %arg12[%c2_90, %c0_91] : memref<16x256xf32, #tpu.memory_space<vmem>>, vector<2x256xf32>
    %c12_92 = arith.constant 12 : index
    %c0_93 = arith.constant 0 : index
    %284 = vector.load %arg12[%c12_92, %c0_93] : memref<16x256xf32, #tpu.memory_space<vmem>>, vector<2x256xf32>
    %285 = arith.select %43, %283, %284 : vector<2x256xi1>, vector<2x256xf32>
    %cst_94 = arith.constant dense<0.000000e+00> : vector<2x256xf32>
    %286 = tpu.matmul %282, %252, %cst_94 {dimension_numbers = #tpu.dot_dimension_numbers<[1], [0], [0], [1], [0, 0, 1, 1], [], []>} : vector<2x64xf32>, vector<64x256xf32>, vector<2x256xf32> -> vector<2x256xf32>
    %287 = arith.addf %285, %286 : vector<2x256xf32>
    %288 = arith.negf %287 : vector<2x256xf32>
    %289 = math.exp %288 : vector<2x256xf32>
    %cst_95 = arith.constant 1.000000e+00 : f32
    %290 = vector.broadcast %cst_95 : f32 to vector<2x256xf32>
    %291 = arith.addf %290, %289 : vector<2x256xf32>
    %292 = arith.divf %290, %291 : vector<2x256xf32>
    %293 = vector.extract_strided_slice %292 {offsets = [0, 0], sizes = [2, 64], strides = [1, 1]} : vector<2x256xf32> to vector<2x64xf32>
    %294 = vector.extract_strided_slice %292 {offsets = [0, 64], sizes = [2, 64], strides = [1, 1]} : vector<2x256xf32> to vector<2x64xf32>
    %295 = vector.extract_strided_slice %287 {offsets = [0, 128], sizes = [2, 64], strides = [1, 1]} : vector<2x256xf32> to vector<2x64xf32>
    %296 = math.tanh %295 : vector<2x64xf32>
    %297 = vector.extract_strided_slice %292 {offsets = [0, 192], sizes = [2, 64], strides = [1, 1]} : vector<2x256xf32> to vector<2x64xf32>
    %298 = arith.mulf %294, %280 : vector<2x64xf32>
    %299 = arith.mulf %293, %296 : vector<2x64xf32>
    %300 = arith.addf %298, %299 : vector<2x64xf32>
    %301 = math.tanh %300 : vector<2x64xf32>
    %302 = arith.mulf %297, %301 : vector<2x64xf32>
    %c4_96 = arith.constant 4 : index
    %c0_97 = arith.constant 0 : index
    %303 = vector.load %arg12[%c4_96, %c0_97] : memref<16x256xf32, #tpu.memory_space<vmem>>, vector<2x256xf32>
    %c10_98 = arith.constant 10 : index
    %c0_99 = arith.constant 0 : index
    %304 = vector.load %arg12[%c10_98, %c0_99] : memref<16x256xf32, #tpu.memory_space<vmem>>, vector<2x256xf32>
    %305 = arith.select %43, %303, %304 : vector<2x256xi1>, vector<2x256xf32>
    %cst_100 = arith.constant dense<0.000000e+00> : vector<2x256xf32>
    %306 = tpu.matmul %302, %252, %cst_100 {dimension_numbers = #tpu.dot_dimension_numbers<[1], [0], [0], [1], [0, 0, 1, 1], [], []>} : vector<2x64xf32>, vector<64x256xf32>, vector<2x256xf32> -> vector<2x256xf32>
    %307 = arith.addf %305, %306 : vector<2x256xf32>
    %308 = arith.negf %307 : vector<2x256xf32>
    %309 = math.exp %308 : vector<2x256xf32>
    %cst_101 = arith.constant 1.000000e+00 : f32
    %310 = vector.broadcast %cst_101 : f32 to vector<2x256xf32>
    %311 = arith.addf %310, %309 : vector<2x256xf32>
    %312 = arith.divf %310, %311 : vector<2x256xf32>
    %313 = vector.extract_strided_slice %312 {offsets = [0, 0], sizes = [2, 64], strides = [1, 1]} : vector<2x256xf32> to vector<2x64xf32>
    %314 = vector.extract_strided_slice %312 {offsets = [0, 64], sizes = [2, 64], strides = [1, 1]} : vector<2x256xf32> to vector<2x64xf32>
    %315 = vector.extract_strided_slice %307 {offsets = [0, 128], sizes = [2, 64], strides = [1, 1]} : vector<2x256xf32> to vector<2x64xf32>
    %316 = math.tanh %315 : vector<2x64xf32>
    %317 = vector.extract_strided_slice %312 {offsets = [0, 192], sizes = [2, 64], strides = [1, 1]} : vector<2x256xf32> to vector<2x64xf32>
    %318 = arith.mulf %314, %300 : vector<2x64xf32>
    %319 = arith.mulf %313, %316 : vector<2x64xf32>
    %320 = arith.addf %318, %319 : vector<2x64xf32>
    %321 = math.tanh %320 : vector<2x64xf32>
    %322 = arith.mulf %317, %321 : vector<2x64xf32>
    %c6_102 = arith.constant 6 : index
    %c0_103 = arith.constant 0 : index
    %323 = vector.load %arg12[%c6_102, %c0_103] : memref<16x256xf32, #tpu.memory_space<vmem>>, vector<2x256xf32>
    %c8_104 = arith.constant 8 : index
    %c0_105 = arith.constant 0 : index
    %324 = vector.load %arg12[%c8_104, %c0_105] : memref<16x256xf32, #tpu.memory_space<vmem>>, vector<2x256xf32>
    %325 = arith.select %43, %323, %324 : vector<2x256xi1>, vector<2x256xf32>
    %cst_106 = arith.constant dense<0.000000e+00> : vector<2x256xf32>
    %326 = tpu.matmul %322, %252, %cst_106 {dimension_numbers = #tpu.dot_dimension_numbers<[1], [0], [0], [1], [0, 0, 1, 1], [], []>} : vector<2x64xf32>, vector<64x256xf32>, vector<2x256xf32> -> vector<2x256xf32>
    %327 = arith.addf %325, %326 : vector<2x256xf32>
    %328 = arith.negf %327 : vector<2x256xf32>
    %329 = math.exp %328 : vector<2x256xf32>
    %cst_107 = arith.constant 1.000000e+00 : f32
    %330 = vector.broadcast %cst_107 : f32 to vector<2x256xf32>
    %331 = arith.addf %330, %329 : vector<2x256xf32>
    %332 = arith.divf %330, %331 : vector<2x256xf32>
    %333 = vector.extract_strided_slice %332 {offsets = [0, 0], sizes = [2, 64], strides = [1, 1]} : vector<2x256xf32> to vector<2x64xf32>
    %334 = vector.extract_strided_slice %332 {offsets = [0, 64], sizes = [2, 64], strides = [1, 1]} : vector<2x256xf32> to vector<2x64xf32>
    %335 = vector.extract_strided_slice %327 {offsets = [0, 128], sizes = [2, 64], strides = [1, 1]} : vector<2x256xf32> to vector<2x64xf32>
    %336 = math.tanh %335 : vector<2x64xf32>
    %337 = vector.extract_strided_slice %332 {offsets = [0, 192], sizes = [2, 64], strides = [1, 1]} : vector<2x256xf32> to vector<2x64xf32>
    %338 = arith.mulf %334, %320 : vector<2x64xf32>
    %339 = arith.mulf %333, %336 : vector<2x64xf32>
    %340 = arith.addf %338, %339 : vector<2x64xf32>
    %341 = math.tanh %340 : vector<2x64xf32>
    %342 = arith.mulf %337, %341 : vector<2x64xf32>
    %c8_108 = arith.constant 8 : index
    %c0_109 = arith.constant 0 : index
    %343 = vector.load %arg12[%c8_108, %c0_109] : memref<16x256xf32, #tpu.memory_space<vmem>>, vector<2x256xf32>
    %c6_110 = arith.constant 6 : index
    %c0_111 = arith.constant 0 : index
    %344 = vector.load %arg12[%c6_110, %c0_111] : memref<16x256xf32, #tpu.memory_space<vmem>>, vector<2x256xf32>
    %345 = arith.select %43, %343, %344 : vector<2x256xi1>, vector<2x256xf32>
    %cst_112 = arith.constant dense<0.000000e+00> : vector<2x256xf32>
    %346 = tpu.matmul %342, %252, %cst_112 {dimension_numbers = #tpu.dot_dimension_numbers<[1], [0], [0], [1], [0, 0, 1, 1], [], []>} : vector<2x64xf32>, vector<64x256xf32>, vector<2x256xf32> -> vector<2x256xf32>
    %347 = arith.addf %345, %346 : vector<2x256xf32>
    %348 = arith.negf %347 : vector<2x256xf32>
    %349 = math.exp %348 : vector<2x256xf32>
    %cst_113 = arith.constant 1.000000e+00 : f32
    %350 = vector.broadcast %cst_113 : f32 to vector<2x256xf32>
    %351 = arith.addf %350, %349 : vector<2x256xf32>
    %352 = arith.divf %350, %351 : vector<2x256xf32>
    %353 = vector.extract_strided_slice %352 {offsets = [0, 0], sizes = [2, 64], strides = [1, 1]} : vector<2x256xf32> to vector<2x64xf32>
    %354 = vector.extract_strided_slice %352 {offsets = [0, 64], sizes = [2, 64], strides = [1, 1]} : vector<2x256xf32> to vector<2x64xf32>
    %355 = vector.extract_strided_slice %347 {offsets = [0, 128], sizes = [2, 64], strides = [1, 1]} : vector<2x256xf32> to vector<2x64xf32>
    %356 = math.tanh %355 : vector<2x64xf32>
    %357 = vector.extract_strided_slice %352 {offsets = [0, 192], sizes = [2, 64], strides = [1, 1]} : vector<2x256xf32> to vector<2x64xf32>
    %358 = arith.mulf %354, %340 : vector<2x64xf32>
    %359 = arith.mulf %353, %356 : vector<2x64xf32>
    %360 = arith.addf %358, %359 : vector<2x64xf32>
    %361 = math.tanh %360 : vector<2x64xf32>
    %362 = arith.mulf %357, %361 : vector<2x64xf32>
    %c10_114 = arith.constant 10 : index
    %c0_115 = arith.constant 0 : index
    %363 = vector.load %arg12[%c10_114, %c0_115] : memref<16x256xf32, #tpu.memory_space<vmem>>, vector<2x256xf32>
    %c4_116 = arith.constant 4 : index
    %c0_117 = arith.constant 0 : index
    %364 = vector.load %arg12[%c4_116, %c0_117] : memref<16x256xf32, #tpu.memory_space<vmem>>, vector<2x256xf32>
    %365 = arith.select %43, %363, %364 : vector<2x256xi1>, vector<2x256xf32>
    %cst_118 = arith.constant dense<0.000000e+00> : vector<2x256xf32>
    %366 = tpu.matmul %362, %252, %cst_118 {dimension_numbers = #tpu.dot_dimension_numbers<[1], [0], [0], [1], [0, 0, 1, 1], [], []>} : vector<2x64xf32>, vector<64x256xf32>, vector<2x256xf32> -> vector<2x256xf32>
    %367 = arith.addf %365, %366 : vector<2x256xf32>
    %368 = arith.negf %367 : vector<2x256xf32>
    %369 = math.exp %368 : vector<2x256xf32>
    %cst_119 = arith.constant 1.000000e+00 : f32
    %370 = vector.broadcast %cst_119 : f32 to vector<2x256xf32>
    %371 = arith.addf %370, %369 : vector<2x256xf32>
    %372 = arith.divf %370, %371 : vector<2x256xf32>
    %373 = vector.extract_strided_slice %372 {offsets = [0, 0], sizes = [2, 64], strides = [1, 1]} : vector<2x256xf32> to vector<2x64xf32>
    %374 = vector.extract_strided_slice %372 {offsets = [0, 64], sizes = [2, 64], strides = [1, 1]} : vector<2x256xf32> to vector<2x64xf32>
    %375 = vector.extract_strided_slice %367 {offsets = [0, 128], sizes = [2, 64], strides = [1, 1]} : vector<2x256xf32> to vector<2x64xf32>
    %376 = math.tanh %375 : vector<2x64xf32>
    %377 = vector.extract_strided_slice %372 {offsets = [0, 192], sizes = [2, 64], strides = [1, 1]} : vector<2x256xf32> to vector<2x64xf32>
    %378 = arith.mulf %374, %360 : vector<2x64xf32>
    %379 = arith.mulf %373, %376 : vector<2x64xf32>
    %380 = arith.addf %378, %379 : vector<2x64xf32>
    %381 = math.tanh %380 : vector<2x64xf32>
    %382 = arith.mulf %377, %381 : vector<2x64xf32>
    %c12_120 = arith.constant 12 : index
    %c0_121 = arith.constant 0 : index
    %383 = vector.load %arg12[%c12_120, %c0_121] : memref<16x256xf32, #tpu.memory_space<vmem>>, vector<2x256xf32>
    %c2_122 = arith.constant 2 : index
    %c0_123 = arith.constant 0 : index
    %384 = vector.load %arg12[%c2_122, %c0_123] : memref<16x256xf32, #tpu.memory_space<vmem>>, vector<2x256xf32>
    %385 = arith.select %43, %383, %384 : vector<2x256xi1>, vector<2x256xf32>
    %cst_124 = arith.constant dense<0.000000e+00> : vector<2x256xf32>
    %386 = tpu.matmul %382, %252, %cst_124 {dimension_numbers = #tpu.dot_dimension_numbers<[1], [0], [0], [1], [0, 0, 1, 1], [], []>} : vector<2x64xf32>, vector<64x256xf32>, vector<2x256xf32> -> vector<2x256xf32>
    %387 = arith.addf %385, %386 : vector<2x256xf32>
    %388 = arith.negf %387 : vector<2x256xf32>
    %389 = math.exp %388 : vector<2x256xf32>
    %cst_125 = arith.constant 1.000000e+00 : f32
    %390 = vector.broadcast %cst_125 : f32 to vector<2x256xf32>
    %391 = arith.addf %390, %389 : vector<2x256xf32>
    %392 = arith.divf %390, %391 : vector<2x256xf32>
    %393 = vector.extract_strided_slice %392 {offsets = [0, 0], sizes = [2, 64], strides = [1, 1]} : vector<2x256xf32> to vector<2x64xf32>
    %394 = vector.extract_strided_slice %392 {offsets = [0, 64], sizes = [2, 64], strides = [1, 1]} : vector<2x256xf32> to vector<2x64xf32>
    %395 = vector.extract_strided_slice %387 {offsets = [0, 128], sizes = [2, 64], strides = [1, 1]} : vector<2x256xf32> to vector<2x64xf32>
    %396 = math.tanh %395 : vector<2x64xf32>
    %397 = vector.extract_strided_slice %392 {offsets = [0, 192], sizes = [2, 64], strides = [1, 1]} : vector<2x256xf32> to vector<2x64xf32>
    %398 = arith.mulf %394, %380 : vector<2x64xf32>
    %399 = arith.mulf %393, %396 : vector<2x64xf32>
    %400 = arith.addf %398, %399 : vector<2x64xf32>
    %401 = math.tanh %400 : vector<2x64xf32>
    %402 = arith.mulf %397, %401 : vector<2x64xf32>
    %c14_126 = arith.constant 14 : index
    %c0_127 = arith.constant 0 : index
    %403 = vector.load %arg12[%c14_126, %c0_127] : memref<16x256xf32, #tpu.memory_space<vmem>>, vector<2x256xf32>
    %c0_128 = arith.constant 0 : index
    %c0_129 = arith.constant 0 : index
    %404 = vector.load %arg12[%c0_128, %c0_129] : memref<16x256xf32, #tpu.memory_space<vmem>>, vector<2x256xf32>
    %405 = arith.select %43, %403, %404 : vector<2x256xi1>, vector<2x256xf32>
    %cst_130 = arith.constant dense<0.000000e+00> : vector<2x256xf32>
    %406 = tpu.matmul %402, %252, %cst_130 {dimension_numbers = #tpu.dot_dimension_numbers<[1], [0], [0], [1], [0, 0, 1, 1], [], []>} : vector<2x64xf32>, vector<64x256xf32>, vector<2x256xf32> -> vector<2x256xf32>
    %407 = arith.addf %405, %406 : vector<2x256xf32>
    %408 = arith.negf %407 : vector<2x256xf32>
    %409 = math.exp %408 : vector<2x256xf32>
    %cst_131 = arith.constant 1.000000e+00 : f32
    %410 = vector.broadcast %cst_131 : f32 to vector<2x256xf32>
    %411 = arith.addf %410, %409 : vector<2x256xf32>
    %412 = arith.divf %410, %411 : vector<2x256xf32>
    %413 = vector.extract_strided_slice %412 {offsets = [0, 0], sizes = [2, 64], strides = [1, 1]} : vector<2x256xf32> to vector<2x64xf32>
    %414 = vector.extract_strided_slice %412 {offsets = [0, 64], sizes = [2, 64], strides = [1, 1]} : vector<2x256xf32> to vector<2x64xf32>
    %415 = vector.extract_strided_slice %407 {offsets = [0, 128], sizes = [2, 64], strides = [1, 1]} : vector<2x256xf32> to vector<2x64xf32>
    %416 = math.tanh %415 : vector<2x64xf32>
    %417 = vector.extract_strided_slice %412 {offsets = [0, 192], sizes = [2, 64], strides = [1, 1]} : vector<2x256xf32> to vector<2x64xf32>
    %418 = arith.mulf %414, %400 : vector<2x64xf32>
    %419 = arith.mulf %413, %416 : vector<2x64xf32>
    %420 = arith.addf %418, %419 : vector<2x64xf32>
    %421 = math.tanh %420 : vector<2x64xf32>
    %422 = arith.mulf %417, %421 : vector<2x64xf32>
    %423 = vector.extract_strided_slice %282 {offsets = [0, 0], sizes = [2, 32], strides = [1, 1]} : vector<2x64xf32> to vector<2x32xf32>
    %424 = vector.extract_strided_slice %422 {offsets = [0, 32], sizes = [2, 32], strides = [1, 1]} : vector<2x64xf32> to vector<2x32xf32>
    %425 = tpu.concatenate %423, %424 in 1 : vector<2x32xf32>, vector<2x32xf32> -> vector<2x64xf32>
    %426 = vector.extract_strided_slice %302 {offsets = [0, 0], sizes = [2, 32], strides = [1, 1]} : vector<2x64xf32> to vector<2x32xf32>
    %427 = vector.extract_strided_slice %402 {offsets = [0, 32], sizes = [2, 32], strides = [1, 1]} : vector<2x64xf32> to vector<2x32xf32>
    %428 = tpu.concatenate %426, %427 in 1 : vector<2x32xf32>, vector<2x32xf32> -> vector<2x64xf32>
    %429 = vector.extract_strided_slice %322 {offsets = [0, 0], sizes = [2, 32], strides = [1, 1]} : vector<2x64xf32> to vector<2x32xf32>
    %430 = vector.extract_strided_slice %382 {offsets = [0, 32], sizes = [2, 32], strides = [1, 1]} : vector<2x64xf32> to vector<2x32xf32>
    %431 = tpu.concatenate %429, %430 in 1 : vector<2x32xf32>, vector<2x32xf32> -> vector<2x64xf32>
    %432 = vector.extract_strided_slice %342 {offsets = [0, 0], sizes = [2, 32], strides = [1, 1]} : vector<2x64xf32> to vector<2x32xf32>
    %433 = vector.extract_strided_slice %362 {offsets = [0, 32], sizes = [2, 32], strides = [1, 1]} : vector<2x64xf32> to vector<2x32xf32>
    %434 = tpu.concatenate %432, %433 in 1 : vector<2x32xf32>, vector<2x32xf32> -> vector<2x64xf32>
    %435 = vector.extract_strided_slice %362 {offsets = [0, 0], sizes = [2, 32], strides = [1, 1]} : vector<2x64xf32> to vector<2x32xf32>
    %436 = vector.extract_strided_slice %342 {offsets = [0, 32], sizes = [2, 32], strides = [1, 1]} : vector<2x64xf32> to vector<2x32xf32>
    %437 = tpu.concatenate %435, %436 in 1 : vector<2x32xf32>, vector<2x32xf32> -> vector<2x64xf32>
    %438 = vector.extract_strided_slice %382 {offsets = [0, 0], sizes = [2, 32], strides = [1, 1]} : vector<2x64xf32> to vector<2x32xf32>
    %439 = vector.extract_strided_slice %322 {offsets = [0, 32], sizes = [2, 32], strides = [1, 1]} : vector<2x64xf32> to vector<2x32xf32>
    %440 = tpu.concatenate %438, %439 in 1 : vector<2x32xf32>, vector<2x32xf32> -> vector<2x64xf32>
    %441 = vector.extract_strided_slice %402 {offsets = [0, 0], sizes = [2, 32], strides = [1, 1]} : vector<2x64xf32> to vector<2x32xf32>
    %442 = vector.extract_strided_slice %302 {offsets = [0, 32], sizes = [2, 32], strides = [1, 1]} : vector<2x64xf32> to vector<2x32xf32>
    %443 = tpu.concatenate %441, %442 in 1 : vector<2x32xf32>, vector<2x32xf32> -> vector<2x64xf32>
    %444 = vector.extract_strided_slice %422 {offsets = [0, 0], sizes = [2, 32], strides = [1, 1]} : vector<2x64xf32> to vector<2x32xf32>
    %445 = vector.extract_strided_slice %282 {offsets = [0, 32], sizes = [2, 32], strides = [1, 1]} : vector<2x64xf32> to vector<2x32xf32>
    %446 = tpu.concatenate %444, %445 in 1 : vector<2x32xf32>, vector<2x32xf32> -> vector<2x64xf32>
    %447 = tpu.concatenate %425, %428, %431, %434, %437, %440, %443, %446 in 0 : vector<2x64xf32>, vector<2x64xf32>, vector<2x64xf32>, vector<2x64xf32>, vector<2x64xf32>, vector<2x64xf32>, vector<2x64xf32>, vector<2x64xf32> -> vector<16x64xf32>
    %c0_132 = arith.constant 0 : index
    %c0_133 = arith.constant 0 : index
    %448 = vector.load %arg3[%c0_132, %c0_133] : memref<64x128xf32, #tpu.memory_space<vmem>>, vector<64x128xf32>
    %cst_134 = arith.constant dense<0.000000e+00> : vector<16x128xf32>
    %449 = tpu.matmul %447, %448, %cst_134 {dimension_numbers = #tpu.dot_dimension_numbers<[1], [0], [0], [1], [0, 0, 1, 1], [], []>} : vector<16x64xf32>, vector<64x128xf32>, vector<16x128xf32> -> vector<16x128xf32>
    %c0_135 = arith.constant 0 : index
    %c0_136 = arith.constant 0 : index
    %450 = vector.load %arg4[%c0_135, %c0_136] : memref<1x128xf32, #tpu.memory_space<vmem>>, vector<1x128xf32>
    %451 = vector.broadcast %450 : vector<1x128xf32> to vector<16x128xf32>
    %452 = arith.addf %449, %451 : vector<16x128xf32>
    %c0_137 = arith.constant 0 : index
    %c0_138 = arith.constant 0 : index
    %453 = vector.load %arg11[%c0_137, %c0_138] : memref<16x128xf32, #tpu.memory_space<vmem>>, vector<16x128xf32>
    tpu.vector_store %arg11[%c0_137, %c0_138], %452 {strides = array<i32>} : memref<16x128xf32, #tpu.memory_space<vmem>>, vector<16x128xf32>,
    return
  }
}

</mosaic_0001>

<llo_original>
// kernel: my_classifier_2a_forward.1
$region0: #{my_classifier_2a_forward.1}
  #allocation0 [shape = 'u32[]', space=smem, size = 0x4, offset = 0x4, fixed_abs, tag = 'smem constant byte address 0x4 - core index']
  #allocation1 [shape = 'u32[72,128]{1,0:T(1,128)}', space=vmem, size = 0x9000, scoped, tag = 'internal scratch']
  #allocation2 [shape = 'f32[16,256]{1,0:T(8,128)}', space=vmem, size = 0x4000, scoped, tag = 'scratch operand']
  %s0 = inlined_call_operand.vmem [shape: s32[16,4], index: 0, kind: input, shape index: {}]
  %s1 = inlined_call_operand.vmem [shape: f32[4,2,32], index: 1, kind: input, shape index: {}]
  %s2 = inlined_call_operand.vmem [shape: f32[4,2,32], index: 2, kind: input, shape index: {}]
  %s3 = inlined_call_operand.hbm [shape: f32[64,128], index: 3, kind: input, shape index: {}]
  %s4 = inlined_call_operand.vmem [shape: f32[1,128], index: 4, kind: input, shape index: {}]
  %s5 = inlined_call_operand.hbm [shape: f32[50,256], index: 5, kind: input, shape index: {}]
  %s6 = inlined_call_operand.hbm [shape: f32[64,256], index: 6, kind: input, shape index: {}]
  %s7 = inlined_call_operand.vmem [shape: f32[1,256], index: 7, kind: input, shape index: {}]
  %s8 = inlined_call_operand.hbm [shape: f32[64,256], index: 8, kind: input, shape index: {}]
  %s9 = inlined_call_operand.hbm [shape: f32[64,256], index: 9, kind: input, shape index: {}]
  %s10 = inlined_call_operand.vmem [shape: f32[1,256], index: 10, kind: input, shape index: {}]
  %s11 = inlined_call_operand.vmem [shape: f32[16,128], index: 11, kind: output, shape index: {}]
  %s12 = sld [smem:[#allocation0]]
  $region74: #{my_classifier_2a_forward.1} parent=0
    _
  %s14 = ssub.s32 1, %s12
  %s15 = scalar_select 0, %s14, %s12
  $region1: #{my_classifier_2a_forward.1} parent=0
    #allocation3 [shape = 'u8[32768]{0}', space=vmem, size = 0x8000, scoped, tag = 'input window, operand 3, single buffered']
    #allocation4 [shape = 's32[1]{0}', space=sflag, size = 0x4, scoped, tag = 'scoped memory for my_classifier_2a_forward.1']
    #allocation5 [shape = 'u8[57344]{0}', space=vmem, size = 0xe000, scoped, tag = 'input window, operand 5, single buffered']
    #allocation6 [shape = 's32[1]{0}', space=sflag, size = 0x4, scoped, tag = 'scoped memory for my_classifier_2a_forward.1']
    #allocation7 [shape = 'u8[65536]{0}', space=vmem, size = 0x10000, scoped, tag = 'input window, operand 6, single buffered']
    #allocation8 [shape = 'u8[65536]{0}', space=vmem, size = 0x10000, scoped, tag = 'input window, operand 8, single buffered']
    #allocation9 [shape = 's32[1]{0}', space=sflag, size = 0x4, scoped, tag = 'scoped memory for my_classifier_2a_forward.1']
    #allocation10 [shape = 'u8[65536]{0}', space=vmem, size = 0x10000, scoped, tag = 'input window, operand 9, single buffered']
    %16 = vsyncpa [#allocation4], 0
    %17 = vsyncpa [#allocation6], 0
    %18 = vsyncpa [#allocation9], 0
    // Predicated region
    $region2: #{my_classifier_2a_forward.1} parent=1 // pred_check
      _
    $region3: #{my_classifier_2a_forward.1} parent=1 // pred_check_branch
      %20 = sbr.rel (0) target = $region5
    $region4: #{my_classifier_2a_forward.1} parent=1 // pred_region
      _
    $region5: #{my_classifier_2a_forward.1} parent=1 // pred_fallthru
      _
    // Predicated region
    $region6: #{my_classifier_2a_forward.1} parent=1 // pred_check
      _
    $region7: #{my_classifier_2a_forward.1} parent=1 // pred_check_branch
      %22 = sbr.rel (0) target = $region9
    $region8: #{my_classifier_2a_forward.1} parent=1 // pred_region
      _
    $region9: #{my_classifier_2a_forward.1} parent=1 // pred_fallthru
      _
    // Predicated region
    $region10: #{my_classifier_2a_forward.1} parent=1 // pred_check
      _
    $region11: #{my_classifier_2a_forward.1} parent=1 // pred_check_branch
      %24 = sbr.rel (0) target = $region13
    $region12: #{my_classifier_2a_forward.1} parent=1 // pred_region
      _
    $region13: #{my_classifier_2a_forward.1} parent=1 // pred_fallthru
      _
    // Predicated region
    $region14: #{my_classifier_2a_forward.1} parent=1 // pred_check
      _
    $region15: #{my_classifier_2a_forward.1} parent=1 // pred_check_branch
      %26 = sbr.rel (0) target = $region17
    $region16: #{my_classifier_2a_forward.1} parent=1 // pred_region
      %28 = vsyncadd [#allocation4], 0
      %s29 = sshll.u32 %s3, 4
      %s30 = int_to_ptr.hbm [resolvable:$true] %s29
      %s31 = sshll.u32 [#allocation3], 4
      %s32 = int_to_ptr.vmem [resolvable:$true] %s31
      %37 = dma.hbm_to_vmem [thread:$0]  %s30, 1024, %s32, [#allocation4], 128, 128, 8
    $region17: #{my_classifier_2a_forward.1} parent=1 // pred_fallthru
      _
    // Predicated region
    $region18: #{my_classifier_2a_forward.1} parent=1 // pred_check
      _
    $region19: #{my_classifier_2a_forward.1} parent=1 // pred_check_branch
      %39 = sbr.rel (0) target = $region21
    $region20: #{my_classifier_2a_forward.1} parent=1 // pred_region
      _
    $region21: #{my_classifier_2a_forward.1} parent=1 // pred_fallthru
      _
    // Predicated region
    $region22: #{my_classifier_2a_forward.1} parent=1 // pred_check
      _
    $region23: #{my_classifier_2a_forward.1} parent=1 // pred_check_branch
      %41 = sbr.rel (0) target = $region25
    $region24: #{my_classifier_2a_forward.1} parent=1 // pred_region
      %43 = vsyncadd [#allocation6], 0
      %s44 = sshll.u32 %s5, 4
      %s45 = int_to_ptr.hbm [resolvable:$true] %s44
      %s46 = sshll.u32 [#allocation5], 4
      %s47 = int_to_ptr.vmem [resolvable:$true] %s46
      %52 = dma.hbm_to_vmem [thread:$0]  %s45, 1792, %s47, [#allocation6], 256, 256, 16
    $region25: #{my_classifier_2a_forward.1} parent=1 // pred_fallthru
      _
    // Predicated region
    $region26: #{my_classifier_2a_forward.1} parent=1 // pred_check
      _
    $region27: #{my_classifier_2a_forward.1} parent=1 // pred_check_branch
      %54 = sbr.rel (0) target = $region29
    $region28: #{my_classifier_2a_forward.1} parent=1 // pred_region
      %56 = vsyncadd [#allocation6], 0
      %s57 = sshll.u32 %s6, 4
      %s58 = int_to_ptr.hbm [resolvable:$true] %s57
      %s59 = sshll.u32 [#allocation7], 4
      %s60 = int_to_ptr.vmem [resolvable:$true] %s59
      %65 = dma.hbm_to_vmem [thread:$0]  %s58, 2048, %s60, [#allocation6], 256, 256, 16
    $region29: #{my_classifier_2a_forward.1} parent=1 // pred_fallthru
      _
    // Predicated region
    $region30: #{my_classifier_2a_forward.1} parent=1 // pred_check
      _
    $region31: #{my_classifier_2a_forward.1} parent=1 // pred_check_branch
      %67 = sbr.rel (0) target = $region33
    $region32: #{my_classifier_2a_forward.1} parent=1 // pred_region
      _
    $region33: #{my_classifier_2a_forward.1} parent=1 // pred_fallthru
      _
    // Predicated region
    $region34: #{my_classifier_2a_forward.1} parent=1 // pred_check
      _
    $region35: #{my_classifier_2a_forward.1} parent=1 // pred_check_branch
      %69 = sbr.rel (0) target = $region37
    $region36: #{my_classifier_2a_forward.1} parent=1 // pred_region
      %71 = vsyncadd [#allocation9], 0
      %s72 = sshll.u32 %s8, 4
      %s73 = int_to_ptr.hbm [resolvable:$true] %s72
      %s74 = sshll.u32 [#allocation8], 4
      %s75 = int_to_ptr.vmem [resolvable:$true] %s74
      %80 = dma.hbm_to_vmem [thread:$0]  %s73, 2048, %s75, [#allocation9], 256, 256, 16
    $region37: #{my_classifier_2a_forward.1} parent=1 // pred_fallthru
      _
    // Predicated region
    $region38: #{my_classifier_2a_forward.1} parent=1 // pred_check
      _
    $region39: #{my_classifier_2a_forward.1} parent=1 // pred_check_branch
      %82 = sbr.rel (0) target = $region41
    $region40: #{my_classifier_2a_forward.1} parent=1 // pred_region
      %84 = vsyncadd [#allocation9], 0
      %s85 = sshll.u32 %s9, 4
      %s86 = int_to_ptr.hbm [resolvable:$true] %s85
      %s87 = sshll.u32 [#allocation10], 4
      %s88 = int_to_ptr.vmem [resolvable:$true] %s87
      %93 = dma.hbm_to_vmem [thread:$0]  %s86, 2048, %s88, [#allocation9], 256, 256, 16
    $region41: #{my_classifier_2a_forward.1} parent=1 // pred_fallthru
      _
    // Predicated region
    $region42: #{my_classifier_2a_forward.1} parent=1 // pred_check
      _
    $region43: #{my_classifier_2a_forward.1} parent=1 // pred_check_branch
      %95 = sbr.rel (0) target = $region45
    $region44: #{my_classifier_2a_forward.1} parent=1 // pred_region
      _
    $region45: #{my_classifier_2a_forward.1} parent=1 // pred_fallthru
      _
    // Predicated region
    $region46: #{my_classifier_2a_forward.1} parent=1 // pred_check
      _
    $region47: #{my_classifier_2a_forward.1} parent=1 // pred_check_branch
      %97 = sbr.rel (0) target = $region49
    $region48: #{my_classifier_2a_forward.1} parent=1 // pred_region
      %99 = dma.done [#allocation4], 1024
    $region49: #{my_classifier_2a_forward.1} parent=1 // pred_fallthru
      _
    // Predicated region
    $region50: #{my_classifier_2a_forward.1} parent=1 // pred_check
      _
    $region51: #{my_classifier_2a_forward.1} parent=1 // pred_check_branch
      %101 = sbr.rel (0) target = $region53
    $region52: #{my_classifier_2a_forward.1} parent=1 // pred_region
      %103 = dma.done [#allocation6], 1792
    $region53: #{my_classifier_2a_forward.1} parent=1 // pred_fallthru
      _
    // Predicated region
    $region54: #{my_classifier_2a_forward.1} parent=1 // pred_check
      _
    $region55: #{my_classifier_2a_forward.1} parent=1 // pred_check_branch
      %105 = sbr.rel (0) target = $region57
    $region56: #{my_classifier_2a_forward.1} parent=1 // pred_region
      %107 = dma.done [#allocation6], 2048
    $region57: #{my_classifier_2a_forward.1} parent=1 // pred_fallthru
      _
    // Predicated region
    $region58: #{my_classifier_2a_forward.1} parent=1 // pred_check
      _
    $region59: #{my_classifier_2a_forward.1} parent=1 // pred_check_branch
      %109 = sbr.rel (0) target = $region61
    $region60: #{my_classifier_2a_forward.1} parent=1 // pred_region
      %111 = dma.done [#allocation9], 2048
    $region61: #{my_classifier_2a_forward.1} parent=1 // pred_fallthru
      _
    // Predicated region
    $region62: #{my_classifier_2a_forward.1} parent=1 // pred_check
      _
    $region63: #{my_classifier_2a_forward.1} parent=1 // pred_check_branch
      %113 = sbr.rel (0) target = $region65
    $region64: #{my_classifier_2a_forward.1} parent=1 // pred_region
      %115 = dma.done [#allocation9], 2048
    $region65: #{my_classifier_2a_forward.1} parent=1 // pred_fallthru
      _
    %v116 = vld [vmem:[%s0] sm:$0xff]
    %v117 = vld [vmem:[%s0 + $0x8] sm:$0xff]
    %v118 = vlaneseq
    %v119 = vand.u32 %v118, 127
    %120 = vset.pattern.permute.xlu0 0
    %121 = vperm.xlu0 %120, %v116
    %v122 = vpop.permute.xlu0 %121
    %123 = vset.pattern.permute.xlu0 0
    %124 = vperm.xlu0 %123, %v117
    %v125 = vpop.permute.xlu0 %124
    %vm126 = vcmp.eq.s32.totalorder %v122, %v119
    %vm127 = vcmp.eq.s32.totalorder %v125, %v119
    %v128 = vsel %vm126, 1, 0
    %v129 = vsel %vm127, 1, 0
    %v130 = vcvt.s32.f32 %v128
    %v131 = vcvt.s32.f32 %v129
    %132 = vset.pattern.permute.xlu0 1
    %133 = vperm.xlu0 %132, %v116
    %v134 = vpop.permute.xlu0 %133
    %135 = vset.pattern.permute.xlu0 1
    %136 = vperm.xlu0 %135, %v117
    %v137 = vpop.permute.xlu0 %136
    %vm138 = vcmp.eq.s32.totalorder %v134, %v119
    %vm139 = vcmp.eq.s32.totalorder %v137, %v119
    %v140 = vsel %vm138, 1, 0
    %v141 = vsel %vm139, 1, 0
    %v142 = vcvt.s32.f32 %v140
    %v143 = vcvt.s32.f32 %v141
    %v144 = vadd.f32 %v130, %v142
    %v145 = vadd.f32 %v131, %v143
    %146 = vset.pattern.permute.xlu0 2
    %147 = vperm.xlu0 %146, %v116
    %v148 = vpop.permute.xlu0 %147
    %149 = vset.pattern.permute.xlu0 2
    %150 = vperm.xlu0 %149, %v117
    %v151 = vpop.permute.xlu0 %150
    %vm152 = vcmp.eq.s32.totalorder %v148, %v119
    %vm153 = vcmp.eq.s32.totalorder %v151, %v119
    %v154 = vsel %vm152, 1, 0
    %v155 = vsel %vm153, 1, 0
    %v156 = vcvt.s32.f32 %v154
    %v157 = vcvt.s32.f32 %v155
    %v158 = vadd.f32 %v144, %v156
    %v159 = vadd.f32 %v145, %v157
    %160 = vset.pattern.permute.xlu0 3
    %161 = vperm.xlu0 %160, %v116
    %v162 = vpop.permute.xlu0 %161
    %163 = vset.pattern.permute.xlu0 3
    %164 = vperm.xlu0 %163, %v117
    %v165 = vpop.permute.xlu0 %164
    %vm166 = vcmp.eq.s32.totalorder %v162, %v119
    %vm167 = vcmp.eq.s32.totalorder %v165, %v119
    %v168 = vsel %vm166, 1, 0
    %v169 = vsel %vm167, 1, 0
    %v170 = vcvt.s32.f32 %v168
    %v171 = vcvt.s32.f32 %v169
    %v172 = vadd.f32 %v158, %v170
    %v173 = vadd.f32 %v159, %v171
    %v174 = vadd.s32 %v119, 128
    %vm175 = vcmp.lt.s32.totalorder %v119, 0
    %v176 = vsub.s32 0, %v119
    %v177 = vsel %vm175, %v176, %v119
    %v178 = vshrl.u32 %v177, 6
    %v179 = vand.u32 %v177, 63
    %v180 = vsub.s32 0, %v179
    %v181 = vsel %vm175, %v180, %v179
    %vm182 = vcmp.lt.s32.totalorder %v174, 0
    %v183 = vsub.s32 0, %v174
    %v184 = vsel %vm182, %v183, %v174
    %v185 = vshrl.u32 %v184, 6
    %v186 = vand.u32 %v184, 63
    %v187 = vsub.s32 0, %v186
    %v188 = vsel %vm182, %v187, %v186
    %vm189 = vcmp.ne.s32.totalorder %v181, 0
    %vm190 = vcmp.ne.s32.totalorder %v188, 0
    %vm191 = vcmp.lt.s32.totalorder %v181, 0
    %vm192 = vcmp.lt.s32.totalorder %v188, 0
    %vm193 = vmand %vm191, %vm189
    %vm194 = vmand %vm192, %vm190
    %v195 = vadd.s32 %v181, 64
    %v196 = vadd.s32 %v188, 64
    %v197 = vsel %vm193, %v195, %v181
    %v198 = vsel %vm194, %v196, %v188
    %vm199 = vcmp.lt.s32.totalorder %v197, 32
    %vm200 = vcmp.lt.s32.totalorder %v198, 32
    %v201 = vld [vmem:[#allocation5] sm:$0xff]
    %v202 = vld [vmem:[#allocation5 + $0x8] sm:$0xff]
    %v203 = vld [vmem:[#allocation5 + $0x10] sm:$0xff]
    %v204 = vld [vmem:[#allocation5 + $0x18] sm:$0xff]
    %v205 = vld [vmem:[#allocation5 + $0x20] sm:$0xff]
    %v206 = vld [vmem:[#allocation5 + $0x28] sm:$0xff]
    %v207 = vld [vmem:[#allocation5 + $0x30] sm:$0xff]
    %v208 = vld [vmem:[#allocation5 + $0x38] sm:$0xff]
    %v209 = vld [vmem:[#allocation5 + $0x40] sm:$0xff]
    %v210 = vld [vmem:[#allocation5 + $0x48] sm:$0xff]
    %v211 = vld [vmem:[#allocation5 + $0x50] sm:$0xff]
    %v212 = vld [vmem:[#allocation5 + $0x58] sm:$0xff]
    %v213 = vld [vmem:[#allocation5 + $0x60] sm:$0x3]
    %v214 = vld [vmem:[#allocation5 + $0x68] sm:$0x3]
    %v215 = vld [vmem:[%s7] sm:$0x3]
    %v217 = vperm.slane %v215, 0
    %v218 = vperm.slane %v215, 1
    %vm221 = vcmask 408576
    %v223 = vsel %vm221, %v172, 0
    %v226 = vsel %vm221, %v173, 0
    %vm228 = vcmask 1041408
    %v230 = vsel %vm228, %v213, 0
    %v233 = vsel %vm228, %v214, 0
    %235 = vmatpush.msra.mxu0 0.0
    %236 = vmatpush.msra.mxu0 0.0
    %237 = vmatpush.msra.mxu0 0.0
    %238 = vmatpush.msra.mxu0 0.0
    %239 = vmatpush.msra.mxu0 0.0
    %240 = vmatpush.msra.mxu0 0.0
    %241 = vmatpush.msra.mxu0 0.0
    %242 = vmatpush.msra.mxu0 0.0
    %243 = vmatpush.msra.mxu0 0.0
    %244 = vmatpush.msra.mxu0 %v230
    %245 = vmatpush.msra.mxu0 %v211
    %246 = vmatpush.msra.mxu0 %v209
    %247 = vmatpush.msra.mxu0 %v207
    %248 = vmatpush.msra.mxu0 %v205
    %249 = vmatpush.msra.mxu0 %v203
    %250 = vmatpush.msra.mxu0 %v201
    %251 = vmatmul.f32.gmra.mxu0 %v223
    %v252 = vpop.f32.mrf.mxu0
    %v253 = vadd.f32 %v217, %v252
    %254 = vmatmul.f32.gmra.mxu0 %v226
    %v255 = vpop.f32.mrf.mxu0
    %v256 = vadd.f32 %v217, %v255
    %257 = vdwg.mxu0
    %258 = vmatpush.msra.mxu0 0.0
    %259 = vmatpush.msra.mxu0 0.0
    %260 = vmatpush.msra.mxu0 0.0
    %261 = vmatpush.msra.mxu0 0.0
    %262 = vmatpush.msra.mxu0 0.0
    %263 = vmatpush.msra.mxu0 0.0
    %264 = vmatpush.msra.mxu0 0.0
    %265 = vmatpush.msra.mxu0 0.0
    %266 = vmatpush.msra.mxu0 0.0
    %267 = vmatpush.msra.mxu0 %v233
    %268 = vmatpush.msra.mxu0 %v212
    %269 = vmatpush.msra.mxu0 %v210
    %270 = vmatpush.msra.mxu0 %v208
    %271 = vmatpush.msra.mxu0 %v206
    %272 = vmatpush.msra.mxu0 %v204
    %273 = vmatpush.msra.mxu0 %v202
    %274 = vmatmul.f32.gmra.mxu0 %v223
    %v275 = vpop.f32.mrf.mxu0
    %v276 = vadd.f32 %v218, %v275
    %277 = vmatmul.f32.gmra.mxu0 %v226
    %v278 = vpop.f32.mrf.mxu0
    %v279 = vadd.f32 %v218, %v278
    %280 = vdwg.mxu0
    %281 = vst [vmem:[#allocation2] sm:$0xff] %v253
    %282 = vst [vmem:[#allocation2 + $0x8] sm:$0xff] %v276
    %283 = vst [vmem:[#allocation2 + $0x10] sm:$0xff] %v256
    %284 = vst [vmem:[#allocation2 + $0x18] sm:$0xff] %v279
    %v285 = vld [vmem:[#allocation7] sm:$0xff]
    %v286 = vld [vmem:[#allocation7 + $0x8] sm:$0xff]
    %v287 = vld [vmem:[#allocation7 + $0x10] sm:$0xff]
    %v288 = vld [vmem:[#allocation7 + $0x18] sm:$0xff]
    %v289 = vld [vmem:[#allocation7 + $0x20] sm:$0xff]
    %v290 = vld [vmem:[#allocation7 + $0x28] sm:$0xff]
    %v291 = vld [vmem:[#allocation7 + $0x30] sm:$0xff]
    %v292 = vld [vmem:[#allocation7 + $0x38] sm:$0xff]
    %v293 = vld [vmem:[#allocation7 + $0x40] sm:$0xff]
    %v294 = vld [vmem:[#allocation7 + $0x48] sm:$0xff]
    %v295 = vld [vmem:[#allocation7 + $0x50] sm:$0xff]
    %v296 = vld [vmem:[#allocation7 + $0x58] sm:$0xff]
    %v297 = vld [vmem:[#allocation7 + $0x60] sm:$0xff]
    %v298 = vld [vmem:[#allocation7 + $0x68] sm:$0xff]
    %v299 = vld [vmem:[#allocation7 + $0x70] sm:$0xff]
    %v300 = vld [vmem:[#allocation7 + $0x78] sm:$0xff]
    %v301 = vld [vmem:[%s1] sm:$0x3]
    %s302 = scalar_lea.vmem %s1, 2
    %v303 = vld [vmem:[%s302] sm:$0x3]
    %305 = vrot.lane.b32.xlu0 %v303, 32
    %v306 = vpop.permute.xlu0 %305
    %vm308 = vcmask 261120
    %v309 = vsel %vm308, %v301, %v306
    %v310 = vld [vmem:[%s2] sm:$0x3]
    %s311 = scalar_lea.vmem %s2, 2
    %v312 = vld [vmem:[%s311] sm:$0x3]
    %314 = vrot.lane.b32.xlu0 %v312, 32
    %v315 = vpop.permute.xlu0 %314
    %v317 = vsel %vm308, %v310, %v315
    %v318 = vld [vmem:[#allocation2] sm:$0x3]
    %v319 = vld [vmem:[#allocation2 + $0x8] sm:$0x3]
    %v320 = vld [vmem:[#allocation2 + $0x10] sm:$0xc0]
    %v321 = vld [vmem:[#allocation2 + $0x18] sm:$0xc0]
    %v324 = vrot.slane %v320, 6
    %v325 = vrot.slane %v321, 6
    %v328 = vsel %vm199, %v318, %v324
    %v329 = vsel %vm200, %v319, %v325
    %vm330 = vcmask 523264
    %v332 = vsel %vm330, %v309, 0
    %334 = vmatpush.msra.mxu0 0.0
    %335 = vmatpush.msra.mxu0 0.0
    %336 = vmatpush.msra.mxu0 0.0
    %337 = vmatpush.msra.mxu0 0.0
    %338 = vmatpush.msra.mxu0 0.0
    %339 = vmatpush.msra.mxu0 0.0
    %340 = vmatpush.msra.mxu0 0.0
    %341 = vmatpush.msra.mxu0 0.0
    %342 = vmatpush.msra.mxu0 %v299
    %343 = vmatpush.msra.mxu0 %v297
    %344 = vmatpush.msra.mxu0 %v295
    %345 = vmatpush.msra.mxu0 %v293
    %346 = vmatpush.msra.mxu0 %v291
    %347 = vmatpush.msra.mxu0 %v289
    %348 = vmatpush.msra.mxu0 %v287
    %349 = vmatpush.msra.mxu0 %v285
    %350 = vmatmul.f32.gmra.mxu0 %v332
    %v351 = vpop.f32.mrf.mxu0
    %v352 = vadd.f32 0.0, %v351
    %353 = vdwg.mxu0
    %354 = vmatpush.msra.mxu0 0.0
    %355 = vmatpush.msra.mxu0 0.0
    %356 = vmatpush.msra.mxu0 0.0
    %357 = vmatpush.msra.mxu0 0.0
    %358 = vmatpush.msra.mxu0 0.0
    %359 = vmatpush.msra.mxu0 0.0
    %360 = vmatpush.msra.mxu0 0.0
    %361 = vmatpush.msra.mxu0 0.0
    %362 = vmatpush.msra.mxu0 %v300
    %363 = vmatpush.msra.mxu0 %v298
    %364 = vmatpush.msra.mxu0 %v296
    %365 = vmatpush.msra.mxu0 %v294
    %366 = vmatpush.msra.mxu0 %v292
    %367 = vmatpush.msra.mxu0 %v290
    %368 = vmatpush.msra.mxu0 %v288
    %369 = vmatpush.msra.mxu0 %v286
    %370 = vmatmul.f32.gmra.mxu0 %v332
    %v371 = vpop.f32.mrf.mxu0
    %v372 = vadd.f32 0.0, %v371
    %373 = vdwg.mxu0
    %v374 = vadd.f32 %v328, %v352
    %v375 = vadd.f32 %v329, %v372
    %v376 = vxor.u32 %v374, 2147483648
    %v377 = vxor.u32 %v375, 2147483648
    %v378 = vmul.f32 %v376, 1.442695
    %v379 = vpow.pop %v378
    %v380 = vmul.f32 %v377, 1.442695
    %v381 = vpow.pop %v380
    %v382 = vadd.f32 %v379, 1.0
    %v383 = vadd.f32 %v381, 1.0
    %v384 = vrcp.pop %v382
    %v385 = vmul.f32 %v382, %v384
    %v386 = vsub.f32 1.0, %v385
    %v387 = vmul.f32 %v384, %v386
    %v388 = vadd.f32 %v384, %v387
    %vm389 = vweird.f32 %v382
    %vm390 = vweird.f32 %v384
    %vm391 = vmor %vm389, %vm390
    %v392 = vsel %vm391, %v384, %v388
    %v393 = vand.u32 2147483647, %v382
    %vm394 = vcmp.eq.f32.partialorder %v393, 8.507059e+37
    %v395 = vand.u32 %v382, 2147483648
    %v396 = vor.u32 1.1754944e-38, %v395
    %v397 = vsel %vm394, %v396, %v392
    %v398 = vmul.f32 1.0, %v397
    %v399 = vrcp.pop %v383
    %v400 = vmul.f32 %v383, %v399
    %v401 = vsub.f32 1.0, %v400
    %v402 = vmul.f32 %v399, %v401
    %v403 = vadd.f32 %v399, %v402
    %vm404 = vweird.f32 %v383
    %vm405 = vweird.f32 %v399
    %vm406 = vmor %vm404, %vm405
    %v407 = vsel %vm406, %v399, %v403
    %v408 = vand.u32 2147483647, %v383
    %vm409 = vcmp.eq.f32.partialorder %v408, 8.507059e+37
    %v410 = vand.u32 %v383, 2147483648
    %v411 = vor.u32 1.1754944e-38, %v410
    %v412 = vsel %vm409, %v411, %v407
    %v413 = vmul.f32 1.0, %v412
    %v414 = vtanh.pop %v375
    %416 = vrot.lane.b32.xlu0 %v317, 64
    %v417 = vpop.permute.xlu0 %416
    %v419 = vmul.f32 %v398, %v417
    %v420 = vmul.f32 %v398, %v414
    %422 = vrot.lane.b32.xlu0 %v420, 64
    %v423 = vpop.permute.xlu0 %422
    %v425 = vadd.f32 %v419, %v423
    %v426 = vtanh.pop %v425
    %v427 = vmul.f32 %v413, %v426
    %v428 = vld [vmem:[#allocation2] sm:$0xc]
    %v429 = vld [vmem:[#allocation2 + $0x8] sm:$0xc]
    %v430 = vld [vmem:[#allocation2 + $0x10] sm:$0x30]
    %v431 = vld [vmem:[#allocation2 + $0x18] sm:$0x30]
    %v434 = vrot.slane %v430, 2
    %v435 = vrot.slane %v431, 2
    %v438 = vsel %vm199, %v428, %v434
    %v439 = vsel %vm200, %v429, %v435
    %441 = vrot.lane.b32.xlu0 %v427, 64
    %v442 = vpop.permute.xlu0 %441
    %v443 = vsel %vm330, %v442, 0
    %445 = vmatpush.msra.mxu0 0.0
    %446 = vmatpush.msra.mxu0 0.0
    %447 = vmatpush.msra.mxu0 0.0
    %448 = vmatpush.msra.mxu0 0.0
    %449 = vmatpush.msra.mxu0 0.0
    %450 = vmatpush.msra.mxu0 0.0
    %451 = vmatpush.msra.mxu0 0.0
    %452 = vmatpush.msra.mxu0 0.0
    %453 = vmatpush.msra.mxu0 %v299
    %454 = vmatpush.msra.mxu0 %v297
    %455 = vmatpush.msra.mxu0 %v295
    %456 = vmatpush.msra.mxu0 %v293
    %457 = vmatpush.msra.mxu0 %v291
    %458 = vmatpush.msra.mxu0 %v289
    %459 = vmatpush.msra.mxu0 %v287
    %460 = vmatpush.msra.mxu0 %v285
    %461 = vmatmul.f32.gmra.mxu0 %v443
    %v462 = vpop.f32.mrf.mxu0
    %v463 = vadd.f32 0.0, %v462
    %464 = vdwg.mxu0
    %465 = vmatpush.msra.mxu0 0.0
    %466 = vmatpush.msra.mxu0 0.0
    %467 = vmatpush.msra.mxu0 0.0
    %468 = vmatpush.msra.mxu0 0.0
    %469 = vmatpush.msra.mxu0 0.0
    %470 = vmatpush.msra.mxu0 0.0
    %471 = vmatpush.msra.mxu0 0.0
    %472 = vmatpush.msra.mxu0 0.0
    %473 = vmatpush.msra.mxu0 %v300
    %474 = vmatpush.msra.mxu0 %v298
    %475 = vmatpush.msra.mxu0 %v296
    %476 = vmatpush.msra.mxu0 %v294
    %477 = vmatpush.msra.mxu0 %v292
    %478 = vmatpush.msra.mxu0 %v290
    %479 = vmatpush.msra.mxu0 %v288
    %480 = vmatpush.msra.mxu0 %v286
    %481 = vmatmul.f32.gmra.mxu0 %v443
    %v482 = vpop.f32.mrf.mxu0
    %v483 = vadd.f32 0.0, %v482
    %484 = vdwg.mxu0
    %v487 = vrot.slane %v463, 6
    %v488 = vrot.slane %v483, 6
    %v491 = vadd.f32 %v438, %v487
    %v492 = vadd.f32 %v439, %v488
    %v493 = vxor.u32 %v491, 2147483648
    %v494 = vxor.u32 %v492, 2147483648
    %v495 = vmul.f32 %v493, 1.442695
    %v496 = vpow.pop %v495
    %v497 = vmul.f32 %v494, 1.442695
    %v498 = vpow.pop %v497
    %v499 = vadd.f32 %v496, 1.0
    %v500 = vadd.f32 %v498, 1.0
    %v501 = vrcp.pop %v499
    %v502 = vmul.f32 %v499, %v501
    %v503 = vsub.f32 1.0, %v502
    %v504 = vmul.f32 %v501, %v503
    %v505 = vadd.f32 %v501, %v504
    %vm506 = vweird.f32 %v499
    %vm507 = vweird.f32 %v501
    %vm508 = vmor %vm506, %vm507
    %v509 = vsel %vm508, %v501, %v505
    %v510 = vand.u32 2147483647, %v499
    %vm511 = vcmp.eq.f32.partialorder %v510, 8.507059e+37
    %v512 = vand.u32 %v499, 2147483648
    %v513 = vor.u32 1.1754944e-38, %v512
    %v514 = vsel %vm511, %v513, %v509
    %v515 = vmul.f32 1.0, %v514
    %v516 = vrcp.pop %v500
    %v517 = vmul.f32 %v500, %v516
    %v518 = vsub.f32 1.0, %v517
    %v519 = vmul.f32 %v516, %v518
    %v520 = vadd.f32 %v516, %v519
    %vm521 = vweird.f32 %v500
    %vm522 = vweird.f32 %v516
    %vm523 = vmor %vm521, %vm522
    %v524 = vsel %vm523, %v516, %v520
    %v525 = vand.u32 2147483647, %v500
    %vm526 = vcmp.eq.f32.partialorder %v525, 8.507059e+37
    %v527 = vand.u32 %v500, 2147483648
    %v528 = vor.u32 1.1754944e-38, %v527
    %v529 = vsel %vm526, %v528, %v524
    %v530 = vmul.f32 1.0, %v529
    %v531 = vtanh.pop %v492
    %v533 = vrot.slane %v425, 6
    %v535 = vmul.f32 %v515, %v533
    %v536 = vmul.f32 %v515, %v531
    %538 = vrot.lane.b32.xlu0 %v536, 64
    %v539 = vpop.permute.xlu0 %538
    %v541 = vadd.f32 %v535, %v539
    %v542 = vtanh.pop %v541
    %v543 = vmul.f32 %v530, %v542
    %v544 = vld [vmem:[#allocation2] sm:$0x30]
    %v545 = vld [vmem:[#allocation2 + $0x8] sm:$0x30]
    %v546 = vld [vmem:[#allocation2 + $0x10] sm:$0xc]
    %v547 = vld [vmem:[#allocation2 + $0x18] sm:$0xc]
    %v550 = vrot.slane %v546, 6
    %v551 = vrot.slane %v547, 6
    %v554 = vsel %vm199, %v544, %v550
    %v555 = vsel %vm200, %v545, %v551
    %v557 = vrot.slane %v543, 2
    %558 = vrot.lane.b32.xlu0 %v557, 64
    %v559 = vpop.permute.xlu0 %558
    %v560 = vsel %vm330, %v559, 0
    %562 = vmatpush.msra.mxu0 0.0
    %563 = vmatpush.msra.mxu0 0.0
    %564 = vmatpush.msra.mxu0 0.0
    %565 = vmatpush.msra.mxu0 0.0
    %566 = vmatpush.msra.mxu0 0.0
    %567 = vmatpush.msra.mxu0 0.0
    %568 = vmatpush.msra.mxu0 0.0
    %569 = vmatpush.msra.mxu0 0.0
    %570 = vmatpush.msra.mxu0 %v299
    %571 = vmatpush.msra.mxu0 %v297
    %572 = vmatpush.msra.mxu0 %v295
    %573 = vmatpush.msra.mxu0 %v293
    %574 = vmatpush.msra.mxu0 %v291
    %575 = vmatpush.msra.mxu0 %v289
    %576 = vmatpush.msra.mxu0 %v287
    %577 = vmatpush.msra.mxu0 %v285
    %578 = vmatmul.f32.gmra.mxu0 %v560
    %v579 = vpop.f32.mrf.mxu0
    %v580 = vadd.f32 0.0, %v579
    %581 = vdwg.mxu0
    %582 = vmatpush.msra.mxu0 0.0
    %583 = vmatpush.msra.mxu0 0.0
    %584 = vmatpush.msra.mxu0 0.0
    %585 = vmatpush.msra.mxu0 0.0
    %586 = vmatpush.msra.mxu0 0.0
    %587 = vmatpush.msra.mxu0 0.0
    %588 = vmatpush.msra.mxu0 0.0
    %589 = vmatpush.msra.mxu0 0.0
    %590 = vmatpush.msra.mxu0 %v300
    %591 = vmatpush.msra.mxu0 %v298
    %592 = vmatpush.msra.mxu0 %v296
    %593 = vmatpush.msra.mxu0 %v294
    %594 = vmatpush.msra.mxu0 %v292
    %595 = vmatpush.msra.mxu0 %v290
    %596 = vmatpush.msra.mxu0 %v288
    %597 = vmatpush.msra.mxu0 %v286
    %598 = vmatmul.f32.gmra.mxu0 %v560
    %v599 = vpop.f32.mrf.mxu0
    %v600 = vadd.f32 0.0, %v599
    %601 = vdwg.mxu0
    %v604 = vrot.slane %v580, 4
    %v605 = vrot.slane %v600, 4
    %v608 = vadd.f32 %v554, %v604
    %v609 = vadd.f32 %v555, %v605
    %v610 = vxor.u32 %v608, 2147483648
    %v611 = vxor.u32 %v609, 2147483648
    %v612 = vmul.f32 %v610, 1.442695
    %v613 = vpow.pop %v612
    %v614 = vmul.f32 %v611, 1.442695
    %v615 = vpow.pop %v614
    %v616 = vadd.f32 %v613, 1.0
    %v617 = vadd.f32 %v615, 1.0
    %v618 = vrcp.pop %v616
    %v619 = vmul.f32 %v616, %v618
    %v620 = vsub.f32 1.0, %v619
    %v621 = vmul.f32 %v618, %v620
    %v622 = vadd.f32 %v618, %v621
    %vm623 = vweird.f32 %v616
    %vm624 = vweird.f32 %v618
    %vm625 = vmor %vm623, %vm624
    %v626 = vsel %vm625, %v618, %v622
    %v627 = vand.u32 2147483647, %v616
    %vm628 = vcmp.eq.f32.partialorder %v627, 8.507059e+37
    %v629 = vand.u32 %v616, 2147483648
    %v630 = vor.u32 1.1754944e-38, %v629
    %v631 = vsel %vm628, %v630, %v626
    %v632 = vmul.f32 1.0, %v631
    %v633 = vrcp.pop %v617
    %v634 = vmul.f32 %v617, %v633
    %v635 = vsub.f32 1.0, %v634
    %v636 = vmul.f32 %v633, %v635
    %v637 = vadd.f32 %v633, %v636
    %vm638 = vweird.f32 %v617
    %vm639 = vweird.f32 %v633
    %vm640 = vmor %vm638, %vm639
    %v641 = vsel %vm640, %v633, %v637
    %v642 = vand.u32 2147483647, %v617
    %vm643 = vcmp.eq.f32.partialorder %v642, 8.507059e+37
    %v644 = vand.u32 %v617, 2147483648
    %v645 = vor.u32 1.1754944e-38, %v644
    %v646 = vsel %vm643, %v645, %v641
    %v647 = vmul.f32 1.0, %v646
    %v648 = vtanh.pop %v609
    %v650 = vrot.slane %v541, 6
    %v652 = vmul.f32 %v632, %v650
    %v653 = vmul.f32 %v632, %v648
    %655 = vrot.lane.b32.xlu0 %v653, 64
    %v656 = vpop.permute.xlu0 %655
    %v658 = vadd.f32 %v652, %v656
    %v659 = vtanh.pop %v658
    %v660 = vmul.f32 %v647, %v659
    %v661 = vld [vmem:[#allocation2] sm:$0xc0]
    %v662 = vld [vmem:[#allocation2 + $0x8] sm:$0xc0]
    %v663 = vld [vmem:[#allocation2 + $0x10] sm:$0x3]
    %v664 = vld [vmem:[#allocation2 + $0x18] sm:$0x3]
    %v667 = vrot.slane %v663, 2
    %v668 = vrot.slane %v664, 2
    %v671 = vsel %vm199, %v661, %v667
    %v672 = vsel %vm200, %v662, %v668
    %v674 = vrot.slane %v660, 4
    %675 = vrot.lane.b32.xlu0 %v674, 64
    %v676 = vpop.permute.xlu0 %675
    %v677 = vsel %vm330, %v676, 0
    %679 = vmatpush.msra.mxu0 0.0
    %680 = vmatpush.msra.mxu0 0.0
    %681 = vmatpush.msra.mxu0 0.0
    %682 = vmatpush.msra.mxu0 0.0
    %683 = vmatpush.msra.mxu0 0.0
    %684 = vmatpush.msra.mxu0 0.0
    %685 = vmatpush.msra.mxu0 0.0
    %686 = vmatpush.msra.mxu0 0.0
    %687 = vmatpush.msra.mxu0 %v299
    %688 = vmatpush.msra.mxu0 %v297
    %689 = vmatpush.msra.mxu0 %v295
    %690 = vmatpush.msra.mxu0 %v293
    %691 = vmatpush.msra.mxu0 %v291
    %692 = vmatpush.msra.mxu0 %v289
    %693 = vmatpush.msra.mxu0 %v287
    %694 = vmatpush.msra.mxu0 %v285
    %695 = vmatmul.f32.gmra.mxu0 %v677
    %v696 = vpop.f32.mrf.mxu0
    %v697 = vadd.f32 0.0, %v696
    %698 = vdwg.mxu0
    %699 = vmatpush.msra.mxu0 0.0
    %700 = vmatpush.msra.mxu0 0.0
    %701 = vmatpush.msra.mxu0 0.0
    %702 = vmatpush.msra.mxu0 0.0
    %703 = vmatpush.msra.mxu0 0.0
    %704 = vmatpush.msra.mxu0 0.0
    %705 = vmatpush.msra.mxu0 0.0
    %706 = vmatpush.msra.mxu0 0.0
    %707 = vmatpush.msra.mxu0 %v300
    %708 = vmatpush.msra.mxu0 %v298
    %709 = vmatpush.msra.mxu0 %v296
    %710 = vmatpush.msra.mxu0 %v294
    %711 = vmatpush.msra.mxu0 %v292
    %712 = vmatpush.msra.mxu0 %v290
    %713 = vmatpush.msra.mxu0 %v288
    %714 = vmatpush.msra.mxu0 %v286
    %715 = vmatmul.f32.gmra.mxu0 %v677
    %v716 = vpop.f32.mrf.mxu0
    %v717 = vadd.f32 0.0, %v716
    %718 = vdwg.mxu0
    %v721 = vrot.slane %v697, 2
    %v722 = vrot.slane %v717, 2
    %v725 = vadd.f32 %v671, %v721
    %v726 = vadd.f32 %v672, %v722
    %v727 = vxor.u32 %v725, 2147483648
    %v728 = vxor.u32 %v726, 2147483648
    %v729 = vmul.f32 %v727, 1.442695
    %v730 = vpow.pop %v729
    %v731 = vmul.f32 %v728, 1.442695
    %v732 = vpow.pop %v731
    %v733 = vadd.f32 %v730, 1.0
    %v734 = vadd.f32 %v732, 1.0
    %v735 = vrcp.pop %v733
    %v736 = vmul.f32 %v733, %v735
    %v737 = vsub.f32 1.0, %v736
    %v738 = vmul.f32 %v735, %v737
    %v739 = vadd.f32 %v735, %v738
    %vm740 = vweird.f32 %v733
    %vm741 = vweird.f32 %v735
    %vm742 = vmor %vm740, %vm741
    %v743 = vsel %vm742, %v735, %v739
    %v744 = vand.u32 2147483647, %v733
    %vm745 = vcmp.eq.f32.partialorder %v744, 8.507059e+37
    %v746 = vand.u32 %v733, 2147483648
    %v747 = vor.u32 1.1754944e-38, %v746
    %v748 = vsel %vm745, %v747, %v743
    %v749 = vmul.f32 1.0, %v748
    %v750 = vrcp.pop %v734
    %v751 = vmul.f32 %v734, %v750
    %v752 = vsub.f32 1.0, %v751
    %v753 = vmul.f32 %v750, %v752
    %v754 = vadd.f32 %v750, %v753
    %vm755 = vweird.f32 %v734
    %vm756 = vweird.f32 %v750
    %vm757 = vmor %vm755, %vm756
    %v758 = vsel %vm757, %v750, %v754
    %v759 = vand.u32 2147483647, %v734
    %vm760 = vcmp.eq.f32.partialorder %v759, 8.507059e+37
    %v761 = vand.u32 %v734, 2147483648
    %v762 = vor.u32 1.1754944e-38, %v761
    %v763 = vsel %vm760, %v762, %v758
    %v764 = vmul.f32 1.0, %v763
    %v765 = vtanh.pop %v726
    %v767 = vrot.slane %v658, 6
    %v769 = vmul.f32 %v749, %v767
    %v770 = vmul.f32 %v749, %v765
    %772 = vrot.lane.b32.xlu0 %v770, 64
    %v773 = vpop.permute.xlu0 %772
    %v775 = vadd.f32 %v769, %v773
    %v776 = vtanh.pop %v775
    %v777 = vmul.f32 %v764, %v776
    %v780 = vrot.slane %v661, 6
    %v781 = vrot.slane %v662, 6
    %v784 = vsel %vm199, %v663, %v780
    %v785 = vsel %vm200, %v664, %v781
    %v787 = vrot.slane %v777, 6
    %788 = vrot.lane.b32.xlu0 %v787, 64
    %v789 = vpop.permute.xlu0 %788
    %v790 = vsel %vm330, %v789, 0
    %792 = vmatpush.msra.mxu0 0.0
    %793 = vmatpush.msra.mxu0 0.0
    %794 = vmatpush.msra.mxu0 0.0
    %795 = vmatpush.msra.mxu0 0.0
    %796 = vmatpush.msra.mxu0 0.0
    %797 = vmatpush.msra.mxu0 0.0
    %798 = vmatpush.msra.mxu0 0.0
    %799 = vmatpush.msra.mxu0 0.0
    %800 = vmatpush.msra.mxu0 %v299
    %801 = vmatpush.msra.mxu0 %v297
    %802 = vmatpush.msra.mxu0 %v295
    %803 = vmatpush.msra.mxu0 %v293
    %804 = vmatpush.msra.mxu0 %v291
    %805 = vmatpush.msra.mxu0 %v289
    %806 = vmatpush.msra.mxu0 %v287
    %807 = vmatpush.msra.mxu0 %v285
    %808 = vmatmul.f32.gmra.mxu0 %v790
    %v809 = vpop.f32.mrf.mxu0
    %v810 = vadd.f32 0.0, %v809
    %811 = vdwg.mxu0
    %812 = vmatpush.msra.mxu0 0.0
    %813 = vmatpush.msra.mxu0 0.0
    %814 = vmatpush.msra.mxu0 0.0
    %815 = vmatpush.msra.mxu0 0.0
    %816 = vmatpush.msra.mxu0 0.0
    %817 = vmatpush.msra.mxu0 0.0
    %818 = vmatpush.msra.mxu0 0.0
    %819 = vmatpush.msra.mxu0 0.0
    %820 = vmatpush.msra.mxu0 %v300
    %821 = vmatpush.msra.mxu0 %v298
    %822 = vmatpush.msra.mxu0 %v296
    %823 = vmatpush.msra.mxu0 %v294
    %824 = vmatpush.msra.mxu0 %v292
    %825 = vmatpush.msra.mxu0 %v290
    %826 = vmatpush.msra.mxu0 %v288
    %827 = vmatpush.msra.mxu0 %v286
    %828 = vmatmul.f32.gmra.mxu0 %v790
    %v829 = vpop.f32.mrf.mxu0
    %v830 = vadd.f32 0.0, %v829
    %831 = vdwg.mxu0
    %v832 = vadd.f32 %v784, %v810
    %v833 = vadd.f32 %v785, %v830
    %v834 = vxor.u32 %v832, 2147483648
    %v835 = vxor.u32 %v833, 2147483648
    %v836 = vmul.f32 %v834, 1.442695
    %v837 = vpow.pop %v836
    %v838 = vmul.f32 %v835, 1.442695
    %v839 = vpow.pop %v838
    %v840 = vadd.f32 %v837, 1.0
    %v841 = vadd.f32 %v839, 1.0
    %v842 = vrcp.pop %v840
    %v843 = vmul.f32 %v840, %v842
    %v844 = vsub.f32 1.0, %v843
    %v845 = vmul.f32 %v842, %v844
    %v846 = vadd.f32 %v842, %v845
    %vm847 = vweird.f32 %v840
    %vm848 = vweird.f32 %v842
    %vm849 = vmor %vm847, %vm848
    %v850 = vsel %vm849, %v842, %v846
    %v851 = vand.u32 2147483647, %v840
    %vm852 = vcmp.eq.f32.partialorder %v851, 8.507059e+37
    %v853 = vand.u32 %v840, 2147483648
    %v854 = vor.u32 1.1754944e-38, %v853
    %v855 = vsel %vm852, %v854, %v850
    %v856 = vmul.f32 1.0, %v855
    %v857 = vrcp.pop %v841
    %v858 = vmul.f32 %v841, %v857
    %v859 = vsub.f32 1.0, %v858
    %v860 = vmul.f32 %v857, %v859
    %v861 = vadd.f32 %v857, %v860
    %vm862 = vweird.f32 %v841
    %vm863 = vweird.f32 %v857
    %vm864 = vmor %vm862, %vm863
    %v865 = vsel %vm864, %v857, %v861
    %v866 = vand.u32 2147483647, %v841
    %vm867 = vcmp.eq.f32.partialorder %v866, 8.507059e+37
    %v868 = vand.u32 %v841, 2147483648
    %v869 = vor.u32 1.1754944e-38, %v868
    %v870 = vsel %vm867, %v869, %v865
    %v871 = vmul.f32 1.0, %v870
    %v872 = vtanh.pop %v833
    %v874 = vrot.slane %v775, 6
    %v876 = vmul.f32 %v856, %v874
    %v877 = vmul.f32 %v856, %v872
    %879 = vrot.lane.b32.xlu0 %v877, 64
    %v880 = vpop.permute.xlu0 %879
    %v882 = vadd.f32 %v876, %v880
    %v883 = vtanh.pop %v882
    %v884 = vmul.f32 %v871, %v883
    %v887 = vrot.slane %v544, 2
    %v888 = vrot.slane %v545, 2
    %v891 = vsel %vm199, %v546, %v887
    %v892 = vsel %vm200, %v547, %v888
    %894 = vrot.lane.b32.xlu0 %v884, 64
    %v895 = vpop.permute.xlu0 %894
    %v896 = vsel %vm330, %v895, 0
    %898 = vmatpush.msra.mxu0 0.0
    %899 = vmatpush.msra.mxu0 0.0
    %900 = vmatpush.msra.mxu0 0.0
    %901 = vmatpush.msra.mxu0 0.0
    %902 = vmatpush.msra.mxu0 0.0
    %903 = vmatpush.msra.mxu0 0.0
    %904 = vmatpush.msra.mxu0 0.0
    %905 = vmatpush.msra.mxu0 0.0
    %906 = vmatpush.msra.mxu0 %v299
    %907 = vmatpush.msra.mxu0 %v297
    %908 = vmatpush.msra.mxu0 %v295
    %909 = vmatpush.msra.mxu0 %v293
    %910 = vmatpush.msra.mxu0 %v291
    %911 = vmatpush.msra.mxu0 %v289
    %912 = vmatpush.msra.mxu0 %v287
    %913 = vmatpush.msra.mxu0 %v285
    %914 = vmatmul.f32.gmra.mxu0 %v896
    %v915 = vpop.f32.mrf.mxu0
    %v916 = vadd.f32 0.0, %v915
    %917 = vdwg.mxu0
    %918 = vmatpush.msra.mxu0 0.0
    %919 = vmatpush.msra.mxu0 0.0
    %920 = vmatpush.msra.mxu0 0.0
    %921 = vmatpush.msra.mxu0 0.0
    %922 = vmatpush.msra.mxu0 0.0
    %923 = vmatpush.msra.mxu0 0.0
    %924 = vmatpush.msra.mxu0 0.0
    %925 = vmatpush.msra.mxu0 0.0
    %926 = vmatpush.msra.mxu0 %v300
    %927 = vmatpush.msra.mxu0 %v298
    %928 = vmatpush.msra.mxu0 %v296
    %929 = vmatpush.msra.mxu0 %v294
    %930 = vmatpush.msra.mxu0 %v292
    %931 = vmatpush.msra.mxu0 %v290
    %932 = vmatpush.msra.mxu0 %v288
    %933 = vmatpush.msra.mxu0 %v286
    %934 = vmatmul.f32.gmra.mxu0 %v896
    %v935 = vpop.f32.mrf.mxu0
    %v936 = vadd.f32 0.0, %v935
    %937 = vdwg.mxu0
    %v940 = vrot.slane %v916, 6
    %v941 = vrot.slane %v936, 6
    %v944 = vadd.f32 %v891, %v940
    %v945 = vadd.f32 %v892, %v941
    %v946 = vxor.u32 %v944, 2147483648
    %v947 = vxor.u32 %v945, 2147483648
    %v948 = vmul.f32 %v946, 1.442695
    %v949 = vpow.pop %v948
    %v950 = vmul.f32 %v947, 1.442695
    %v951 = vpow.pop %v950
    %v952 = vadd.f32 %v949, 1.0
    %v953 = vadd.f32 %v951, 1.0
    %v954 = vrcp.pop %v952
    %v955 = vmul.f32 %v952, %v954
    %v956 = vsub.f32 1.0, %v955
    %v957 = vmul.f32 %v954, %v956
    %v958 = vadd.f32 %v954, %v957
    %vm959 = vweird.f32 %v952
    %vm960 = vweird.f32 %v954
    %vm961 = vmor %vm959, %vm960
    %v962 = vsel %vm961, %v954, %v958
    %v963 = vand.u32 2147483647, %v952
    %vm964 = vcmp.eq.f32.partialorder %v963, 8.507059e+37
    %v965 = vand.u32 %v952, 2147483648
    %v966 = vor.u32 1.1754944e-38, %v965
    %v967 = vsel %vm964, %v966, %v962
    %v968 = vmul.f32 1.0, %v967
    %v969 = vrcp.pop %v953
    %v970 = vmul.f32 %v953, %v969
    %v971 = vsub.f32 1.0, %v970
    %v972 = vmul.f32 %v969, %v971
    %v973 = vadd.f32 %v969, %v972
    %vm974 = vweird.f32 %v953
    %vm975 = vweird.f32 %v969
    %vm976 = vmor %vm974, %vm975
    %v977 = vsel %vm976, %v969, %v973
    %v978 = vand.u32 2147483647, %v953
    %vm979 = vcmp.eq.f32.partialorder %v978, 8.507059e+37
    %v980 = vand.u32 %v953, 2147483648
    %v981 = vor.u32 1.1754944e-38, %v980
    %v982 = vsel %vm979, %v981, %v977
    %v983 = vmul.f32 1.0, %v982
    %v984 = vtanh.pop %v945
    %v986 = vrot.slane %v882, 6
    %v988 = vmul.f32 %v968, %v986
    %v989 = vmul.f32 %v968, %v984
    %991 = vrot.lane.b32.xlu0 %v989, 64
    %v992 = vpop.permute.xlu0 %991
    %v994 = vadd.f32 %v988, %v992
    %v995 = vtanh.pop %v994
    %v996 = vmul.f32 %v983, %v995
    %v999 = vrot.slane %v428, 6
    %v1000 = vrot.slane %v429, 6
    %v1003 = vsel %vm199, %v430, %v999
    %v1004 = vsel %vm200, %v431, %v1000
    %v1006 = vrot.slane %v996, 2
    %1007 = vrot.lane.b32.xlu0 %v1006, 64
    %v1008 = vpop.permute.xlu0 %1007
    %v1009 = vsel %vm330, %v1008, 0
    %1011 = vmatpush.msra.mxu0 0.0
    %1012 = vmatpush.msra.mxu0 0.0
    %1013 = vmatpush.msra.mxu0 0.0
    %1014 = vmatpush.msra.mxu0 0.0
    %1015 = vmatpush.msra.mxu0 0.0
    %1016 = vmatpush.msra.mxu0 0.0
    %1017 = vmatpush.msra.mxu0 0.0
    %1018 = vmatpush.msra.mxu0 0.0
    %1019 = vmatpush.msra.mxu0 %v299
    %1020 = vmatpush.msra.mxu0 %v297
    %1021 = vmatpush.msra.mxu0 %v295
    %1022 = vmatpush.msra.mxu0 %v293
    %1023 = vmatpush.msra.mxu0 %v291
    %1024 = vmatpush.msra.mxu0 %v289
    %1025 = vmatpush.msra.mxu0 %v287
    %1026 = vmatpush.msra.mxu0 %v285
    %1027 = vmatmul.f32.gmra.mxu0 %v1009
    %v1028 = vpop.f32.mrf.mxu0
    %v1029 = vadd.f32 0.0, %v1028
    %1030 = vdwg.mxu0
    %1031 = vmatpush.msra.mxu0 0.0
    %1032 = vmatpush.msra.mxu0 0.0
    %1033 = vmatpush.msra.mxu0 0.0
    %1034 = vmatpush.msra.mxu0 0.0
    %1035 = vmatpush.msra.mxu0 0.0
    %1036 = vmatpush.msra.mxu0 0.0
    %1037 = vmatpush.msra.mxu0 0.0
    %1038 = vmatpush.msra.mxu0 0.0
    %1039 = vmatpush.msra.mxu0 %v300
    %1040 = vmatpush.msra.mxu0 %v298
    %1041 = vmatpush.msra.mxu0 %v296
    %1042 = vmatpush.msra.mxu0 %v294
    %1043 = vmatpush.msra.mxu0 %v292
    %1044 = vmatpush.msra.mxu0 %v290
    %1045 = vmatpush.msra.mxu0 %v288
    %1046 = vmatpush.msra.mxu0 %v286
    %1047 = vmatmul.f32.gmra.mxu0 %v1009
    %v1048 = vpop.f32.mrf.mxu0
    %v1049 = vadd.f32 0.0, %v1048
    %1050 = vdwg.mxu0
    %v1053 = vrot.slane %v1029, 4
    %v1054 = vrot.slane %v1049, 4
    %v1057 = vadd.f32 %v1003, %v1053
    %v1058 = vadd.f32 %v1004, %v1054
    %v1059 = vxor.u32 %v1057, 2147483648
    %v1060 = vxor.u32 %v1058, 2147483648
    %v1061 = vmul.f32 %v1059, 1.442695
    %v1062 = vpow.pop %v1061
    %v1063 = vmul.f32 %v1060, 1.442695
    %v1064 = vpow.pop %v1063
    %v1065 = vadd.f32 %v1062, 1.0
    %v1066 = vadd.f32 %v1064, 1.0
    %v1067 = vrcp.pop %v1065
    %v1068 = vmul.f32 %v1065, %v1067
    %v1069 = vsub.f32 1.0, %v1068
    %v1070 = vmul.f32 %v1067, %v1069
    %v1071 = vadd.f32 %v1067, %v1070
    %vm1072 = vweird.f32 %v1065
    %vm1073 = vweird.f32 %v1067
    %vm1074 = vmor %vm1072, %vm1073
    %v1075 = vsel %vm1074, %v1067, %v1071
    %v1076 = vand.u32 2147483647, %v1065
    %vm1077 = vcmp.eq.f32.partialorder %v1076, 8.507059e+37
    %v1078 = vand.u32 %v1065, 2147483648
    %v1079 = vor.u32 1.1754944e-38, %v1078
    %v1080 = vsel %vm1077, %v1079, %v1075
    %v1081 = vmul.f32 1.0, %v1080
    %v1082 = vrcp.pop %v1066
    %v1083 = vmul.f32 %v1066, %v1082
    %v1084 = vsub.f32 1.0, %v1083
    %v1085 = vmul.f32 %v1082, %v1084
    %v1086 = vadd.f32 %v1082, %v1085
    %vm1087 = vweird.f32 %v1066
    %vm1088 = vweird.f32 %v1082
    %vm1089 = vmor %vm1087, %vm1088
    %v1090 = vsel %vm1089, %v1082, %v1086
    %v1091 = vand.u32 2147483647, %v1066
    %vm1092 = vcmp.eq.f32.partialorder %v1091, 8.507059e+37
    %v1093 = vand.u32 %v1066, 2147483648
    %v1094 = vor.u32 1.1754944e-38, %v1093
    %v1095 = vsel %vm1092, %v1094, %v1090
    %v1096 = vmul.f32 1.0, %v1095
    %v1097 = vtanh.pop %v1058
    %v1099 = vrot.slane %v994, 6
    %v1101 = vmul.f32 %v1081, %v1099
    %v1102 = vmul.f32 %v1081, %v1097
    %1104 = vrot.lane.b32.xlu0 %v1102, 64
    %v1105 = vpop.permute.xlu0 %1104
    %v1107 = vadd.f32 %v1101, %v1105
    %v1108 = vtanh.pop %v1107
    %v1109 = vmul.f32 %v1096, %v1108
    %v1112 = vrot.slane %v318, 2
    %v1113 = vrot.slane %v319, 2
    %v1116 = vsel %vm199, %v320, %v1112
    %v1117 = vsel %vm200, %v321, %v1113
    %v1119 = vrot.slane %v1109, 4
    %1120 = vrot.lane.b32.xlu0 %v1119, 64
    %v1121 = vpop.permute.xlu0 %1120
    %v1122 = vsel %vm330, %v1121, 0
    %1124 = vmatpush.msra.mxu0 0.0
    %1125 = vmatpush.msra.mxu0 0.0
    %1126 = vmatpush.msra.mxu0 0.0
    %1127 = vmatpush.msra.mxu0 0.0
    %1128 = vmatpush.msra.mxu0 0.0
    %1129 = vmatpush.msra.mxu0 0.0
    %1130 = vmatpush.msra.mxu0 0.0
    %1131 = vmatpush.msra.mxu0 0.0
    %1132 = vmatpush.msra.mxu0 %v299
    %1133 = vmatpush.msra.mxu0 %v297
    %1134 = vmatpush.msra.mxu0 %v295
    %1135 = vmatpush.msra.mxu0 %v293
    %1136 = vmatpush.msra.mxu0 %v291
    %1137 = vmatpush.msra.mxu0 %v289
    %1138 = vmatpush.msra.mxu0 %v287
    %1139 = vmatpush.msra.mxu0 %v285
    %1140 = vmatmul.f32.gmra.mxu0 %v1122
    %v1141 = vpop.f32.mrf.mxu0
    %v1142 = vadd.f32 0.0, %v1141
    %1143 = vdwg.mxu0
    %1144 = vmatpush.msra.mxu0 0.0
    %1145 = vmatpush.msra.mxu0 0.0
    %1146 = vmatpush.msra.mxu0 0.0
    %1147 = vmatpush.msra.mxu0 0.0
    %1148 = vmatpush.msra.mxu0 0.0
    %1149 = vmatpush.msra.mxu0 0.0
    %1150 = vmatpush.msra.mxu0 0.0
    %1151 = vmatpush.msra.mxu0 0.0
    %1152 = vmatpush.msra.mxu0 %v300
    %1153 = vmatpush.msra.mxu0 %v298
    %1154 = vmatpush.msra.mxu0 %v296
    %1155 = vmatpush.msra.mxu0 %v294
    %1156 = vmatpush.msra.mxu0 %v292
    %1157 = vmatpush.msra.mxu0 %v290
    %1158 = vmatpush.msra.mxu0 %v288
    %1159 = vmatpush.msra.mxu0 %v286
    %1160 = vmatmul.f32.gmra.mxu0 %v1122
    %v1161 = vpop.f32.mrf.mxu0
    %v1162 = vadd.f32 0.0, %v1161
    %1163 = vdwg.mxu0
    %v1166 = vrot.slane %v1142, 2
    %v1167 = vrot.slane %v1162, 2
    %v1170 = vadd.f32 %v1116, %v1166
    %v1171 = vadd.f32 %v1117, %v1167
    %v1172 = vxor.u32 %v1170, 2147483648
    %v1173 = vxor.u32 %v1171, 2147483648
    %v1174 = vmul.f32 %v1172, 1.442695
    %v1175 = vpow.pop %v1174
    %v1176 = vmul.f32 %v1173, 1.442695
    %v1177 = vpow.pop %v1176
    %v1178 = vadd.f32 %v1175, 1.0
    %v1179 = vadd.f32 %v1177, 1.0
    %v1180 = vrcp.pop %v1178
    %v1181 = vmul.f32 %v1178, %v1180
    %v1182 = vsub.f32 1.0, %v1181
    %v1183 = vmul.f32 %v1180, %v1182
    %v1184 = vadd.f32 %v1180, %v1183
    %vm1185 = vweird.f32 %v1178
    %vm1186 = vweird.f32 %v1180
    %vm1187 = vmor %vm1185, %vm1186
    %v1188 = vsel %vm1187, %v1180, %v1184
    %v1189 = vand.u32 2147483647, %v1178
    %vm1190 = vcmp.eq.f32.partialorder %v1189, 8.507059e+37
    %v1191 = vand.u32 %v1178, 2147483648
    %v1192 = vor.u32 1.1754944e-38, %v1191
    %v1193 = vsel %vm1190, %v1192, %v1188
    %v1194 = vmul.f32 1.0, %v1193
    %v1195 = vrcp.pop %v1179
    %v1196 = vmul.f32 %v1179, %v1195
    %v1197 = vsub.f32 1.0, %v1196
    %v1198 = vmul.f32 %v1195, %v1197
    %v1199 = vadd.f32 %v1195, %v1198
    %vm1200 = vweird.f32 %v1179
    %vm1201 = vweird.f32 %v1195
    %vm1202 = vmor %vm1200, %vm1201
    %v1203 = vsel %vm1202, %v1195, %v1199
    %v1204 = vand.u32 2147483647, %v1179
    %vm1205 = vcmp.eq.f32.partialorder %v1204, 8.507059e+37
    %v1206 = vand.u32 %v1179, 2147483648
    %v1207 = vor.u32 1.1754944e-38, %v1206
    %v1208 = vsel %vm1205, %v1207, %v1203
    %v1209 = vmul.f32 1.0, %v1208
    %v1210 = vtanh.pop %v1171
    %v1212 = vrot.slane %v1107, 6
    %v1214 = vmul.f32 %v1194, %v1212
    %v1215 = vmul.f32 %v1194, %v1210
    %1217 = vrot.lane.b32.xlu0 %v1215, 64
    %v1218 = vpop.permute.xlu0 %1217
    %v1220 = vadd.f32 %v1214, %v1218
    %v1221 = vtanh.pop %v1220
    %v1222 = vmul.f32 %v1209, %v1221
    %v1225 = vrot.slane %v1222, 6
    %1226 = vrot.lane.b32.xlu0 %v1225, 64
    %v1227 = vpop.permute.xlu0 %1226
    %v1229 = vsel %vm308, %v442, %v1227
    %1230 = vrot.lane.b32.xlu0 %v543, 64
    %v1231 = vpop.permute.xlu0 %1230
    %v1233 = vrot.slane %v1109, 2
    %1234 = vrot.lane.b32.xlu0 %v1233, 64
    %v1235 = vpop.permute.xlu0 %1234
    %v1237 = vsel %vm308, %v1231, %v1235
    %1238 = vrot.lane.b32.xlu0 %v660, 64
    %v1239 = vpop.permute.xlu0 %1238
    %v1241 = vrot.slane %v996, 6
    %1242 = vrot.lane.b32.xlu0 %v1241, 64
    %v1243 = vpop.permute.xlu0 %1242
    %v1245 = vsel %vm308, %v1239, %v1243
    %1246 = vrot.lane.b32.xlu0 %v777, 64
    %v1247 = vpop.permute.xlu0 %1246
    %v1249 = vrot.slane %v884, 2
    %1250 = vrot.lane.b32.xlu0 %v1249, 64
    %v1251 = vpop.permute.xlu0 %1250
    %v1253 = vsel %vm308, %v1247, %v1251
    %v1256 = vsel %vm308, %v895, %v789
    %1257 = vrot.lane.b32.xlu0 %v996, 64
    %v1258 = vpop.permute.xlu0 %1257
    %v1260 = vrot.slane %v660, 2
    %1261 = vrot.lane.b32.xlu0 %v1260, 64
    %v1262 = vpop.permute.xlu0 %1261
    %v1264 = vsel %vm308, %v1258, %v1262
    %1265 = vrot.lane.b32.xlu0 %v1109, 64
    %v1266 = vpop.permute.xlu0 %1265
    %v1268 = vrot.slane %v543, 6
    %1269 = vrot.lane.b32.xlu0 %v1268, 64
    %v1270 = vpop.permute.xlu0 %1269
    %v1272 = vsel %vm308, %v1266, %v1270
    %1273 = vrot.lane.b32.xlu0 %v1222, 64
    %v1274 = vpop.permute.xlu0 %1273
    %v1276 = vrot.slane %v427, 2
    %1277 = vrot.lane.b32.xlu0 %v1276, 64
    %v1278 = vpop.permute.xlu0 %1277
    %v1280 = vsel %vm308, %v1274, %v1278
    %v1281 = vsel %vm228, %v1229, %v1237
    %vm1282 = vcmask 1043456
    %v1283 = vsel %vm1282, %v1281, %v1245
    %vm1284 = vcmask 1045504
    %v1285 = vsel %vm1284, %v1283, %v1253
    %v1286 = vsel %vm228, %v1256, %v1264
    %v1287 = vsel %vm1282, %v1286, %v1272
    %v1288 = vsel %vm1284, %v1287, %v1280
    %v1289 = vld [vmem:[#allocation8] sm:$0xff]
    %v1290 = vld [vmem:[#allocation8 + $0x8] sm:$0xff]
    %v1291 = vld [vmem:[#allocation8 + $0x10] sm:$0xff]
    %v1292 = vld [vmem:[#allocation8 + $0x18] sm:$0xff]
    %v1293 = vld [vmem:[#allocation8 + $0x20] sm:$0xff]
    %v1294 = vld [vmem:[#allocation8 + $0x28] sm:$0xff]
    %v1295 = vld [vmem:[#allocation8 + $0x30] sm:$0xff]
    %v1296 = vld [vmem:[#allocation8 + $0x38] sm:$0xff]
    %v1297 = vld [vmem:[#allocation8 + $0x40] sm:$0xff]
    %v1298 = vld [vmem:[#allocation8 + $0x48] sm:$0xff]
    %v1299 = vld [vmem:[#allocation8 + $0x50] sm:$0xff]
    %v1300 = vld [vmem:[#allocation8 + $0x58] sm:$0xff]
    %v1301 = vld [vmem:[#allocation8 + $0x60] sm:$0xff]
    %v1302 = vld [vmem:[#allocation8 + $0x68] sm:$0xff]
    %v1303 = vld [vmem:[#allocation8 + $0x70] sm:$0xff]
    %v1304 = vld [vmem:[#allocation8 + $0x78] sm:$0xff]
    %v1305 = vld [vmem:[%s10] sm:$0x3]
    %v1307 = vperm.slane %v1305, 0
    %v1308 = vperm.slane %v1305, 1
    %v1312 = vsel %vm330, %v1285, 0
    %v1315 = vsel %vm330, %v1288, 0
    %1317 = vmatpush.msra.mxu0 0.0
    %1318 = vmatpush.msra.mxu0 0.0
    %1319 = vmatpush.msra.mxu0 0.0
    %1320 = vmatpush.msra.mxu0 0.0
    %1321 = vmatpush.msra.mxu0 0.0
    %1322 = vmatpush.msra.mxu0 0.0
    %1323 = vmatpush.msra.mxu0 0.0
    %1324 = vmatpush.msra.mxu0 0.0
    %1325 = vmatpush.msra.mxu0 %v1303
    %1326 = vmatpush.msra.mxu0 %v1301
    %1327 = vmatpush.msra.mxu0 %v1299
    %1328 = vmatpush.msra.mxu0 %v1297
    %1329 = vmatpush.msra.mxu0 %v1295
    %1330 = vmatpush.msra.mxu0 %v1293
    %1331 = vmatpush.msra.mxu0 %v1291
    %1332 = vmatpush.msra.mxu0 %v1289
    %1333 = vmatmul.f32.gmra.mxu0 %v1312
    %v1334 = vpop.f32.mrf.mxu0
    %v1335 = vadd.f32 %v1307, %v1334
    %1336 = vmatmul.f32.gmra.mxu0 %v1315
    %v1337 = vpop.f32.mrf.mxu0
    %v1338 = vadd.f32 %v1307, %v1337
    %1339 = vdwg.mxu0
    %1340 = vmatpush.msra.mxu0 0.0
    %1341 = vmatpush.msra.mxu0 0.0
    %1342 = vmatpush.msra.mxu0 0.0
    %1343 = vmatpush.msra.mxu0 0.0
    %1344 = vmatpush.msra.mxu0 0.0
    %1345 = vmatpush.msra.mxu0 0.0
    %1346 = vmatpush.msra.mxu0 0.0
    %1347 = vmatpush.msra.mxu0 0.0
    %1348 = vmatpush.msra.mxu0 %v1304
    %1349 = vmatpush.msra.mxu0 %v1302
    %1350 = vmatpush.msra.mxu0 %v1300
    %1351 = vmatpush.msra.mxu0 %v1298
    %1352 = vmatpush.msra.mxu0 %v1296
    %1353 = vmatpush.msra.mxu0 %v1294
    %1354 = vmatpush.msra.mxu0 %v1292
    %1355 = vmatpush.msra.mxu0 %v1290
    %1356 = vmatmul.f32.gmra.mxu0 %v1312
    %v1357 = vpop.f32.mrf.mxu0
    %v1358 = vadd.f32 %v1308, %v1357
    %1359 = vmatmul.f32.gmra.mxu0 %v1315
    %v1360 = vpop.f32.mrf.mxu0
    %v1361 = vadd.f32 %v1308, %v1360
    %1362 = vdwg.mxu0
    %1363 = vst [vmem:[#allocation2] sm:$0xff] %v1335
    %1364 = vst [vmem:[#allocation2 + $0x8] sm:$0xff] %v1358
    %1365 = vst [vmem:[#allocation2 + $0x10] sm:$0xff] %v1338
    %1366 = vst [vmem:[#allocation2 + $0x18] sm:$0xff] %v1361
    %v1367 = vld [vmem:[#allocation10] sm:$0xff]
    %v1368 = vld [vmem:[#allocation10 + $0x8] sm:$0xff]
    %v1369 = vld [vmem:[#allocation10 + $0x10] sm:$0xff]
    %v1370 = vld [vmem:[#allocation10 + $0x18] sm:$0xff]
    %v1371 = vld [vmem:[#allocation10 + $0x20] sm:$0xff]
    %v1372 = vld [vmem:[#allocation10 + $0x28] sm:$0xff]
    %v1373 = vld [vmem:[#allocation10 + $0x30] sm:$0xff]
    %v1374 = vld [vmem:[#allocation10 + $0x38] sm:$0xff]
    %v1375 = vld [vmem:[#allocation10 + $0x40] sm:$0xff]
    %v1376 = vld [vmem:[#allocation10 + $0x48] sm:$0xff]
    %v1377 = vld [vmem:[#allocation10 + $0x50] sm:$0xff]
    %v1378 = vld [vmem:[#allocation10 + $0x58] sm:$0xff]
    %v1379 = vld [vmem:[#allocation10 + $0x60] sm:$0xff]
    %v1380 = vld [vmem:[#allocation10 + $0x68] sm:$0xff]
    %v1381 = vld [vmem:[#allocation10 + $0x70] sm:$0xff]
    %v1382 = vld [vmem:[#allocation10 + $0x78] sm:$0xff]
    %s1383 = scalar_lea.vmem %s1, 4
    %v1384 = vld [vmem:[%s1383] sm:$0x3]
    %s1385 = scalar_lea.vmem %s1, 6
    %v1386 = vld [vmem:[%s1385] sm:$0x3]
    %1388 = vrot.lane.b32.xlu0 %v1386, 32
    %v1389 = vpop.permute.xlu0 %1388
    %v1391 = vsel %vm308, %v1384, %v1389
    %s1392 = scalar_lea.vmem %s2, 4
    %v1393 = vld [vmem:[%s1392] sm:$0x3]
    %s1394 = scalar_lea.vmem %s2, 6
    %v1395 = vld [vmem:[%s1394] sm:$0x3]
    %1397 = vrot.lane.b32.xlu0 %v1395, 32
    %v1398 = vpop.permute.xlu0 %1397
    %v1400 = vsel %vm308, %v1393, %v1398
    %v1401 = vld [vmem:[#allocation2] sm:$0x3]
    %v1402 = vld [vmem:[#allocation2 + $0x8] sm:$0x3]
    %v1403 = vld [vmem:[#allocation2 + $0x10] sm:$0xc0]
    %v1404 = vld [vmem:[#allocation2 + $0x18] sm:$0xc0]
    %v1407 = vrot.slane %v1403, 6
    %v1408 = vrot.slane %v1404, 6
    %v1411 = vsel %vm199, %v1401, %v1407
    %v1412 = vsel %vm200, %v1402, %v1408
    %v1414 = vsel %vm330, %v1391, 0
    %1416 = vmatpush.msra.mxu0 0.0
    %1417 = vmatpush.msra.mxu0 0.0
    %1418 = vmatpush.msra.mxu0 0.0
    %1419 = vmatpush.msra.mxu0 0.0
    %1420 = vmatpush.msra.mxu0 0.0
    %1421 = vmatpush.msra.mxu0 0.0
    %1422 = vmatpush.msra.mxu0 0.0
    %1423 = vmatpush.msra.mxu0 0.0
    %1424 = vmatpush.msra.mxu0 %v1381
    %1425 = vmatpush.msra.mxu0 %v1379
    %1426 = vmatpush.msra.mxu0 %v1377
    %1427 = vmatpush.msra.mxu0 %v1375
    %1428 = vmatpush.msra.mxu0 %v1373
    %1429 = vmatpush.msra.mxu0 %v1371
    %1430 = vmatpush.msra.mxu0 %v1369
    %1431 = vmatpush.msra.mxu0 %v1367
    %1432 = vmatmul.f32.gmra.mxu0 %v1414
    %v1433 = vpop.f32.mrf.mxu0
    %v1434 = vadd.f32 0.0, %v1433
    %1435 = vdwg.mxu0
    %1436 = vmatpush.msra.mxu0 0.0
    %1437 = vmatpush.msra.mxu0 0.0
    %1438 = vmatpush.msra.mxu0 0.0
    %1439 = vmatpush.msra.mxu0 0.0
    %1440 = vmatpush.msra.mxu0 0.0
    %1441 = vmatpush.msra.mxu0 0.0
    %1442 = vmatpush.msra.mxu0 0.0
    %1443 = vmatpush.msra.mxu0 0.0
    %1444 = vmatpush.msra.mxu0 %v1382
    %1445 = vmatpush.msra.mxu0 %v1380
    %1446 = vmatpush.msra.mxu0 %v1378
    %1447 = vmatpush.msra.mxu0 %v1376
    %1448 = vmatpush.msra.mxu0 %v1374
    %1449 = vmatpush.msra.mxu0 %v1372
    %1450 = vmatpush.msra.mxu0 %v1370
    %1451 = vmatpush.msra.mxu0 %v1368
    %1452 = vmatmul.f32.gmra.mxu0 %v1414
    %v1453 = vpop.f32.mrf.mxu0
    %v1454 = vadd.f32 0.0, %v1453
    %1455 = vdwg.mxu0
    %v1456 = vadd.f32 %v1411, %v1434
    %v1457 = vadd.f32 %v1412, %v1454
    %v1458 = vxor.u32 %v1456, 2147483648
    %v1459 = vxor.u32 %v1457, 2147483648
    %v1460 = vmul.f32 %v1458, 1.442695
    %v1461 = vpow.pop %v1460
    %v1462 = vmul.f32 %v1459, 1.442695
    %v1463 = vpow.pop %v1462
    %v1464 = vadd.f32 %v1461, 1.0
    %v1465 = vadd.f32 %v1463, 1.0
    %v1466 = vrcp.pop %v1464
    %v1467 = vmul.f32 %v1464, %v1466
    %v1468 = vsub.f32 1.0, %v1467
    %v1469 = vmul.f32 %v1466, %v1468
    %v1470 = vadd.f32 %v1466, %v1469
    %vm1471 = vweird.f32 %v1464
    %vm1472 = vweird.f32 %v1466
    %vm1473 = vmor %vm1471, %vm1472
    %v1474 = vsel %vm1473, %v1466, %v1470
    %v1475 = vand.u32 2147483647, %v1464
    %vm1476 = vcmp.eq.f32.partialorder %v1475, 8.507059e+37
    %v1477 = vand.u32 %v1464, 2147483648
    %v1478 = vor.u32 1.1754944e-38, %v1477
    %v1479 = vsel %vm1476, %v1478, %v1474
    %v1480 = vmul.f32 1.0, %v1479
    %v1481 = vrcp.pop %v1465
    %v1482 = vmul.f32 %v1465, %v1481
    %v1483 = vsub.f32 1.0, %v1482
    %v1484 = vmul.f32 %v1481, %v1483
    %v1485 = vadd.f32 %v1481, %v1484
    %vm1486 = vweird.f32 %v1465
    %vm1487 = vweird.f32 %v1481
    %vm1488 = vmor %vm1486, %vm1487
    %v1489 = vsel %vm1488, %v1481, %v1485
    %v1490 = vand.u32 2147483647, %v1465
    %vm1491 = vcmp.eq.f32.partialorder %v1490, 8.507059e+37
    %v1492 = vand.u32 %v1465, 2147483648
    %v1493 = vor.u32 1.1754944e-38, %v1492
    %v1494 = vsel %vm1491, %v1493, %v1489
    %v1495 = vmul.f32 1.0, %v1494
    %v1496 = vtanh.pop %v1457
    %1498 = vrot.lane.b32.xlu0 %v1400, 64
    %v1499 = vpop.permute.xlu0 %1498
    %v1501 = vmul.f32 %v1480, %v1499
    %v1502 = vmul.f32 %v1480, %v1496
    %1504 = vrot.lane.b32.xlu0 %v1502, 64
    %v1505 = vpop.permute.xlu0 %1504
    %v1507 = vadd.f32 %v1501, %v1505
    %v1508 = vtanh.pop %v1507
    %v1509 = vmul.f32 %v1495, %v1508
    %v1510 = vld [vmem:[#allocation2] sm:$0xc]
    %v1511 = vld [vmem:[#allocation2 + $0x8] sm:$0xc]
    %v1512 = vld [vmem:[#allocation2 + $0x10] sm:$0x30]
    %v1513 = vld [vmem:[#allocation2 + $0x18] sm:$0x30]
    %v1516 = vrot.slane %v1512, 2
    %v1517 = vrot.slane %v1513, 2
    %v1520 = vsel %vm199, %v1510, %v1516
    %v1521 = vsel %vm200, %v1511, %v1517
    %1523 = vrot.lane.b32.xlu0 %v1509, 64
    %v1524 = vpop.permute.xlu0 %1523
    %v1525 = vsel %vm330, %v1524, 0
    %1527 = vmatpush.msra.mxu0 0.0
    %1528 = vmatpush.msra.mxu0 0.0
    %1529 = vmatpush.msra.mxu0 0.0
    %1530 = vmatpush.msra.mxu0 0.0
    %1531 = vmatpush.msra.mxu0 0.0
    %1532 = vmatpush.msra.mxu0 0.0
    %1533 = vmatpush.msra.mxu0 0.0
    %1534 = vmatpush.msra.mxu0 0.0
    %1535 = vmatpush.msra.mxu0 %v1381
    %1536 = vmatpush.msra.mxu0 %v1379
    %1537 = vmatpush.msra.mxu0 %v1377
    %1538 = vmatpush.msra.mxu0 %v1375
    %1539 = vmatpush.msra.mxu0 %v1373
    %1540 = vmatpush.msra.mxu0 %v1371
    %1541 = vmatpush.msra.mxu0 %v1369
    %1542 = vmatpush.msra.mxu0 %v1367
    %1543 = vmatmul.f32.gmra.mxu0 %v1525
    %v1544 = vpop.f32.mrf.mxu0
    %v1545 = vadd.f32 0.0, %v1544
    %1546 = vdwg.mxu0
    %1547 = vmatpush.msra.mxu0 0.0
    %1548 = vmatpush.msra.mxu0 0.0
    %1549 = vmatpush.msra.mxu0 0.0
    %1550 = vmatpush.msra.mxu0 0.0
    %1551 = vmatpush.msra.mxu0 0.0
    %1552 = vmatpush.msra.mxu0 0.0
    %1553 = vmatpush.msra.mxu0 0.0
    %1554 = vmatpush.msra.mxu0 0.0
    %1555 = vmatpush.msra.mxu0 %v1382
    %1556 = vmatpush.msra.mxu0 %v1380
    %1557 = vmatpush.msra.mxu0 %v1378
    %1558 = vmatpush.msra.mxu0 %v1376
    %1559 = vmatpush.msra.mxu0 %v1374
    %1560 = vmatpush.msra.mxu0 %v1372
    %1561 = vmatpush.msra.mxu0 %v1370
    %1562 = vmatpush.msra.mxu0 %v1368
    %1563 = vmatmul.f32.gmra.mxu0 %v1525
    %v1564 = vpop.f32.mrf.mxu0
    %v1565 = vadd.f32 0.0, %v1564
    %1566 = vdwg.mxu0
    %v1569 = vrot.slane %v1545, 6
    %v1570 = vrot.slane %v1565, 6
    %v1573 = vadd.f32 %v1520, %v1569
    %v1574 = vadd.f32 %v1521, %v1570
    %v1575 = vxor.u32 %v1573, 2147483648
    %v1576 = vxor.u32 %v1574, 2147483648
    %v1577 = vmul.f32 %v1575, 1.442695
    %v1578 = vpow.pop %v1577
    %v1579 = vmul.f32 %v1576, 1.442695
    %v1580 = vpow.pop %v1579
    %v1581 = vadd.f32 %v1578, 1.0
    %v1582 = vadd.f32 %v1580, 1.0
    %v1583 = vrcp.pop %v1581
    %v1584 = vmul.f32 %v1581, %v1583
    %v1585 = vsub.f32 1.0, %v1584
    %v1586 = vmul.f32 %v1583, %v1585
    %v1587 = vadd.f32 %v1583, %v1586
    %vm1588 = vweird.f32 %v1581
    %vm1589 = vweird.f32 %v1583
    %vm1590 = vmor %vm1588, %vm1589
    %v1591 = vsel %vm1590, %v1583, %v1587
    %v1592 = vand.u32 2147483647, %v1581
    %vm1593 = vcmp.eq.f32.partialorder %v1592, 8.507059e+37
    %v1594 = vand.u32 %v1581, 2147483648
    %v1595 = vor.u32 1.1754944e-38, %v1594
    %v1596 = vsel %vm1593, %v1595, %v1591
    %v1597 = vmul.f32 1.0, %v1596
    %v1598 = vrcp.pop %v1582
    %v1599 = vmul.f32 %v1582, %v1598
    %v1600 = vsub.f32 1.0, %v1599
    %v1601 = vmul.f32 %v1598, %v1600
    %v1602 = vadd.f32 %v1598, %v1601
    %vm1603 = vweird.f32 %v1582
    %vm1604 = vweird.f32 %v1598
    %vm1605 = vmor %vm1603, %vm1604
    %v1606 = vsel %vm1605, %v1598, %v1602
    %v1607 = vand.u32 2147483647, %v1582
    %vm1608 = vcmp.eq.f32.partialorder %v1607, 8.507059e+37
    %v1609 = vand.u32 %v1582, 2147483648
    %v1610 = vor.u32 1.1754944e-38, %v1609
    %v1611 = vsel %vm1608, %v1610, %v1606
    %v1612 = vmul.f32 1.0, %v1611
    %v1613 = vtanh.pop %v1574
    %v1615 = vrot.slane %v1507, 6
    %v1617 = vmul.f32 %v1597, %v1615
    %v1618 = vmul.f32 %v1597, %v1613
    %1620 = vrot.lane.b32.xlu0 %v1618, 64
    %v1621 = vpop.permute.xlu0 %1620
    %v1623 = vadd.f32 %v1617, %v1621
    %v1624 = vtanh.pop %v1623
    %v1625 = vmul.f32 %v1612, %v1624
    %v1626 = vld [vmem:[#allocation2] sm:$0x30]
    %v1627 = vld [vmem:[#allocation2 + $0x8] sm:$0x30]
    %v1628 = vld [vmem:[#allocation2 + $0x10] sm:$0xc]
    %v1629 = vld [vmem:[#allocation2 + $0x18] sm:$0xc]
    %v1632 = vrot.slane %v1628, 6
    %v1633 = vrot.slane %v1629, 6
    %v1636 = vsel %vm199, %v1626, %v1632
    %v1637 = vsel %vm200, %v1627, %v1633
    %v1639 = vrot.slane %v1625, 2
    %1640 = vrot.lane.b32.xlu0 %v1639, 64
    %v1641 = vpop.permute.xlu0 %1640
    %v1642 = vsel %vm330, %v1641, 0
    %1644 = vmatpush.msra.mxu0 0.0
    %1645 = vmatpush.msra.mxu0 0.0
    %1646 = vmatpush.msra.mxu0 0.0
    %1647 = vmatpush.msra.mxu0 0.0
    %1648 = vmatpush.msra.mxu0 0.0
    %1649 = vmatpush.msra.mxu0 0.0
    %1650 = vmatpush.msra.mxu0 0.0
    %1651 = vmatpush.msra.mxu0 0.0
    %1652 = vmatpush.msra.mxu0 %v1381
    %1653 = vmatpush.msra.mxu0 %v1379
    %1654 = vmatpush.msra.mxu0 %v1377
    %1655 = vmatpush.msra.mxu0 %v1375
    %1656 = vmatpush.msra.mxu0 %v1373
    %1657 = vmatpush.msra.mxu0 %v1371
    %1658 = vmatpush.msra.mxu0 %v1369
    %1659 = vmatpush.msra.mxu0 %v1367
    %1660 = vmatmul.f32.gmra.mxu0 %v1642
    %v1661 = vpop.f32.mrf.mxu0
    %v1662 = vadd.f32 0.0, %v1661
    %1663 = vdwg.mxu0
    %1664 = vmatpush.msra.mxu0 0.0
    %1665 = vmatpush.msra.mxu0 0.0
    %1666 = vmatpush.msra.mxu0 0.0
    %1667 = vmatpush.msra.mxu0 0.0
    %1668 = vmatpush.msra.mxu0 0.0
    %1669 = vmatpush.msra.mxu0 0.0
    %1670 = vmatpush.msra.mxu0 0.0
    %1671 = vmatpush.msra.mxu0 0.0
    %1672 = vmatpush.msra.mxu0 %v1382
    %1673 = vmatpush.msra.mxu0 %v1380
    %1674 = vmatpush.msra.mxu0 %v1378
    %1675 = vmatpush.msra.mxu0 %v1376
    %1676 = vmatpush.msra.mxu0 %v1374
    %1677 = vmatpush.msra.mxu0 %v1372
    %1678 = vmatpush.msra.mxu0 %v1370
    %1679 = vmatpush.msra.mxu0 %v1368
    %1680 = vmatmul.f32.gmra.mxu0 %v1642
    %v1681 = vpop.f32.mrf.mxu0
    %v1682 = vadd.f32 0.0, %v1681
    %1683 = vdwg.mxu0
    %v1686 = vrot.slane %v1662, 4
    %v1687 = vrot.slane %v1682, 4
    %v1690 = vadd.f32 %v1636, %v1686
    %v1691 = vadd.f32 %v1637, %v1687
    %v1692 = vxor.u32 %v1690, 2147483648
    %v1693 = vxor.u32 %v1691, 2147483648
    %v1694 = vmul.f32 %v1692, 1.442695
    %v1695 = vpow.pop %v1694
    %v1696 = vmul.f32 %v1693, 1.442695
    %v1697 = vpow.pop %v1696
    %v1698 = vadd.f32 %v1695, 1.0
    %v1699 = vadd.f32 %v1697, 1.0
    %v1700 = vrcp.pop %v1698
    %v1701 = vmul.f32 %v1698, %v1700
    %v1702 = vsub.f32 1.0, %v1701
    %v1703 = vmul.f32 %v1700, %v1702
    %v1704 = vadd.f32 %v1700, %v1703
    %vm1705 = vweird.f32 %v1698
    %vm1706 = vweird.f32 %v1700
    %vm1707 = vmor %vm1705, %vm1706
    %v1708 = vsel %vm1707, %v1700, %v1704
    %v1709 = vand.u32 2147483647, %v1698
    %vm1710 = vcmp.eq.f32.partialorder %v1709, 8.507059e+37
    %v1711 = vand.u32 %v1698, 2147483648
    %v1712 = vor.u32 1.1754944e-38, %v1711
    %v1713 = vsel %vm1710, %v1712, %v1708
    %v1714 = vmul.f32 1.0, %v1713
    %v1715 = vrcp.pop %v1699
    %v1716 = vmul.f32 %v1699, %v1715
    %v1717 = vsub.f32 1.0, %v1716
    %v1718 = vmul.f32 %v1715, %v1717
    %v1719 = vadd.f32 %v1715, %v1718
    %vm1720 = vweird.f32 %v1699
    %vm1721 = vweird.f32 %v1715
    %vm1722 = vmor %vm1720, %vm1721
    %v1723 = vsel %vm1722, %v1715, %v1719
    %v1724 = vand.u32 2147483647, %v1699
    %vm1725 = vcmp.eq.f32.partialorder %v1724, 8.507059e+37
    %v1726 = vand.u32 %v1699, 2147483648
    %v1727 = vor.u32 1.1754944e-38, %v1726
    %v1728 = vsel %vm1725, %v1727, %v1723
    %v1729 = vmul.f32 1.0, %v1728
    %v1730 = vtanh.pop %v1691
    %v1732 = vrot.slane %v1623, 6
    %v1734 = vmul.f32 %v1714, %v1732
    %v1735 = vmul.f32 %v1714, %v1730
    %1737 = vrot.lane.b32.xlu0 %v1735, 64
    %v1738 = vpop.permute.xlu0 %1737
    %v1740 = vadd.f32 %v1734, %v1738
    %v1741 = vtanh.pop %v1740
    %v1742 = vmul.f32 %v1729, %v1741
    %v1743 = vld [vmem:[#allocation2] sm:$0xc0]
    %v1744 = vld [vmem:[#allocation2 + $0x8] sm:$0xc0]
    %v1745 = vld [vmem:[#allocation2 + $0x10] sm:$0x3]
    %v1746 = vld [vmem:[#allocation2 + $0x18] sm:$0x3]
    %v1749 = vrot.slane %v1745, 2
    %v1750 = vrot.slane %v1746, 2
    %v1753 = vsel %vm199, %v1743, %v1749
    %v1754 = vsel %vm200, %v1744, %v1750
    %v1756 = vrot.slane %v1742, 4
    %1757 = vrot.lane.b32.xlu0 %v1756, 64
    %v1758 = vpop.permute.xlu0 %1757
    %v1759 = vsel %vm330, %v1758, 0
    %1761 = vmatpush.msra.mxu0 0.0
    %1762 = vmatpush.msra.mxu0 0.0
    %1763 = vmatpush.msra.mxu0 0.0
    %1764 = vmatpush.msra.mxu0 0.0
    %1765 = vmatpush.msra.mxu0 0.0
    %1766 = vmatpush.msra.mxu0 0.0
    %1767 = vmatpush.msra.mxu0 0.0
    %1768 = vmatpush.msra.mxu0 0.0
    %1769 = vmatpush.msra.mxu0 %v1381
    %1770 = vmatpush.msra.mxu0 %v1379
    %1771 = vmatpush.msra.mxu0 %v1377
    %1772 = vmatpush.msra.mxu0 %v1375
    %1773 = vmatpush.msra.mxu0 %v1373
    %1774 = vmatpush.msra.mxu0 %v1371
    %1775 = vmatpush.msra.mxu0 %v1369
    %1776 = vmatpush.msra.mxu0 %v1367
    %1777 = vmatmul.f32.gmra.mxu0 %v1759
    %v1778 = vpop.f32.mrf.mxu0
    %v1779 = vadd.f32 0.0, %v1778
    %1780 = vdwg.mxu0
    %1781 = vmatpush.msra.mxu0 0.0
    %1782 = vmatpush.msra.mxu0 0.0
    %1783 = vmatpush.msra.mxu0 0.0
    %1784 = vmatpush.msra.mxu0 0.0
    %1785 = vmatpush.msra.mxu0 0.0
    %1786 = vmatpush.msra.mxu0 0.0
    %1787 = vmatpush.msra.mxu0 0.0
    %1788 = vmatpush.msra.mxu0 0.0
    %1789 = vmatpush.msra.mxu0 %v1382
    %1790 = vmatpush.msra.mxu0 %v1380
    %1791 = vmatpush.msra.mxu0 %v1378
    %1792 = vmatpush.msra.mxu0 %v1376
    %1793 = vmatpush.msra.mxu0 %v1374
    %1794 = vmatpush.msra.mxu0 %v1372
    %1795 = vmatpush.msra.mxu0 %v1370
    %1796 = vmatpush.msra.mxu0 %v1368
    %1797 = vmatmul.f32.gmra.mxu0 %v1759
    %v1798 = vpop.f32.mrf.mxu0
    %v1799 = vadd.f32 0.0, %v1798
    %1800 = vdwg.mxu0
    %v1803 = vrot.slane %v1779, 2
    %v1804 = vrot.slane %v1799, 2
    %v1807 = vadd.f32 %v1753, %v1803
    %v1808 = vadd.f32 %v1754, %v1804
    %v1809 = vxor.u32 %v1807, 2147483648
    %v1810 = vxor.u32 %v1808, 2147483648
    %v1811 = vmul.f32 %v1809, 1.442695
    %v1812 = vpow.pop %v1811
    %v1813 = vmul.f32 %v1810, 1.442695
    %v1814 = vpow.pop %v1813
    %v1815 = vadd.f32 %v1812, 1.0
    %v1816 = vadd.f32 %v1814, 1.0
    %v1817 = vrcp.pop %v1815
    %v1818 = vmul.f32 %v1815, %v1817
    %v1819 = vsub.f32 1.0, %v1818
    %v1820 = vmul.f32 %v1817, %v1819
    %v1821 = vadd.f32 %v1817, %v1820
    %vm1822 = vweird.f32 %v1815
    %vm1823 = vweird.f32 %v1817
    %vm1824 = vmor %vm1822, %vm1823
    %v1825 = vsel %vm1824, %v1817, %v1821
    %v1826 = vand.u32 2147483647, %v1815
    %vm1827 = vcmp.eq.f32.partialorder %v1826, 8.507059e+37
    %v1828 = vand.u32 %v1815, 2147483648
    %v1829 = vor.u32 1.1754944e-38, %v1828
    %v1830 = vsel %vm1827, %v1829, %v1825
    %v1831 = vmul.f32 1.0, %v1830
    %v1832 = vrcp.pop %v1816
    %v1833 = vmul.f32 %v1816, %v1832
    %v1834 = vsub.f32 1.0, %v1833
    %v1835 = vmul.f32 %v1832, %v1834
    %v1836 = vadd.f32 %v1832, %v1835
    %vm1837 = vweird.f32 %v1816
    %vm1838 = vweird.f32 %v1832
    %vm1839 = vmor %vm1837, %vm1838
    %v1840 = vsel %vm1839, %v1832, %v1836
    %v1841 = vand.u32 2147483647, %v1816
    %vm1842 = vcmp.eq.f32.partialorder %v1841, 8.507059e+37
    %v1843 = vand.u32 %v1816, 2147483648
    %v1844 = vor.u32 1.1754944e-38, %v1843
    %v1845 = vsel %vm1842, %v1844, %v1840
    %v1846 = vmul.f32 1.0, %v1845
    %v1847 = vtanh.pop %v1808
    %v1849 = vrot.slane %v1740, 6
    %v1851 = vmul.f32 %v1831, %v1849
    %v1852 = vmul.f32 %v1831, %v1847
    %1854 = vrot.lane.b32.xlu0 %v1852, 64
    %v1855 = vpop.permute.xlu0 %1854
    %v1857 = vadd.f32 %v1851, %v1855
    %v1858 = vtanh.pop %v1857
    %v1859 = vmul.f32 %v1846, %v1858
    %v1862 = vrot.slane %v1743, 6
    %v1863 = vrot.slane %v1744, 6
    %v1866 = vsel %vm199, %v1745, %v1862
    %v1867 = vsel %vm200, %v1746, %v1863
    %v1869 = vrot.slane %v1859, 6
    %1870 = vrot.lane.b32.xlu0 %v1869, 64
    %v1871 = vpop.permute.xlu0 %1870
    %v1872 = vsel %vm330, %v1871, 0
    %1874 = vmatpush.msra.mxu0 0.0
    %1875 = vmatpush.msra.mxu0 0.0
    %1876 = vmatpush.msra.mxu0 0.0
    %1877 = vmatpush.msra.mxu0 0.0
    %1878 = vmatpush.msra.mxu0 0.0
    %1879 = vmatpush.msra.mxu0 0.0
    %1880 = vmatpush.msra.mxu0 0.0
    %1881 = vmatpush.msra.mxu0 0.0
    %1882 = vmatpush.msra.mxu0 %v1381
    %1883 = vmatpush.msra.mxu0 %v1379
    %1884 = vmatpush.msra.mxu0 %v1377
    %1885 = vmatpush.msra.mxu0 %v1375
    %1886 = vmatpush.msra.mxu0 %v1373
    %1887 = vmatpush.msra.mxu0 %v1371
    %1888 = vmatpush.msra.mxu0 %v1369
    %1889 = vmatpush.msra.mxu0 %v1367
    %1890 = vmatmul.f32.gmra.mxu0 %v1872
    %v1891 = vpop.f32.mrf.mxu0
    %v1892 = vadd.f32 0.0, %v1891
    %1893 = vdwg.mxu0
    %1894 = vmatpush.msra.mxu0 0.0
    %1895 = vmatpush.msra.mxu0 0.0
    %1896 = vmatpush.msra.mxu0 0.0
    %1897 = vmatpush.msra.mxu0 0.0
    %1898 = vmatpush.msra.mxu0 0.0
    %1899 = vmatpush.msra.mxu0 0.0
    %1900 = vmatpush.msra.mxu0 0.0
    %1901 = vmatpush.msra.mxu0 0.0
    %1902 = vmatpush.msra.mxu0 %v1382
    %1903 = vmatpush.msra.mxu0 %v1380
    %1904 = vmatpush.msra.mxu0 %v1378
    %1905 = vmatpush.msra.mxu0 %v1376
    %1906 = vmatpush.msra.mxu0 %v1374
    %1907 = vmatpush.msra.mxu0 %v1372
    %1908 = vmatpush.msra.mxu0 %v1370
    %1909 = vmatpush.msra.mxu0 %v1368
    %1910 = vmatmul.f32.gmra.mxu0 %v1872
    %v1911 = vpop.f32.mrf.mxu0
    %v1912 = vadd.f32 0.0, %v1911
    %1913 = vdwg.mxu0
    %v1914 = vadd.f32 %v1866, %v1892
    %v1915 = vadd.f32 %v1867, %v1912
    %v1916 = vxor.u32 %v1914, 2147483648
    %v1917 = vxor.u32 %v1915, 2147483648
    %v1918 = vmul.f32 %v1916, 1.442695
    %v1919 = vpow.pop %v1918
    %v1920 = vmul.f32 %v1917, 1.442695
    %v1921 = vpow.pop %v1920
    %v1922 = vadd.f32 %v1919, 1.0
    %v1923 = vadd.f32 %v1921, 1.0
    %v1924 = vrcp.pop %v1922
    %v1925 = vmul.f32 %v1922, %v1924
    %v1926 = vsub.f32 1.0, %v1925
    %v1927 = vmul.f32 %v1924, %v1926
    %v1928 = vadd.f32 %v1924, %v1927
    %vm1929 = vweird.f32 %v1922
    %vm1930 = vweird.f32 %v1924
    %vm1931 = vmor %vm1929, %vm1930
    %v1932 = vsel %vm1931, %v1924, %v1928
    %v1933 = vand.u32 2147483647, %v1922
    %vm1934 = vcmp.eq.f32.partialorder %v1933, 8.507059e+37
    %v1935 = vand.u32 %v1922, 2147483648
    %v1936 = vor.u32 1.1754944e-38, %v1935
    %v1937 = vsel %vm1934, %v1936, %v1932
    %v1938 = vmul.f32 1.0, %v1937
    %v1939 = vrcp.pop %v1923
    %v1940 = vmul.f32 %v1923, %v1939
    %v1941 = vsub.f32 1.0, %v1940
    %v1942 = vmul.f32 %v1939, %v1941
    %v1943 = vadd.f32 %v1939, %v1942
    %vm1944 = vweird.f32 %v1923
    %vm1945 = vweird.f32 %v1939
    %vm1946 = vmor %vm1944, %vm1945
    %v1947 = vsel %vm1946, %v1939, %v1943
    %v1948 = vand.u32 2147483647, %v1923
    %vm1949 = vcmp.eq.f32.partialorder %v1948, 8.507059e+37
    %v1950 = vand.u32 %v1923, 2147483648
    %v1951 = vor.u32 1.1754944e-38, %v1950
    %v1952 = vsel %vm1949, %v1951, %v1947
    %v1953 = vmul.f32 1.0, %v1952
    %v1954 = vtanh.pop %v1915
    %v1956 = vrot.slane %v1857, 6
    %v1958 = vmul.f32 %v1938, %v1956
    %v1959 = vmul.f32 %v1938, %v1954
    %1961 = vrot.lane.b32.xlu0 %v1959, 64
    %v1962 = vpop.permute.xlu0 %1961
    %v1964 = vadd.f32 %v1958, %v1962
    %v1965 = vtanh.pop %v1964
    %v1966 = vmul.f32 %v1953, %v1965
    %v1969 = vrot.slane %v1626, 2
    %v1970 = vrot.slane %v1627, 2
    %v1973 = vsel %vm199, %v1628, %v1969
    %v1974 = vsel %vm200, %v1629, %v1970
    %1976 = vrot.lane.b32.xlu0 %v1966, 64
    %v1977 = vpop.permute.xlu0 %1976
    %v1978 = vsel %vm330, %v1977, 0
    %1980 = vmatpush.msra.mxu0 0.0
    %1981 = vmatpush.msra.mxu0 0.0
    %1982 = vmatpush.msra.mxu0 0.0
    %1983 = vmatpush.msra.mxu0 0.0
    %1984 = vmatpush.msra.mxu0 0.0
    %1985 = vmatpush.msra.mxu0 0.0
    %1986 = vmatpush.msra.mxu0 0.0
    %1987 = vmatpush.msra.mxu0 0.0
    %1988 = vmatpush.msra.mxu0 %v1381
    %1989 = vmatpush.msra.mxu0 %v1379
    %1990 = vmatpush.msra.mxu0 %v1377
    %1991 = vmatpush.msra.mxu0 %v1375
    %1992 = vmatpush.msra.mxu0 %v1373
    %1993 = vmatpush.msra.mxu0 %v1371
    %1994 = vmatpush.msra.mxu0 %v1369
    %1995 = vmatpush.msra.mxu0 %v1367
    %1996 = vmatmul.f32.gmra.mxu0 %v1978
    %v1997 = vpop.f32.mrf.mxu0
    %v1998 = vadd.f32 0.0, %v1997
    %1999 = vdwg.mxu0
    %2000 = vmatpush.msra.mxu0 0.0
    %2001 = vmatpush.msra.mxu0 0.0
    %2002 = vmatpush.msra.mxu0 0.0
    %2003 = vmatpush.msra.mxu0 0.0
    %2004 = vmatpush.msra.mxu0 0.0
    %2005 = vmatpush.msra.mxu0 0.0
    %2006 = vmatpush.msra.mxu0 0.0
    %2007 = vmatpush.msra.mxu0 0.0
    %2008 = vmatpush.msra.mxu0 %v1382
    %2009 = vmatpush.msra.mxu0 %v1380
    %2010 = vmatpush.msra.mxu0 %v1378
    %2011 = vmatpush.msra.mxu0 %v1376
    %2012 = vmatpush.msra.mxu0 %v1374
    %2013 = vmatpush.msra.mxu0 %v1372
    %2014 = vmatpush.msra.mxu0 %v1370
    %2015 = vmatpush.msra.mxu0 %v1368
    %2016 = vmatmul.f32.gmra.mxu0 %v1978
    %v2017 = vpop.f32.mrf.mxu0
    %v2018 = vadd.f32 0.0, %v2017
    %2019 = vdwg.mxu0
    %v2022 = vrot.slane %v1998, 6
    %v2023 = vrot.slane %v2018, 6
    %v2026 = vadd.f32 %v1973, %v2022
    %v2027 = vadd.f32 %v1974, %v2023
    %v2028 = vxor.u32 %v2026, 2147483648
    %v2029 = vxor.u32 %v2027, 2147483648
    %v2030 = vmul.f32 %v2028, 1.442695
    %v2031 = vpow.pop %v2030
    %v2032 = vmul.f32 %v2029, 1.442695
    %v2033 = vpow.pop %v2032
    %v2034 = vadd.f32 %v2031, 1.0
    %v2035 = vadd.f32 %v2033, 1.0
    %v2036 = vrcp.pop %v2034
    %v2037 = vmul.f32 %v2034, %v2036
    %v2038 = vsub.f32 1.0, %v2037
    %v2039 = vmul.f32 %v2036, %v2038
    %v2040 = vadd.f32 %v2036, %v2039
    %vm2041 = vweird.f32 %v2034
    %vm2042 = vweird.f32 %v2036
    %vm2043 = vmor %vm2041, %vm2042
    %v2044 = vsel %vm2043, %v2036, %v2040
    %v2045 = vand.u32 2147483647, %v2034
    %vm2046 = vcmp.eq.f32.partialorder %v2045, 8.507059e+37
    %v2047 = vand.u32 %v2034, 2147483648
    %v2048 = vor.u32 1.1754944e-38, %v2047
    %v2049 = vsel %vm2046, %v2048, %v2044
    %v2050 = vmul.f32 1.0, %v2049
    %v2051 = vrcp.pop %v2035
    %v2052 = vmul.f32 %v2035, %v2051
    %v2053 = vsub.f32 1.0, %v2052
    %v2054 = vmul.f32 %v2051, %v2053
    %v2055 = vadd.f32 %v2051, %v2054
    %vm2056 = vweird.f32 %v2035
    %vm2057 = vweird.f32 %v2051
    %vm2058 = vmor %vm2056, %vm2057
    %v2059 = vsel %vm2058, %v2051, %v2055
    %v2060 = vand.u32 2147483647, %v2035
    %vm2061 = vcmp.eq.f32.partialorder %v2060, 8.507059e+37
    %v2062 = vand.u32 %v2035, 2147483648
    %v2063 = vor.u32 1.1754944e-38, %v2062
    %v2064 = vsel %vm2061, %v2063, %v2059
    %v2065 = vmul.f32 1.0, %v2064
    %v2066 = vtanh.pop %v2027
    %v2068 = vrot.slane %v1964, 6
    %v2070 = vmul.f32 %v2050, %v2068
    %v2071 = vmul.f32 %v2050, %v2066
    %2073 = vrot.lane.b32.xlu0 %v2071, 64
    %v2074 = vpop.permute.xlu0 %2073
    %v2076 = vadd.f32 %v2070, %v2074
    %v2077 = vtanh.pop %v2076
    %v2078 = vmul.f32 %v2065, %v2077
    %v2081 = vrot.slane %v1510, 6
    %v2082 = vrot.slane %v1511, 6
    %v2085 = vsel %vm199, %v1512, %v2081
    %v2086 = vsel %vm200, %v1513, %v2082
    %v2088 = vrot.slane %v2078, 2
    %2089 = vrot.lane.b32.xlu0 %v2088, 64
    %v2090 = vpop.permute.xlu0 %2089
    %v2091 = vsel %vm330, %v2090, 0
    %2093 = vmatpush.msra.mxu0 0.0
    %2094 = vmatpush.msra.mxu0 0.0
    %2095 = vmatpush.msra.mxu0 0.0
    %2096 = vmatpush.msra.mxu0 0.0
    %2097 = vmatpush.msra.mxu0 0.0
    %2098 = vmatpush.msra.mxu0 0.0
    %2099 = vmatpush.msra.mxu0 0.0
    %2100 = vmatpush.msra.mxu0 0.0
    %2101 = vmatpush.msra.mxu0 %v1381
    %2102 = vmatpush.msra.mxu0 %v1379
    %2103 = vmatpush.msra.mxu0 %v1377
    %2104 = vmatpush.msra.mxu0 %v1375
    %2105 = vmatpush.msra.mxu0 %v1373
    %2106 = vmatpush.msra.mxu0 %v1371
    %2107 = vmatpush.msra.mxu0 %v1369
    %2108 = vmatpush.msra.mxu0 %v1367
    %2109 = vmatmul.f32.gmra.mxu0 %v2091
    %v2110 = vpop.f32.mrf.mxu0
    %v2111 = vadd.f32 0.0, %v2110
    %2112 = vdwg.mxu0
    %2113 = vmatpush.msra.mxu0 0.0
    %2114 = vmatpush.msra.mxu0 0.0
    %2115 = vmatpush.msra.mxu0 0.0
    %2116 = vmatpush.msra.mxu0 0.0
    %2117 = vmatpush.msra.mxu0 0.0
    %2118 = vmatpush.msra.mxu0 0.0
    %2119 = vmatpush.msra.mxu0 0.0
    %2120 = vmatpush.msra.mxu0 0.0
    %2121 = vmatpush.msra.mxu0 %v1382
    %2122 = vmatpush.msra.mxu0 %v1380
    %2123 = vmatpush.msra.mxu0 %v1378
    %2124 = vmatpush.msra.mxu0 %v1376
    %2125 = vmatpush.msra.mxu0 %v1374
    %2126 = vmatpush.msra.mxu0 %v1372
    %2127 = vmatpush.msra.mxu0 %v1370
    %2128 = vmatpush.msra.mxu0 %v1368
    %2129 = vmatmul.f32.gmra.mxu0 %v2091
    %v2130 = vpop.f32.mrf.mxu0
    %v2131 = vadd.f32 0.0, %v2130
    %2132 = vdwg.mxu0
    %v2135 = vrot.slane %v2111, 4
    %v2136 = vrot.slane %v2131, 4
    %v2139 = vadd.f32 %v2085, %v2135
    %v2140 = vadd.f32 %v2086, %v2136
    %v2141 = vxor.u32 %v2139, 2147483648
    %v2142 = vxor.u32 %v2140, 2147483648
    %v2143 = vmul.f32 %v2141, 1.442695
    %v2144 = vpow.pop %v2143
    %v2145 = vmul.f32 %v2142, 1.442695
    %v2146 = vpow.pop %v2145
    %v2147 = vadd.f32 %v2144, 1.0
    %v2148 = vadd.f32 %v2146, 1.0
    %v2149 = vrcp.pop %v2147
    %v2150 = vmul.f32 %v2147, %v2149
    %v2151 = vsub.f32 1.0, %v2150
    %v2152 = vmul.f32 %v2149, %v2151
    %v2153 = vadd.f32 %v2149, %v2152
    %vm2154 = vweird.f32 %v2147
    %vm2155 = vweird.f32 %v2149
    %vm2156 = vmor %vm2154, %vm2155
    %v2157 = vsel %vm2156, %v2149, %v2153
    %v2158 = vand.u32 2147483647, %v2147
    %vm2159 = vcmp.eq.f32.partialorder %v2158, 8.507059e+37
    %v2160 = vand.u32 %v2147, 2147483648
    %v2161 = vor.u32 1.1754944e-38, %v2160
    %v2162 = vsel %vm2159, %v2161, %v2157
    %v2163 = vmul.f32 1.0, %v2162
    %v2164 = vrcp.pop %v2148
    %v2165 = vmul.f32 %v2148, %v2164
    %v2166 = vsub.f32 1.0, %v2165
    %v2167 = vmul.f32 %v2164, %v2166
    %v2168 = vadd.f32 %v2164, %v2167
    %vm2169 = vweird.f32 %v2148
    %vm2170 = vweird.f32 %v2164
    %vm2171 = vmor %vm2169, %vm2170
    %v2172 = vsel %vm2171, %v2164, %v2168
    %v2173 = vand.u32 2147483647, %v2148
    %vm2174 = vcmp.eq.f32.partialorder %v2173, 8.507059e+37
    %v2175 = vand.u32 %v2148, 2147483648
    %v2176 = vor.u32 1.1754944e-38, %v2175
    %v2177 = vsel %vm2174, %v2176, %v2172
    %v2178 = vmul.f32 1.0, %v2177
    %v2179 = vtanh.pop %v2140
    %v2181 = vrot.slane %v2076, 6
    %v2183 = vmul.f32 %v2163, %v2181
    %v2184 = vmul.f32 %v2163, %v2179
    %2186 = vrot.lane.b32.xlu0 %v2184, 64
    %v2187 = vpop.permute.xlu0 %2186
    %v2189 = vadd.f32 %v2183, %v2187
    %v2190 = vtanh.pop %v2189
    %v2191 = vmul.f32 %v2178, %v2190
    %v2194 = vrot.slane %v1401, 2
    %v2195 = vrot.slane %v1402, 2
    %v2198 = vsel %vm199, %v1403, %v2194
    %v2199 = vsel %vm200, %v1404, %v2195
    %v2201 = vrot.slane %v2191, 4
    %2202 = vrot.lane.b32.xlu0 %v2201, 64
    %v2203 = vpop.permute.xlu0 %2202
    %v2204 = vsel %vm330, %v2203, 0
    %2206 = vmatpush.msra.mxu0 0.0
    %2207 = vmatpush.msra.mxu0 0.0
    %2208 = vmatpush.msra.mxu0 0.0
    %2209 = vmatpush.msra.mxu0 0.0
    %2210 = vmatpush.msra.mxu0 0.0
    %2211 = vmatpush.msra.mxu0 0.0
    %2212 = vmatpush.msra.mxu0 0.0
    %2213 = vmatpush.msra.mxu0 0.0
    %2214 = vmatpush.msra.mxu0 %v1381
    %2215 = vmatpush.msra.mxu0 %v1379
    %2216 = vmatpush.msra.mxu0 %v1377
    %2217 = vmatpush.msra.mxu0 %v1375
    %2218 = vmatpush.msra.mxu0 %v1373
    %2219 = vmatpush.msra.mxu0 %v1371
    %2220 = vmatpush.msra.mxu0 %v1369
    %2221 = vmatpush.msra.mxu0 %v1367
    %2222 = vmatmul.f32.gmra.mxu0 %v2204
    %v2223 = vpop.f32.mrf.mxu0
    %v2224 = vadd.f32 0.0, %v2223
    %2225 = vdwg.mxu0
    %2226 = vmatpush.msra.mxu0 0.0
    %2227 = vmatpush.msra.mxu0 0.0
    %2228 = vmatpush.msra.mxu0 0.0
    %2229 = vmatpush.msra.mxu0 0.0
    %2230 = vmatpush.msra.mxu0 0.0
    %2231 = vmatpush.msra.mxu0 0.0
    %2232 = vmatpush.msra.mxu0 0.0
    %2233 = vmatpush.msra.mxu0 0.0
    %2234 = vmatpush.msra.mxu0 %v1382
    %2235 = vmatpush.msra.mxu0 %v1380
    %2236 = vmatpush.msra.mxu0 %v1378
    %2237 = vmatpush.msra.mxu0 %v1376
    %2238 = vmatpush.msra.mxu0 %v1374
    %2239 = vmatpush.msra.mxu0 %v1372
    %2240 = vmatpush.msra.mxu0 %v1370
    %2241 = vmatpush.msra.mxu0 %v1368
    %2242 = vmatmul.f32.gmra.mxu0 %v2204
    %v2243 = vpop.f32.mrf.mxu0
    %v2244 = vadd.f32 0.0, %v2243
    %2245 = vdwg.mxu0
    %v2248 = vrot.slane %v2224, 2
    %v2249 = vrot.slane %v2244, 2
    %v2252 = vadd.f32 %v2198, %v2248
    %v2253 = vadd.f32 %v2199, %v2249
    %v2254 = vxor.u32 %v2252, 2147483648
    %v2255 = vxor.u32 %v2253, 2147483648
    %v2256 = vmul.f32 %v2254, 1.442695
    %v2257 = vpow.pop %v2256
    %v2258 = vmul.f32 %v2255, 1.442695
    %v2259 = vpow.pop %v2258
    %v2260 = vadd.f32 %v2257, 1.0
    %v2261 = vadd.f32 %v2259, 1.0
    %v2262 = vrcp.pop %v2260
    %v2263 = vmul.f32 %v2260, %v2262
    %v2264 = vsub.f32 1.0, %v2263
    %v2265 = vmul.f32 %v2262, %v2264
    %v2266 = vadd.f32 %v2262, %v2265
    %vm2267 = vweird.f32 %v2260
    %vm2268 = vweird.f32 %v2262
    %vm2269 = vmor %vm2267, %vm2268
    %v2270 = vsel %vm2269, %v2262, %v2266
    %v2271 = vand.u32 2147483647, %v2260
    %vm2272 = vcmp.eq.f32.partialorder %v2271, 8.507059e+37
    %v2273 = vand.u32 %v2260, 2147483648
    %v2274 = vor.u32 1.1754944e-38, %v2273
    %v2275 = vsel %vm2272, %v2274, %v2270
    %v2276 = vmul.f32 1.0, %v2275
    %v2277 = vrcp.pop %v2261
    %v2278 = vmul.f32 %v2261, %v2277
    %v2279 = vsub.f32 1.0, %v2278
    %v2280 = vmul.f32 %v2277, %v2279
    %v2281 = vadd.f32 %v2277, %v2280
    %vm2282 = vweird.f32 %v2261
    %vm2283 = vweird.f32 %v2277
    %vm2284 = vmor %vm2282, %vm2283
    %v2285 = vsel %vm2284, %v2277, %v2281
    %v2286 = vand.u32 2147483647, %v2261
    %vm2287 = vcmp.eq.f32.partialorder %v2286, 8.507059e+37
    %v2288 = vand.u32 %v2261, 2147483648
    %v2289 = vor.u32 1.1754944e-38, %v2288
    %v2290 = vsel %vm2287, %v2289, %v2285
    %v2291 = vmul.f32 1.0, %v2290
    %v2292 = vtanh.pop %v2253
    %v2294 = vrot.slane %v2189, 6
    %v2296 = vmul.f32 %v2276, %v2294
    %v2297 = vmul.f32 %v2276, %v2292
    %2299 = vrot.lane.b32.xlu0 %v2297, 64
    %v2300 = vpop.permute.xlu0 %2299
    %v2302 = vadd.f32 %v2296, %v2300
    %v2303 = vtanh.pop %v2302
    %v2304 = vmul.f32 %v2291, %v2303
    %v2307 = vrot.slane %v2304, 6
    %2308 = vrot.lane.b32.xlu0 %v2307, 64
    %v2309 = vpop.permute.xlu0 %2308
    %v2311 = vsel %vm308, %v1524, %v2309
    %2312 = vrot.lane.b32.xlu0 %v1625, 64
    %v2313 = vpop.permute.xlu0 %2312
    %v2315 = vrot.slane %v2191, 2
    %2316 = vrot.lane.b32.xlu0 %v2315, 64
    %v2317 = vpop.permute.xlu0 %2316
    %v2319 = vsel %vm308, %v2313, %v2317
    %2320 = vrot.lane.b32.xlu0 %v1742, 64
    %v2321 = vpop.permute.xlu0 %2320
    %v2323 = vrot.slane %v2078, 6
    %2324 = vrot.lane.b32.xlu0 %v2323, 64
    %v2325 = vpop.permute.xlu0 %2324
    %v2327 = vsel %vm308, %v2321, %v2325
    %2328 = vrot.lane.b32.xlu0 %v1859, 64
    %v2329 = vpop.permute.xlu0 %2328
    %v2331 = vrot.slane %v1966, 2
    %2332 = vrot.lane.b32.xlu0 %v2331, 64
    %v2333 = vpop.permute.xlu0 %2332
    %v2335 = vsel %vm308, %v2329, %v2333
    %v2338 = vsel %vm308, %v1977, %v1871
    %2339 = vrot.lane.b32.xlu0 %v2078, 64
    %v2340 = vpop.permute.xlu0 %2339
    %v2342 = vrot.slane %v1742, 2
    %2343 = vrot.lane.b32.xlu0 %v2342, 64
    %v2344 = vpop.permute.xlu0 %2343
    %v2346 = vsel %vm308, %v2340, %v2344
    %2347 = vrot.lane.b32.xlu0 %v2191, 64
    %v2348 = vpop.permute.xlu0 %2347
    %v2350 = vrot.slane %v1625, 6
    %2351 = vrot.lane.b32.xlu0 %v2350, 64
    %v2352 = vpop.permute.xlu0 %2351
    %v2354 = vsel %vm308, %v2348, %v2352
    %2355 = vrot.lane.b32.xlu0 %v2304, 64
    %v2356 = vpop.permute.xlu0 %2355
    %v2358 = vrot.slane %v1509, 2
    %2359 = vrot.lane.b32.xlu0 %v2358, 64
    %v2360 = vpop.permute.xlu0 %2359
    %v2362 = vsel %vm308, %v2356, %v2360
    %v2363 = vsel %vm228, %v2311, %v2319
    %v2364 = vsel %vm1282, %v2363, %v2327
    %v2365 = vsel %vm1284, %v2364, %v2335
    %v2366 = vsel %vm228, %v2338, %v2346
    %v2367 = vsel %vm1282, %v2366, %v2354
    %v2368 = vsel %vm1284, %v2367, %v2362
    %v2369 = vld [vmem:[#allocation3] sm:$0xff]
    %v2370 = vld [vmem:[#allocation3 + $0x8] sm:$0xff]
    %v2371 = vld [vmem:[#allocation3 + $0x10] sm:$0xff]
    %v2372 = vld [vmem:[#allocation3 + $0x18] sm:$0xff]
    %v2373 = vld [vmem:[#allocation3 + $0x20] sm:$0xff]
    %v2374 = vld [vmem:[#allocation3 + $0x28] sm:$0xff]
    %v2375 = vld [vmem:[#allocation3 + $0x30] sm:$0xff]
    %v2376 = vld [vmem:[#allocation3 + $0x38] sm:$0xff]
    %v2377 = vld [vmem:[%s4] sm:$0x1]
    %v2379 = vperm.slane %v2377, 0
    %v2382 = vsel %vm330, %v2365, 0
    %v2385 = vsel %vm330, %v2368, 0
    %2387 = vmatpush.msra.mxu0 0.0
    %2388 = vmatpush.msra.mxu0 0.0
    %2389 = vmatpush.msra.mxu0 0.0
    %2390 = vmatpush.msra.mxu0 0.0
    %2391 = vmatpush.msra.mxu0 0.0
    %2392 = vmatpush.msra.mxu0 0.0
    %2393 = vmatpush.msra.mxu0 0.0
    %2394 = vmatpush.msra.mxu0 0.0
    %2395 = vmatpush.msra.mxu0 %v2376
    %2396 = vmatpush.msra.mxu0 %v2375
    %2397 = vmatpush.msra.mxu0 %v2374
    %2398 = vmatpush.msra.mxu0 %v2373
    %2399 = vmatpush.msra.mxu0 %v2372
    %2400 = vmatpush.msra.mxu0 %v2371
    %2401 = vmatpush.msra.mxu0 %v2370
    %2402 = vmatpush.msra.mxu0 %v2369
    %2403 = vmatmul.f32.gmra.mxu0 %v2382
    %v2404 = vpop.f32.mrf.mxu0
    %v2405 = vadd.f32 %v2379, %v2404
    %2406 = vmatmul.f32.gmra.mxu0 %v2385
    %v2407 = vpop.f32.mrf.mxu0
    %v2408 = vadd.f32 %v2379, %v2407
    %2409 = vdwg.mxu0
    %2410 = vst [vmem:[%s11] sm:$0xff] %v2405
    %2411 = vst [vmem:[%s11 + $0x8] sm:$0xff] %v2408
    // Predicated region
    $region66: #{my_classifier_2a_forward.1} parent=1 // pred_check
      _
    $region67: #{my_classifier_2a_forward.1} parent=1 // pred_check_branch
      %2413 = sbr.rel (0) target = $region69
    $region68: #{my_classifier_2a_forward.1} parent=1 // pred_region
      _
    $region69: #{my_classifier_2a_forward.1} parent=1 // pred_fallthru
      _
    // Predicated region
    $region70: #{my_classifier_2a_forward.1} parent=1 // pred_check
      _
    $region71: #{my_classifier_2a_forward.1} parent=1 // pred_check_branch
      %2415 = sbr.rel (0) target = $region73
    $region72: #{my_classifier_2a_forward.1} parent=1 // pred_region
      _
    $region73: #{my_classifier_2a_forward.1} parent=1 // pred_fallthru
      _
    %2416 = vsyncpa [#allocation4], 1
    %2417 = vsyncpa [#allocation6], 1
    %2418 = vsyncpa [#allocation9], 1

</llo_original>
